<compile_context>
chip_gen: v5e
topology: v5e:2x2
jax: 0.10.0
libtpu: 0.0.40
codegen_flags: <defaults>
</compile_context>

<pallas_src>
import math
import functools

import jax
import jax.numpy as jnp
from jax.experimental import pallas as pl
from jax.experimental.pallas import tpu as pltpu


def _round_up(x, m):
    return (x + m - 1) // m * m


def _cdiv(a, b):
    return (a + b - 1) // b


def _fold_bn(bn, eps=1e-5):
    gamma, beta, mean, var = bn
    scale = gamma / jnp.sqrt(var + eps)
    bias = beta - mean * scale
    return scale, bias


def _vmem_limit(block_bytes):
    # explicit scoped-VMEM limit: double-buffered blocks + slack, never below the
    # 32 MiB default, capped at 64 MiB (v7x physical per-TC).
    total = 2 * int(block_bytes) + (4 << 20)
    return int(min(max(total, 32 << 20), 64 << 20))


def _pick_row_tile(rows, target):
    """Sublane-aligned row tile with minimal padding waste (<= target rows/tile)."""
    n_t = max(1, _cdiv(rows, target))
    t = _round_up(_cdiv(rows, n_t), 8)
    return t, n_t


# ---------------------------------------------------------------------------
# K1: fused pointwise (1x1) conv == bf16 matmul (+ folded BN bias) + optional ReLU
# ---------------------------------------------------------------------------
def _mm_kernel(act, x_ref, w_ref, b_ref, o_ref):
    acc = jnp.dot(x_ref[...], w_ref[...], preferred_element_type=jnp.float32)
    acc = acc + b_ref[...]
    if act == "relu":
        acc = jnp.maximum(acc, 0.0)
    o_ref[...] = acc.astype(o_ref.dtype)


def fused_matmul_bias_act(x2d, w2d, bias, act=None, out_dtype=jnp.bfloat16):
    """x2d: (M, K) bf16; w2d: (K, N) bf16 (BN scale pre-folded); bias: (N,) f32."""
    M, K = x2d.shape
    _, Nc = w2d.shape
    Nout = Nc
    Np = max(_round_up(Nc, 128), 128)                 # lane-dense output columns
    if Np != Nc:
        w2d = jnp.pad(w2d, ((0, 0), (0, Np - Nc)))
        bias = jnp.pad(bias, (0, Np - Nc))
    tn = Np
    if Np > 512:
        tn = 256 if Np % 256 == 0 else 128
    # row tile: target <=512 rows per tile, rounded to minimise padding waste
    tm, n_mt = _pick_row_tile(M, 512)
    # keep the double-buffered working set modest (helps v5e's tighter VMEM)
    while tm > 64 and 2 * (tm * K * 2 + K * tn * 2 + tm * tn * 2) > (24 << 20):
        tm = _round_up(max(tm // 2, 8), 8)
        n_mt = _cdiv(M, tm)
    Mp = n_mt * tm
    if Mp != M:
        x2d = jnp.pad(x2d, ((0, Mp - M), (0, 0)))

    block_bytes = (tm * K * 2 + K * tn * 2 + tn * 4
                   + tm * tn * jnp.dtype(out_dtype).itemsize)
    out = pl.pallas_call(
        functools.partial(_mm_kernel, act),
        out_shape=jax.ShapeDtypeStruct((Mp, Np), out_dtype),
        grid=(n_mt, Np // tn),
        in_specs=[
            pl.BlockSpec((tm, K), lambda i, j: (i, 0)),
            pl.BlockSpec((K, tn), lambda i, j: (0, j)),
            pl.BlockSpec((1, tn), lambda i, j: (0, j)),
        ],
        out_specs=pl.BlockSpec((tm, tn), lambda i, j: (i, j)),
        compiler_params=pltpu.CompilerParams(
            dimension_semantics=("parallel", "parallel"),
            vmem_limit_bytes=_vmem_limit(block_bytes)),
    )(x2d, w2d, bias.reshape(1, Np).astype(jnp.float32))
    return out[:M, :Nout]


def conv1x1_bn_act(x, w, bn, stride=1, act=None, eps=1e-5, out_dtype=jnp.bfloat16):
    """x: NHWC; w: PyTorch (Cout, Cin, 1, 1); bn = (gamma, beta, mean, var)."""
    if stride != 1:
        x = x[:, ::stride, ::stride, :]
    N, H, W, C = x.shape
    Cout = w.shape[0]
    scale, bias = _fold_bn(bn, eps)
    w2d = (w.reshape(Cout, C) * scale[:, None]).T.astype(jnp.bfloat16)  # f32 fold, bf16 cast
    x2d = x.reshape(N * H * W, C).astype(jnp.bfloat16)
    out = fused_matmul_bias_act(x2d, w2d, bias, act=act, out_dtype=out_dtype)
    return out.reshape(N, H, W, Cout)


# ---------------------------------------------------------------------------
# K2: grouped 3x3 conv + BN + (ReLU).
#     Grid = (group-blocks, samples, row-tiles), all parallel.  Each step builds the
#     (Trow, 9*Cgb) operand in VMEM from 9 shifted slices of the stride-phase slab and
#     does ONE matmul against a block-diagonal (9*Cgb, Gb*Dg) weight -> lane-dense,
#     NHWC-channel-ordered output (no post-kernel transpose).
# ---------------------------------------------------------------------------
def _gconv_kernel(Trow, Wq, S, KH, KW, relu, x_ref, w_ref, b_ref, o_ref):
    # x_ref: (1, 1, S, S, Trow+tail, Cgb)   phase-decomposed, halo'ed activation slab
    # w_ref: (1, KH*KW*Cgb, Ndg)            block-diagonal grouped weight (BN folded)
    # b_ref: (1, 1, Ndg)                    folded BN bias
    # o_ref: (1, Trow, Ndg)
    pieces = []
    for ky in range(KH):
        p, r = ky % S, ky // S
        for kx in range(KW):
            q, c = kx % S, kx // S
            start = r * Wq + c
            pieces.append(x_ref[0, 0, p, q, start:start + Trow, :])
    operand = jnp.concatenate(pieces, axis=-1)                 # (Trow, KH*KW*Cgb)
    acc = jnp.dot(operand, w_ref[0], preferred_element_type=jnp.float32)
    acc = acc + b_ref[0]
    if relu:
        acc = jnp.maximum(acc, 0.0)
    o_ref[0] = acc.astype(o_ref.dtype)


def conv3x3_bn_act(x, w, bn, stride=1, groups=1, act="relu", eps=1e-5,
                   out_dtype=jnp.bfloat16):
    """x: NHWC; w: PyTorch grouped (Cout, Cin//groups, 3, 3); padding=1."""
    N, H, W, C = x.shape
    Cout, Cg, KH, KW = w.shape
    G = groups
    assert C == Cg * G and Cout % G == 0
    Dg = Cout // G
    S = stride
    pad = 1
    OH = (H + 2 * pad - KH) // S + 1
    OW = (W + 2 * pad - KW) // S + 1
    r_max = (KH - 1) // S
    c_max = (KW - 1) // S
    Hq, Wq = OH + r_max, OW + c_max
    # wrap-around tap reads must only ever land in throw-away filler rows/cols:
    assert Hq >= OH + r_max and Wq >= OW + c_max
    Hp, Wp = S * Hq, S * Wq
    assert Hp >= H + pad and Wp >= W + pad

    # Groups per grid step: smallest divisor of G giving a lane-dense (>=128) output
    # block and legal (multiple-of-128 or full) channel blocks; fall back to all groups.
    Gb = G
    for d in range(1, G + 1):
        if G % d:
            continue
        if (d * Dg >= 128 and (d * Cg % 128 == 0 or d == G)
                and (d * Dg % 128 == 0 or d == G)):
            Gb = d
            break
    GG = G // Gb
    Cgb, Ndg = Gb * Cg, Gb * Dg
    assert Cgb % 128 == 0 or Cgb == C
    assert Ndg % 128 == 0 or Ndg == Cout

    # padded + stride-phase-decomposed activation, flattened per sample
    xp = jnp.pad(x.astype(jnp.bfloat16),
                 ((0, 0), (pad, Hp - H - pad), (pad, Wp - W - pad), (0, 0)))
    xph = xp.reshape(N, Hq, S, Wq, S, C).transpose(0, 2, 4, 1, 3, 5)   # (N,S,S,Hq,Wq,C)
    R = Hq * Wq
    tail = r_max * Wq + c_max
    Trow, n_rt = _pick_row_tile(R, 512)
    xfl = xph.reshape(N, S, S, R, C)
    xfl = jnp.pad(xfl, ((0, 0), (0, 0), (0, 0), (0, n_rt * Trow + tail - R), (0, 0)))
    # halo-duplicated row tiles (duplicates only `tail` rows per tile)
    xtiles = jnp.stack(
        [xfl[:, :, :, t * Trow:t * Trow + Trow + tail, :] for t in range(n_rt)],
        axis=1)                                                # (N, n_rt, S, S, Trow+tail, C)

    # block-diagonal per-group-block weight with folded BN scale (f32 fold -> bf16)
    scale, bias = _fold_bn(bn, eps)
    wg = (w.reshape(GG, Gb, Dg, Cg, KH * KW)
          * scale.reshape(GG, Gb, Dg)[:, :, :, None, None])
    eyeb = jnp.eye(Gb, dtype=wg.dtype)
    wblk = jnp.einsum('bldct,lm->btlcmd', wg, eyeb)            # (GG, 9, Gb, Cg, Gb, Dg)
    wblk = wblk.reshape(GG, KH * KW * Cgb, Ndg).astype(jnp.bfloat16)
    bblk = bias.reshape(GG, 1, Ndg).astype(jnp.float32)

    kern = functools.partial(_gconv_kernel, Trow, Wq, S, KH, KW, act == "relu")
    block_bytes = (S * S * (Trow + tail) * Cgb * 2 + KH * KW * Cgb * Ndg * 2 + Ndg * 4
                   + Trow * Ndg * jnp.dtype(out_dtype).itemsize
                   + Trow * KH * KW * Cgb * 2)                 # + in-VMEM operand
    out = pl.pallas_call(
        kern,
        out_shape=jax.ShapeDtypeStruct((N, n_rt * Trow, Cout), out_dtype),
        grid=(GG, N, n_rt),
        in_specs=[
            pl.BlockSpec((1, 1, S, S, Trow + tail, Cgb),
                         lambda g, n, t: (n, t, 0, 0, 0, g)),
            pl.BlockSpec((1, KH * KW * Cgb, Ndg), lambda g, n, t: (g, 0, 0)),
            pl.BlockSpec((1, 1, Ndg), lambda g, n, t: (g, 0, 0)),
        ],
        out_specs=pl.BlockSpec((1, Trow, Ndg), lambda g, n, t: (n, t, g)),
        compiler_params=pltpu.CompilerParams(
            dimension_semantics=("parallel", "parallel", "parallel"),
            vmem_limit_bytes=_vmem_limit(block_bytes)),
    )(xtiles, wblk, bblk)
    # drop filler rows/cols of the flattened-slab trick
    out = out[:, :R, :].reshape(N, Hq, Wq, Cout)[:, :OH, :OW, :]
    return out


# ---------------------------------------------------------------------------
# conv3 + fused per-sample channel sums (for the SE squeeze), row-tiled.
# ---------------------------------------------------------------------------
def _mm_pool_kernel(x_ref, w_ref, b_ref, o_ref, s_ref):
    # x_ref: (1, t_hw, K); w_ref: (K, Np); b_ref: (1, Np)
    # o_ref: (1, t_hw, Np) bf16;  s_ref: (1, 1, Np) f32 accumulated pre-bias sums
    prod = jnp.dot(x_ref[0], w_ref[...], preferred_element_type=jnp.float32)
    o_ref[0] = (prod + b_ref[...]).astype(o_ref.dtype)
    part = jnp.sum(prod, axis=0, keepdims=True)

    @pl.when(pl.program_id(1) == 0)
    def _():
        s_ref[0] = part

    @pl.when(pl.program_id(1) > 0)
    def _():
        s_ref[0] = s_ref[0] + part


def conv1x1_bn_pool(x3, w, bn, eps=1e-5, out_dtype=jnp.bfloat16):
    """x3: (N, HW, K) bf16.  Returns y (N, HW, Cout) bf16 and pooled mean (N, Cout) f32."""
    N, HW, K = x3.shape
    Cout = w.shape[0]
    scale, bias = _fold_bn(bn, eps)
    w2d = (w.reshape(Cout, K) * scale[:, None]).T.astype(jnp.bfloat16)
    Np = max(_round_up(Cout, 128), 128)
    if Np != Cout:
        w2d = jnp.pad(w2d, ((0, 0), (0, Np - Cout)))
    biasp = jnp.pad(bias, (0, Np - Cout)).astype(jnp.float32)
    t_hw, n_t = _pick_row_tile(HW, 512)
    HWp = n_t * t_hw
    if HWp != HW:
        x3 = jnp.pad(x3, ((0, 0), (0, HWp - HW), (0, 0)))      # zero rows -> zero sums

    block_bytes = t_hw * K * 2 + K * Np * 2 + Np * 4 + t_hw * Np * 2 + Np * 4
    y, sums = pl.pallas_call(
        _mm_pool_kernel,
        out_shape=(jax.ShapeDtypeStruct((N, HWp, Np), out_dtype),
                   jax.ShapeDtypeStruct((N, 1, Np), jnp.float32)),
        grid=(N, n_t),
        in_specs=[
            pl.BlockSpec((1, t_hw, K), lambda n, t: (n, t, 0)),
            pl.BlockSpec((K, Np), lambda n, t: (0, 0)),
            pl.BlockSpec((1, Np), lambda n, t: (0, 0)),
        ],
        out_specs=(pl.BlockSpec((1, t_hw, Np), lambda n, t: (n, t, 0)),
                   pl.BlockSpec((1, 1, Np), lambda n, t: (n, 0, 0))),
        compiler_params=pltpu.CompilerParams(
            dimension_semantics=("parallel", "arbitrary"),
            vmem_limit_bytes=_vmem_limit(block_bytes)),
    )(x3.astype(jnp.bfloat16), w2d, biasp.reshape(1, Np))
    y = y[:, :HW, :Cout]
    pooled = sums[:, 0, :Cout] / float(HW) + bias[None, :]     # exact: BN bias after mean
    return y, pooled


# ---------------------------------------------------------------------------
# SE excitation (tiny (N,C) matmuls) + K3: gate-apply + residual + ReLU kernel.
# ---------------------------------------------------------------------------
def se_excite(pooled, w1, b1, w2, b2):
    # TODO(synk): tiny (N,C) FC layers left in XLA (negligible vs the conv kernels).
    Cmid, C = w1.shape[0], w1.shape[1]
    h = jnp.maximum(pooled @ w1.reshape(Cmid, C).T + b1[None, :], 0.0)
    return jax.nn.sigmoid(h @ w2.reshape(C, Cmid).T + b2[None, :])


def _gate_kernel(y_ref, id_ref, g_ref, o_ref):
    y = y_ref[0].astype(jnp.float32)
    idn = id_ref[0].astype(jnp.float32)
    o_ref[0] = jnp.maximum(y * g_ref[0] + idn, 0.0).astype(o_ref.dtype)


def se_gate_residual_relu(y3, identity3, gate):
    """y3, identity3: (N, HW, C) bf16; gate: (N, C) f32.  Returns (N, HW, C) f32."""
    N, HW, C = y3.shape
    t_hw, n_t = _pick_row_tile(HW, 1024)
    HWp = n_t * t_hw
    if HWp != HW:
        y3 = jnp.pad(y3, ((0, 0), (0, HWp - HW), (0, 0)))
        identity3 = jnp.pad(identity3, ((0, 0), (0, HWp - HW), (0, 0)))
    block_bytes = 2 * t_hw * C * 2 + C * 4 + t_hw * C * 4
    out = pl.pallas_call(
        _gate_kernel,
        out_shape=jax.ShapeDtypeStruct((N, HWp, C), jnp.float32),
        grid=(N, n_t),
        in_specs=[
            pl.BlockSpec((1, t_hw, C), lambda n, t: (n, t, 0)),
            pl.BlockSpec((1, t_hw, C), lambda n, t: (n, t, 0)),
            pl.BlockSpec((1, 1, C), lambda n, t: (n, 0, 0)),
        ],
        out_specs=pl.BlockSpec((1, t_hw, C), lambda n, t: (n, t, 0)),
        compiler_params=pltpu.CompilerParams(
            dimension_semantics=("parallel", "parallel"),
            vmem_limit_bytes=_vmem_limit(block_bytes)),
    )(y3, identity3, gate.reshape(N, 1, C).astype(jnp.float32))
    return out[:, :HW, :]


# ---------------------------------------------------------------------------
# SENetUnit forward
# ---------------------------------------------------------------------------
def senet_unit_forward(x_nchw, params, cfg):
    stride = cfg["stride"]
    groups = cfg["cardinality"]
    x = jnp.transpose(x_nchw, (0, 2, 3, 1))                 # NHWC

    if cfg["resize_identity"]:
        pid = params["identity"]
        if cfg["identity_conv3x3"]:
            identity = conv3x3_bn_act(x, pid["w"], pid["bn"], stride=stride,
                                      groups=1, act=None)
        else:
            identity = conv1x1_bn_act(x, pid["w"], pid["bn"], stride=stride, act=None)
    else:
        identity = x.astype(jnp.bfloat16)

    pb = params["body"]
    y = conv1x1_bn_act(x, pb["conv1"]["w"], pb["conv1"]["bn"], stride=1, act="relu")
    y = conv3x3_bn_act(y, pb["conv2"]["w"], pb["conv2"]["bn"], stride=stride,
                       groups=groups, act="relu")
    N, OH, OW, Cm = y.shape
    y3, pooled = conv1x1_bn_pool(y.reshape(N, OH * OW, Cm),
                                 pb["conv3"]["w"], pb["conv3"]["bn"])
    Cout = y3.shape[-1]

    pse = params["se"]
    gate = se_excite(pooled, pse["w1"], pse["b1"], pse["w2"], pse["b2"])
    out = se_gate_residual_relu(y3, identity.reshape(N, OH * OW, Cout), gate)
    out = out.reshape(N, OH, OW, Cout)
    return jnp.transpose(out, (0, 3, 1, 2))                  # back to NCHW


# ---------------------------------------------------------------------------
# Parameter construction and pure-JAX reference (for a numeric self-check)
# ---------------------------------------------------------------------------
def init_params(key, cfg):
    in_c, out_c = cfg["in_channels"], cfg["out_channels"]
    card, bw = cfg["cardinality"], cfg["bottleneck_width"]
    mid = out_c // 4
    D = int(math.floor(mid * (bw / 64.0)))
    gw = card * D
    gw2 = gw // 2
    se_mid = max(out_c // 16, 1)

    def conv_w(k, cout, cin_g, kh, kw):
        std = math.sqrt(2.0 / (cin_g * kh * kw))
        return std * jax.random.normal(k, (cout, cin_g, kh, kw), jnp.float32)

    def bn_p(k, c):
        k1, k2, k3, k4 = jax.random.split(k, 4)
        gamma = 1.0 + 0.2 * jax.random.normal(k1, (c,), jnp.float32)
        beta = 0.1 * jax.random.normal(k2, (c,), jnp.float32)
        mean = 0.1 * jax.random.normal(k3, (c,), jnp.float32)
        var = 1.0 + 0.2 * jax.random.uniform(k4, (c,), jnp.float32)
        return (gamma, beta, mean, var)

    ks = jax.random.split(key, 12)
    params = {
        "body": {
            "conv1": {"w": conv_w(ks[0], gw2, in_c, 1, 1), "bn": bn_p(ks[1], gw2)},
            "conv2": {"w": conv_w(ks[2], gw, gw2 // card, 3, 3), "bn": bn_p(ks[3], gw)},
            "conv3": {"w": conv_w(ks[4], out_c, gw, 1, 1), "bn": bn_p(ks[5], out_c)},
        },
        "se": {
            "w1": conv_w(ks[6], se_mid, out_c, 1, 1),
            "b1": 0.1 * jax.random.normal(ks[7], (se_mid,), jnp.float32),
            "w2": conv_w(ks[8], out_c, se_mid, 1, 1),
            "b2": 0.1 * jax.random.normal(ks[9], (out_c,), jnp.float32),
        },
    }
    if cfg["resize_identity"]:
        kh = 3 if cfg["identity_conv3x3"] else 1
        params["identity"] = {"w": conv_w(ks[10], out_c, in_c, kh, kh),
                              "bn": bn_p(ks[11], out_c)}
    return params


def reference_forward(x_nchw, params, cfg):
    eps = 1e-5
    prec = jax.lax.Precision.HIGHEST

    def conv(x, w, stride, padding, groups=1):
        return jax.lax.conv_general_dilated(
            x, w, window_strides=(stride, stride),
            padding=[(padding, padding), (padding, padding)],
            dimension_numbers=("NCHW", "OIHW", "NCHW"),
            feature_group_count=groups, precision=prec)

    def bn(x, p):
        gamma, beta, mean, var = p
        inv = gamma / jnp.sqrt(var + eps)
        return x * inv[None, :, None, None] + (beta - mean * inv)[None, :, None, None]

    x = x_nchw
    stride = cfg["stride"]
    if cfg["resize_identity"]:
        pid = params["identity"]
        pad = 1 if cfg["identity_conv3x3"] else 0
        identity = bn(conv(x, pid["w"], stride, pad), pid["bn"])
    else:
        identity = x
    pb = params["body"]
    y = jax.nn.relu(bn(conv(x, pb["conv1"]["w"], 1, 0), pb["conv1"]["bn"]))
    y = jax.nn.relu(bn(conv(y, pb["conv2"]["w"], stride, 1,
                            groups=cfg["cardinality"]), pb["conv2"]["bn"]))
    y = bn(conv(y, pb["conv3"]["w"], 1, 0), pb["conv3"]["bn"])
    pse = params["se"]
    w = jnp.mean(y, axis=(2, 3), keepdims=True)
    w = conv(w, pse["w1"], 1, 0) + pse["b1"][None, :, None, None]
    w = jax.nn.relu(w)
    w = conv(w, pse["w2"], 1, 0) + pse["b2"][None, :, None, None]
    w = jax.nn.sigmoid(w)
    return jax.nn.relu(y * w + identity)


if __name__ == "__main__":
    cfg = {
        "in_channels": 64,
        "out_channels": 128,
        "stride": 2,
        "cardinality": 4,
        "bottleneck_width": 64,
        "identity_conv3x3": False,
    }
    cfg["resize_identity"] = (cfg["in_channels"] != cfg["out_channels"]
                              or cfg["stride"] != 1)

    key = jax.random.PRNGKey(0)
    pkey, xkey = jax.random.split(key)
    x = jax.random.normal(xkey, (2, cfg["in_channels"], 16, 16), jnp.float32)
    params = init_params(pkey, cfg)

    fwd = jax.jit(lambda inp: senet_unit_forward(inp, params, cfg))
    out = fwd(x)
    jax.block_until_ready(out)

    assert out.shape == (2, cfg["out_channels"], 8, 8), out.shape
    assert bool(jnp.all(jnp.isfinite(out)))

    ref = reference_forward(x, params, cfg)
    scale_ref = float(jnp.max(jnp.abs(ref)))
    err = float(jnp.max(jnp.abs(out - ref)))
    # bf16 matmul operands (f32 accumulation) -> tolerance scales with output magnitude
    assert err < 4e-2 * scale_ref + 2e-2, (err, scale_ref)

    print("KERNEL_OK")
</pallas_src>

<mosaic_0001>
module attributes {stable_mosaic.version = 11 : i64} {
  func.func @_mm_kernel(%arg0: i32, %arg1: i32, %arg2: memref<512x64xbf16, #tpu.memory_space<vmem>>, %arg3: memref<64x128xbf16, #tpu.memory_space<vmem>>, %arg4: memref<1x128xf32, #tpu.memory_space<vmem>>, %arg5: memref<512x128xbf16, #tpu.memory_space<vmem>>) attributes {dimension_semantics = [#tpu.dimension_semantics<parallel>, #tpu.dimension_semantics<parallel>], iteration_bounds = array<i64: 1, 1>, scalar_prefetch = 0 : i64, scratch_operands = 0 : i64, tpu.core_type = #tpu.core_type<tc>, window_params = [{transform_indices = @transform_0, window_bounds = array<i64: 512, 64>}, {transform_indices = @transform_1, window_bounds = array<i64: 64, 128>}, {transform_indices = @transform_2, window_bounds = array<i64: 1, 128>}, {transform_indices = @transform_3, window_bounds = array<i64: 512, 128>}]} {
    %c0 = arith.constant 0 : index
    %c0_0 = arith.constant 0 : index
    %0 = vector.load %arg2[%c0, %c0_0] : memref<512x64xbf16, #tpu.memory_space<vmem>>, vector<512x64xbf16>
    %c0_1 = arith.constant 0 : index
    %c0_2 = arith.constant 0 : index
    %1 = vector.load %arg3[%c0_1, %c0_2] : memref<64x128xbf16, #tpu.memory_space<vmem>>, vector<64x128xbf16>
    %cst = arith.constant dense<0.000000e+00> : vector<512x128xf32>
    %2 = tpu.matmul %0, %1, %cst {dimension_numbers = #tpu.dot_dimension_numbers<[1], [0], [0], [1], [0, 0, 1, 1], [], []>} : vector<512x64xbf16>, vector<64x128xbf16>, vector<512x128xf32> -> vector<512x128xf32>
    %c0_3 = arith.constant 0 : index
    %c0_4 = arith.constant 0 : index
    %3 = vector.load %arg4[%c0_3, %c0_4] : memref<1x128xf32, #tpu.memory_space<vmem>>, vector<1x128xf32>
    %4 = vector.broadcast %3 : vector<1x128xf32> to vector<512x128xf32>
    %5 = arith.addf %2, %4 : vector<512x128xf32>
    %cst_5 = arith.constant 0.000000e+00 : f32
    %6 = vector.broadcast %cst_5 : f32 to vector<512x128xf32>
    %7 = arith.maximumf %5, %6 : vector<512x128xf32>
    %8 = arith.truncf %7 : vector<512x128xf32> to vector<512x128xbf16>
    %c0_6 = arith.constant 0 : index
    %c0_7 = arith.constant 0 : index
    %9 = vector.load %arg5[%c0_6, %c0_7] : memref<512x128xbf16, #tpu.memory_space<vmem>>, vector<512x128xbf16>
    tpu.vector_store %arg5[%c0_6, %c0_7], %8 {strides = array<i32>} : memref<512x128xbf16, #tpu.memory_space<vmem>>, vector<512x128xbf16>,
    return
  }
  func.func @transform_0(%arg0: i32, %arg1: i32) -> (i32, i32) {
    %c0_i32 = arith.constant 0 : i32
    %c0_i32_0 = arith.constant 0 : i32
    return %arg0, %c0_i32 : i32, i32
  }
  func.func @transform_1(%arg0: i32, %arg1: i32) -> (i32, i32) {
    %c0_i32 = arith.constant 0 : i32
    %c0_i32_0 = arith.constant 0 : i32
    return %c0_i32, %arg1 : i32, i32
  }
  func.func @transform_2(%arg0: i32, %arg1: i32) -> (i32, i32) {
    %c0_i32 = arith.constant 0 : i32
    %c0_i32_0 = arith.constant 0 : i32
    return %c0_i32, %arg1 : i32, i32
  }
  func.func @transform_3(%arg0: i32, %arg1: i32) -> (i32, i32) {
    %c0_i32 = arith.constant 0 : i32
    return %arg0, %arg1 : i32, i32
  }
}

module attributes {stable_mosaic.version = 11 : i64} {
  func.func @_gconv_kernel(%arg0: i32, %arg1: i32, %arg2: i32, %arg3: memref<1x1x2x2x98x64xbf16, #tpu.memory_space<vmem>>, %arg4: memref<1x576x128xbf16, #tpu.memory_space<vmem>>, %arg5: memref<1x1x128xf32, #tpu.memory_space<vmem>>, %arg6: memref<1x88x128xbf16, #tpu.memory_space<vmem>>) attributes {dimension_semantics = [#tpu.dimension_semantics<parallel>, #tpu.dimension_semantics<parallel>, #tpu.dimension_semantics<parallel>], iteration_bounds = array<i64: 1, 2, 1>, scalar_prefetch = 0 : i64, scratch_operands = 0 : i64, tpu.core_type = #tpu.core_type<tc>, window_params = [{transform_indices = @transform_0, window_bounds = array<i64: 1, 1, 2, 2, 98, 64>}, {transform_indices = @transform_1, window_bounds = array<i64: 1, 576, 128>}, {transform_indices = @transform_2, window_bounds = array<i64: 1, 1, 128>}, {transform_indices = @transform_3, window_bounds = array<i64: 1, 88, 128>}]} {
    %c0 = arith.constant 0 : index
    %c0_0 = arith.constant 0 : index
    %c0_1 = arith.constant 0 : index
    %c0_2 = arith.constant 0 : index
    %c0_3 = arith.constant 0 : index
    %c0_4 = arith.constant 0 : index
    %0 = vector.load %arg3[%c0, %c0_0, %c0_1, %c0_2, %c0_3, %c0_4] : memref<1x1x2x2x98x64xbf16, #tpu.memory_space<vmem>>, vector<1x1x1x1x88x64xbf16>
    %1 = vector.shape_cast %0 : vector<1x1x1x1x88x64xbf16> to vector<88x64xbf16>
    %c0_5 = arith.constant 0 : index
    %c0_6 = arith.constant 0 : index
    %c0_7 = arith.constant 0 : index
    %c1 = arith.constant 1 : index
    %c0_8 = arith.constant 0 : index
    %c0_9 = arith.constant 0 : index
    %2 = vector.load %arg3[%c0_5, %c0_6, %c0_7, %c1, %c0_8, %c0_9] : memref<1x1x2x2x98x64xbf16, #tpu.memory_space<vmem>>, vector<1x1x1x1x88x64xbf16>
    %3 = vector.shape_cast %2 : vector<1x1x1x1x88x64xbf16> to vector<88x64xbf16>
    %c0_10 = arith.constant 0 : index
    %c0_11 = arith.constant 0 : index
    %c0_12 = arith.constant 0 : index
    %c0_13 = arith.constant 0 : index
    %c1_14 = arith.constant 1 : index
    %c0_15 = arith.constant 0 : index
    %4 = vector.load %arg3[%c0_10, %c0_11, %c0_12, %c0_13, %c1_14, %c0_15] : memref<1x1x2x2x98x64xbf16, #tpu.memory_space<vmem>>, vector<1x1x1x1x88x64xbf16>
    %5 = vector.shape_cast %4 : vector<1x1x1x1x88x64xbf16> to vector<88x64xbf16>
    %c0_16 = arith.constant 0 : index
    %c0_17 = arith.constant 0 : index
    %c1_18 = arith.constant 1 : index
    %c0_19 = arith.constant 0 : index
    %c0_20 = arith.constant 0 : index
    %c0_21 = arith.constant 0 : index
    %6 = vector.load %arg3[%c0_16, %c0_17, %c1_18, %c0_19, %c0_20, %c0_21] : memref<1x1x2x2x98x64xbf16, #tpu.memory_space<vmem>>, vector<1x1x1x1x88x64xbf16>
    %7 = vector.shape_cast %6 : vector<1x1x1x1x88x64xbf16> to vector<88x64xbf16>
    %c0_22 = arith.constant 0 : index
    %c0_23 = arith.constant 0 : index
    %c1_24 = arith.constant 1 : index
    %c1_25 = arith.constant 1 : index
    %c0_26 = arith.constant 0 : index
    %c0_27 = arith.constant 0 : index
    %8 = vector.load %arg3[%c0_22, %c0_23, %c1_24, %c1_25, %c0_26, %c0_27] : memref<1x1x2x2x98x64xbf16, #tpu.memory_space<vmem>>, vector<1x1x1x1x88x64xbf16>
    %9 = vector.shape_cast %8 : vector<1x1x1x1x88x64xbf16> to vector<88x64xbf16>
    %c0_28 = arith.constant 0 : index
    %c0_29 = arith.constant 0 : index
    %c1_30 = arith.constant 1 : index
    %c0_31 = arith.constant 0 : index
    %c1_32 = arith.constant 1 : index
    %c0_33 = arith.constant 0 : index
    %10 = vector.load %arg3[%c0_28, %c0_29, %c1_30, %c0_31, %c1_32, %c0_33] : memref<1x1x2x2x98x64xbf16, #tpu.memory_space<vmem>>, vector<1x1x1x1x88x64xbf16>
    %11 = vector.shape_cast %10 : vector<1x1x1x1x88x64xbf16> to vector<88x64xbf16>
    %c0_34 = arith.constant 0 : index
    %c0_35 = arith.constant 0 : index
    %c0_36 = arith.constant 0 : index
    %c0_37 = arith.constant 0 : index
    %c9 = arith.constant 9 : index
    %c0_38 = arith.constant 0 : index
    %12 = vector.load %arg3[%c0_34, %c0_35, %c0_36, %c0_37, %c9, %c0_38] : memref<1x1x2x2x98x64xbf16, #tpu.memory_space<vmem>>, vector<1x1x1x1x88x64xbf16>
    %13 = vector.shape_cast %12 : vector<1x1x1x1x88x64xbf16> to vector<88x64xbf16>
    %c0_39 = arith.constant 0 : index
    %c0_40 = arith.constant 0 : index
    %c0_41 = arith.constant 0 : index
    %c1_42 = arith.constant 1 : index
    %c9_43 = arith.constant 9 : index
    %c0_44 = arith.constant 0 : index
    %14 = vector.load %arg3[%c0_39, %c0_40, %c0_41, %c1_42, %c9_43, %c0_44] : memref<1x1x2x2x98x64xbf16, #tpu.memory_space<vmem>>, vector<1x1x1x1x88x64xbf16>
    %15 = vector.shape_cast %14 : vector<1x1x1x1x88x64xbf16> to vector<88x64xbf16>
    %c0_45 = arith.constant 0 : index
    %c0_46 = arith.constant 0 : index
    %c0_47 = arith.constant 0 : index
    %c0_48 = arith.constant 0 : index
    %c10 = arith.constant 10 : index
    %c0_49 = arith.constant 0 : index
    %16 = vector.load %arg3[%c0_45, %c0_46, %c0_47, %c0_48, %c10, %c0_49] : memref<1x1x2x2x98x64xbf16, #tpu.memory_space<vmem>>, vector<1x1x1x1x88x64xbf16>
    %17 = vector.shape_cast %16 : vector<1x1x1x1x88x64xbf16> to vector<88x64xbf16>
    %18 = tpu.concatenate %1, %3, %5, %7, %9, %11, %13, %15, %17 in 1 : vector<88x64xbf16>, vector<88x64xbf16>, vector<88x64xbf16>, vector<88x64xbf16>, vector<88x64xbf16>, vector<88x64xbf16>, vector<88x64xbf16>, vector<88x64xbf16>, vector<88x64xbf16> -> vector<88x576xbf16>
    %c0_50 = arith.constant 0 : index
    %c0_51 = arith.constant 0 : index
    %c0_52 = arith.constant 0 : index
    %19 = vector.load %arg4[%c0_50, %c0_51, %c0_52] : memref<1x576x128xbf16, #tpu.memory_space<vmem>>, vector<1x576x128xbf16>
    %20 = vector.shape_cast %19 : vector<1x576x128xbf16> to vector<576x128xbf16>
    %cst = arith.constant dense<0.000000e+00> : vector<88x128xf32>
    %21 = tpu.matmul %18, %20, %cst {dimension_numbers = #tpu.dot_dimension_numbers<[1], [0], [0], [1], [0, 0, 1, 1], [], []>} : vector<88x576xbf16>, vector<576x128xbf16>, vector<88x128xf32> -> vector<88x128xf32>
    %c0_53 = arith.constant 0 : index
    %c0_54 = arith.constant 0 : index
    %c0_55 = arith.constant 0 : index
    %22 = vector.load %arg5[%c0_53, %c0_54, %c0_55] : memref<1x1x128xf32, #tpu.memory_space<vmem>>, vector<1x1x128xf32>
    %23 = vector.shape_cast %22 : vector<1x1x128xf32> to vector<1x128xf32>
    %24 = vector.broadcast %23 : vector<1x128xf32> to vector<88x128xf32>
    %25 = arith.addf %21, %24 : vector<88x128xf32>
    %cst_56 = arith.constant 0.000000e+00 : f32
    %26 = vector.broadcast %cst_56 : f32 to vector<88x128xf32>
    %27 = arith.maximumf %25, %26 : vector<88x128xf32>
    %28 = arith.truncf %27 : vector<88x128xf32> to vector<88x128xbf16>
    %c0_57 = arith.constant 0 : index
    %c0_58 = arith.constant 0 : index
    %c0_59 = arith.constant 0 : index
    %29 = vector.load %arg6[%c0_57, %c0_58, %c0_59] : memref<1x88x128xbf16, #tpu.memory_space<vmem>>, vector<1x88x128xbf16>
    %30 = vector.shape_cast %29 : vector<1x88x128xbf16> to vector<88x128xbf16>
    %31 = vector.shape_cast %28 : vector<88x128xbf16> to vector<1x88x128xbf16>
    tpu.vector_store %arg6[%c0_57, %c0_58, %c0_59], %31 {strides = array<i32>} : memref<1x88x128xbf16, #tpu.memory_space<vmem>>, vector<1x88x128xbf16>,
    return
  }
  func.func @transform_0(%arg0: i32, %arg1: i32, %arg2: i32) -> (i32, i32, i32, i32, i32, i32) {
    %c0_i32 = arith.constant 0 : i32
    %c0_i32_0 = arith.constant 0 : i32
    %c0_i32_1 = arith.constant 0 : i32
    %c0_i32_2 = arith.constant 0 : i32
    return %arg1, %arg2, %c0_i32, %c0_i32_0, %c0_i32_1, %arg0 : i32, i32, i32, i32, i32, i32
  }
  func.func @transform_1(%arg0: i32, %arg1: i32, %arg2: i32) -> (i32, i32, i32) {
    %c0_i32 = arith.constant 0 : i32
    %c0_i32_0 = arith.constant 0 : i32
    %c0_i32_1 = arith.constant 0 : i32
    return %arg0, %c0_i32, %c0_i32_0 : i32, i32, i32
  }
  func.func @transform_2(%arg0: i32, %arg1: i32, %arg2: i32) -> (i32, i32, i32) {
    %c0_i32 = arith.constant 0 : i32
    %c0_i32_0 = arith.constant 0 : i32
    %c0_i32_1 = arith.constant 0 : i32
    return %arg0, %c0_i32, %c0_i32_0 : i32, i32, i32
  }
  func.func @transform_3(%arg0: i32, %arg1: i32, %arg2: i32) -> (i32, i32, i32) {
    %c0_i32 = arith.constant 0 : i32
    return %arg1, %arg2, %arg0 : i32, i32, i32
  }
}

module attributes {stable_mosaic.version = 11 : i64} {
  func.func @_mm_pool_kernel(%arg0: i32, %arg1: i32, %arg2: memref<1x64x128xbf16, #tpu.memory_space<vmem>>, %arg3: memref<128x128xbf16, #tpu.memory_space<vmem>>, %arg4: memref<1x128xf32, #tpu.memory_space<vmem>>, %arg5: memref<1x64x128xbf16, #tpu.memory_space<vmem>>, %arg6: memref<1x1x128xf32, #tpu.memory_space<vmem>>) attributes {dimension_semantics = [#tpu.dimension_semantics<parallel>, #tpu.dimension_semantics<arbitrary>], iteration_bounds = array<i64: 2, 1>, scalar_prefetch = 0 : i64, scratch_operands = 0 : i64, tpu.core_type = #tpu.core_type<tc>, window_params = [{transform_indices = @transform_0, window_bounds = array<i64: 1, 64, 128>}, {pipeline_mode = #tpu.pipeline_mode<synchronous>, transform_indices = @transform_1, window_bounds = array<i64: 128, 128>}, {pipeline_mode = #tpu.pipeline_mode<synchronous>, transform_indices = @transform_2, window_bounds = array<i64: 1, 128>}, {transform_indices = @transform_3, window_bounds = array<i64: 1, 64, 128>}, {transform_indices = @transform_4, window_bounds = array<i64: 1, 1, 128>}]} {
    %c0 = arith.constant 0 : index
    %c0_0 = arith.constant 0 : index
    %c0_1 = arith.constant 0 : index
    %0 = vector.load %arg2[%c0, %c0_0, %c0_1] : memref<1x64x128xbf16, #tpu.memory_space<vmem>>, vector<1x64x128xbf16>
    %1 = vector.shape_cast %0 : vector<1x64x128xbf16> to vector<64x128xbf16>
    %c0_2 = arith.constant 0 : index
    %c0_3 = arith.constant 0 : index
    %2 = vector.load %arg3[%c0_2, %c0_3] : memref<128x128xbf16, #tpu.memory_space<vmem>>, vector<128x128xbf16>
    %cst = arith.constant dense<0.000000e+00> : vector<64x128xf32>
    %3 = tpu.matmul %1, %2, %cst {dimension_numbers = #tpu.dot_dimension_numbers<[1], [0], [0], [1], [0, 0, 1, 1], [], []>} : vector<64x128xbf16>, vector<128x128xbf16>, vector<64x128xf32> -> vector<64x128xf32>
    %c0_4 = arith.constant 0 : index
    %c0_5 = arith.constant 0 : index
    %4 = vector.load %arg4[%c0_4, %c0_5] : memref<1x128xf32, #tpu.memory_space<vmem>>, vector<1x128xf32>
    %5 = vector.broadcast %4 : vector<1x128xf32> to vector<64x128xf32>
    %6 = arith.addf %3, %5 : vector<64x128xf32>
    %7 = arith.truncf %6 : vector<64x128xf32> to vector<64x128xbf16>
    %c0_6 = arith.constant 0 : index
    %c0_7 = arith.constant 0 : index
    %c0_8 = arith.constant 0 : index
    %8 = vector.load %arg5[%c0_6, %c0_7, %c0_8] : memref<1x64x128xbf16, #tpu.memory_space<vmem>>, vector<1x64x128xbf16>
    %9 = vector.shape_cast %8 : vector<1x64x128xbf16> to vector<64x128xbf16>
    %10 = vector.shape_cast %7 : vector<64x128xbf16> to vector<1x64x128xbf16>
    tpu.vector_store %arg5[%c0_6, %c0_7, %c0_8], %10 {strides = array<i32>} : memref<1x64x128xbf16, #tpu.memory_space<vmem>>, vector<1x64x128xbf16>,
    %cst_9 = arith.constant dense<0.000000e+00> : vector<128xf32>
    %11 = vector.multi_reduction <add>, %3, %cst_9 [0] : vector<64x128xf32> to vector<128xf32>
    %12 = vector.shape_cast %11 : vector<128xf32> to vector<1x128xf32>
    %c0_i32 = arith.constant 0 : i32
    %13 = arith.cmpi eq, %arg1, %c0_i32 : i32
    %14 = arith.extui %13 : i1 to i32
    %c0_i32_10 = arith.constant 0 : i32
    %15 = arith.cmpi ne, %14, %c0_i32_10 : i32
    scf.if %15 {
      %c0_13 = arith.constant 0 : index
      %c0_14 = arith.constant 0 : index
      %c0_15 = arith.constant 0 : index
      %19 = vector.load %arg6[%c0_13, %c0_14, %c0_15] : memref<1x1x128xf32, #tpu.memory_space<vmem>>, vector<1x1x128xf32>
      %20 = vector.shape_cast %19 : vector<1x1x128xf32> to vector<1x128xf32>
      %21 = vector.shape_cast %12 : vector<1x128xf32> to vector<1x1x128xf32>
      tpu.vector_store %arg6[%c0_13, %c0_14, %c0_15], %21 {strides = array<i32>} : memref<1x1x128xf32, #tpu.memory_space<vmem>>, vector<1x1x128xf32>,
    } else {
    }
    %c0_i32_11 = arith.constant 0 : i32
    %16 = arith.cmpi sgt, %arg1, %c0_i32_11 : i32
    %17 = arith.extui %16 : i1 to i32
    %c0_i32_12 = arith.constant 0 : i32
    %18 = arith.cmpi ne, %17, %c0_i32_12 : i32
    scf.if %18 {
      %c0_13 = arith.constant 0 : index
      %c0_14 = arith.constant 0 : index
      %c0_15 = arith.constant 0 : index
      %19 = vector.load %arg6[%c0_13, %c0_14, %c0_15] : memref<1x1x128xf32, #tpu.memory_space<vmem>>, vector<1x1x128xf32>
      %20 = vector.shape_cast %19 : vector<1x1x128xf32> to vector<1x128xf32>
      %21 = arith.addf %20, %12 : vector<1x128xf32>
      %c0_16 = arith.constant 0 : index
      %c0_17 = arith.constant 0 : index
      %c0_18 = arith.constant 0 : index
      %22 = vector.load %arg6[%c0_16, %c0_17, %c0_18] : memref<1x1x128xf32, #tpu.memory_space<vmem>>, vector<1x1x128xf32>
      %23 = vector.shape_cast %22 : vector<1x1x128xf32> to vector<1x128xf32>
      %24 = vector.shape_cast %21 : vector<1x128xf32> to vector<1x1x128xf32>
      tpu.vector_store %arg6[%c0_16, %c0_17, %c0_18], %24 {strides = array<i32>} : memref<1x1x128xf32, #tpu.memory_space<vmem>>, vector<1x1x128xf32>,
    } else {
    }
    return
  }
  func.func @transform_0(%arg0: i32, %arg1: i32) -> (i32, i32, i32) {
    %c0_i32 = arith.constant 0 : i32
    %c0_i32_0 = arith.constant 0 : i32
    return %arg0, %arg1, %c0_i32 : i32, i32, i32
  }
  func.func @transform_1(%arg0: i32, %arg1: i32) -> (i32, i32) {
    %c0_i32 = arith.constant 0 : i32
    %c0_i32_0 = arith.constant 0 : i32
    %c0_i32_1 = arith.constant 0 : i32
    return %c0_i32, %c0_i32_0 : i32, i32
  }
  func.func @transform_2(%arg0: i32, %arg1: i32) -> (i32, i32) {
    %c0_i32 = arith.constant 0 : i32
    %c0_i32_0 = arith.constant 0 : i32
    %c0_i32_1 = arith.constant 0 : i32
    return %c0_i32, %c0_i32_0 : i32, i32
  }
  func.func @transform_3(%arg0: i32, %arg1: i32) -> (i32, i32, i32) {
    %c0_i32 = arith.constant 0 : i32
    %c0_i32_0 = arith.constant 0 : i32
    return %arg0, %arg1, %c0_i32 : i32, i32, i32
  }
  func.func @transform_4(%arg0: i32, %arg1: i32) -> (i32, i32, i32) {
    %c0_i32 = arith.constant 0 : i32
    %c0_i32_0 = arith.constant 0 : i32
    %c0_i32_1 = arith.constant 0 : i32
    return %arg0, %c0_i32, %c0_i32_0 : i32, i32, i32
  }
}

module attributes {stable_mosaic.version = 11 : i64} {
  func.func @_mm_kernel(%arg0: i32, %arg1: i32, %arg2: memref<128x64xbf16, #tpu.memory_space<vmem>>, %arg3: memref<64x128xbf16, #tpu.memory_space<vmem>>, %arg4: memref<1x128xf32, #tpu.memory_space<vmem>>, %arg5: memref<128x128xbf16, #tpu.memory_space<vmem>>) attributes {dimension_semantics = [#tpu.dimension_semantics<parallel>, #tpu.dimension_semantics<parallel>], iteration_bounds = array<i64: 1, 1>, scalar_prefetch = 0 : i64, scratch_operands = 0 : i64, tpu.core_type = #tpu.core_type<tc>, window_params = [{transform_indices = @transform_0, window_bounds = array<i64: 128, 64>}, {transform_indices = @transform_1, window_bounds = array<i64: 64, 128>}, {transform_indices = @transform_2, window_bounds = array<i64: 1, 128>}, {transform_indices = @transform_3, window_bounds = array<i64: 128, 128>}]} {
    %c0 = arith.constant 0 : index
    %c0_0 = arith.constant 0 : index
    %0 = vector.load %arg2[%c0, %c0_0] : memref<128x64xbf16, #tpu.memory_space<vmem>>, vector<128x64xbf16>
    %c0_1 = arith.constant 0 : index
    %c0_2 = arith.constant 0 : index
    %1 = vector.load %arg3[%c0_1, %c0_2] : memref<64x128xbf16, #tpu.memory_space<vmem>>, vector<64x128xbf16>
    %cst = arith.constant dense<0.000000e+00> : vector<128x128xf32>
    %2 = tpu.matmul %0, %1, %cst {dimension_numbers = #tpu.dot_dimension_numbers<[1], [0], [0], [1], [0, 0, 1, 1], [], []>} : vector<128x64xbf16>, vector<64x128xbf16>, vector<128x128xf32> -> vector<128x128xf32>
    %c0_3 = arith.constant 0 : index
    %c0_4 = arith.constant 0 : index
    %3 = vector.load %arg4[%c0_3, %c0_4] : memref<1x128xf32, #tpu.memory_space<vmem>>, vector<1x128xf32>
    %4 = vector.broadcast %3 : vector<1x128xf32> to vector<128x128xf32>
    %5 = arith.addf %2, %4 : vector<128x128xf32>
    %6 = arith.truncf %5 : vector<128x128xf32> to vector<128x128xbf16>
    %c0_5 = arith.constant 0 : index
    %c0_6 = arith.constant 0 : index
    %7 = vector.load %arg5[%c0_5, %c0_6] : memref<128x128xbf16, #tpu.memory_space<vmem>>, vector<128x128xbf16>
    tpu.vector_store %arg5[%c0_5, %c0_6], %6 {strides = array<i32>} : memref<128x128xbf16, #tpu.memory_space<vmem>>, vector<128x128xbf16>,
    return
  }
  func.func @transform_0(%arg0: i32, %arg1: i32) -> (i32, i32) {
    %c0_i32 = arith.constant 0 : i32
    %c0_i32_0 = arith.constant 0 : i32
    return %arg0, %c0_i32 : i32, i32
  }
  func.func @transform_1(%arg0: i32, %arg1: i32) -> (i32, i32) {
    %c0_i32 = arith.constant 0 : i32
    %c0_i32_0 = arith.constant 0 : i32
    return %c0_i32, %arg1 : i32, i32
  }
  func.func @transform_2(%arg0: i32, %arg1: i32) -> (i32, i32) {
    %c0_i32 = arith.constant 0 : i32
    %c0_i32_0 = arith.constant 0 : i32
    return %c0_i32, %arg1 : i32, i32
  }
  func.func @transform_3(%arg0: i32, %arg1: i32) -> (i32, i32) {
    %c0_i32 = arith.constant 0 : i32
    return %arg0, %arg1 : i32, i32
  }
}

module attributes {stable_mosaic.version = 11 : i64} {
  func.func @_gate_kernel(%arg0: i32, %arg1: i32, %arg2: memref<1x64x128xbf16, #tpu.memory_space<vmem>>, %arg3: memref<1x64x128xbf16, #tpu.memory_space<vmem>>, %arg4: memref<1x1x128xf32, #tpu.memory_space<vmem>>, %arg5: memref<1x64x128xf32, #tpu.memory_space<vmem>>) attributes {dimension_semantics = [#tpu.dimension_semantics<parallel>, #tpu.dimension_semantics<parallel>], iteration_bounds = array<i64: 2, 1>, scalar_prefetch = 0 : i64, scratch_operands = 0 : i64, tpu.core_type = #tpu.core_type<tc>, window_params = [{transform_indices = @transform_0, window_bounds = array<i64: 1, 64, 128>}, {transform_indices = @transform_1, window_bounds = array<i64: 1, 64, 128>}, {transform_indices = @transform_2, window_bounds = array<i64: 1, 1, 128>}, {transform_indices = @transform_3, window_bounds = array<i64: 1, 64, 128>}]} {
    %c0 = arith.constant 0 : index
    %c0_0 = arith.constant 0 : index
    %c0_1 = arith.constant 0 : index
    %0 = vector.load %arg2[%c0, %c0_0, %c0_1] : memref<1x64x128xbf16, #tpu.memory_space<vmem>>, vector<1x64x128xbf16>
    %1 = vector.shape_cast %0 : vector<1x64x128xbf16> to vector<64x128xbf16>
    %2 = arith.extf %1 : vector<64x128xbf16> to vector<64x128xf32>
    %c0_2 = arith.constant 0 : index
    %c0_3 = arith.constant 0 : index
    %c0_4 = arith.constant 0 : index
    %3 = vector.load %arg3[%c0_2, %c0_3, %c0_4] : memref<1x64x128xbf16, #tpu.memory_space<vmem>>, vector<1x64x128xbf16>
    %4 = vector.shape_cast %3 : vector<1x64x128xbf16> to vector<64x128xbf16>
    %5 = arith.extf %4 : vector<64x128xbf16> to vector<64x128xf32>
    %c0_5 = arith.constant 0 : index
    %c0_6 = arith.constant 0 : index
    %c0_7 = arith.constant 0 : index
    %6 = vector.load %arg4[%c0_5, %c0_6, %c0_7] : memref<1x1x128xf32, #tpu.memory_space<vmem>>, vector<1x1x128xf32>
    %7 = vector.shape_cast %6 : vector<1x1x128xf32> to vector<1x128xf32>
    %8 = vector.broadcast %7 : vector<1x128xf32> to vector<64x128xf32>
    %9 = arith.mulf %2, %8 : vector<64x128xf32>
    %10 = arith.addf %9, %5 : vector<64x128xf32>
    %cst = arith.constant 0.000000e+00 : f32
    %11 = vector.broadcast %cst : f32 to vector<64x128xf32>
    %12 = arith.maximumf %10, %11 : vector<64x128xf32>
    %c0_8 = arith.constant 0 : index
    %c0_9 = arith.constant 0 : index
    %c0_10 = arith.constant 0 : index
    %13 = vector.load %arg5[%c0_8, %c0_9, %c0_10] : memref<1x64x128xf32, #tpu.memory_space<vmem>>, vector<1x64x128xf32>
    %14 = vector.shape_cast %13 : vector<1x64x128xf32> to vector<64x128xf32>
    %15 = vector.shape_cast %12 : vector<64x128xf32> to vector<1x64x128xf32>
    tpu.vector_store %arg5[%c0_8, %c0_9, %c0_10], %15 {strides = array<i32>} : memref<1x64x128xf32, #tpu.memory_space<vmem>>, vector<1x64x128xf32>,
    return
  }
  func.func @transform_0(%arg0: i32, %arg1: i32) -> (i32, i32, i32) {
    %c0_i32 = arith.constant 0 : i32
    %c0_i32_0 = arith.constant 0 : i32
    return %arg0, %arg1, %c0_i32 : i32, i32, i32
  }
  func.func @transform_1(%arg0: i32, %arg1: i32) -> (i32, i32, i32) {
    %c0_i32 = arith.constant 0 : i32
    %c0_i32_0 = arith.constant 0 : i32
    return %arg0, %arg1, %c0_i32 : i32, i32, i32
  }
  func.func @transform_2(%arg0: i32, %arg1: i32) -> (i32, i32, i32) {
    %c0_i32 = arith.constant 0 : i32
    %c0_i32_0 = arith.constant 0 : i32
    %c0_i32_1 = arith.constant 0 : i32
    return %arg0, %c0_i32, %c0_i32_0 : i32, i32, i32
  }
  func.func @transform_3(%arg0: i32, %arg1: i32) -> (i32, i32, i32) {
    %c0_i32 = arith.constant 0 : i32
    %c0_i32_0 = arith.constant 0 : i32
    return %arg0, %arg1, %c0_i32 : i32, i32, i32
  }
}

</mosaic_0001>

<llo_original>
// kernel: _lambda_.6
$region0: #{_lambda_.6}
  #allocation0 [shape = 'u32[]', space=smem, size = 0x4, offset = 0x4, fixed_abs, tag = 'smem constant byte address 0x4 - core index']
  #allocation1 [shape = 'u32[72,128]{1,0:T(1,128)}', space=vmem, size = 0x9000, scoped, tag = 'internal scratch']
  %s0 = inlined_call_operand.vmem [shape: bf16[512,64], index: 0, kind: input, shape index: {}]
  %s1 = inlined_call_operand.hbm [shape: bf16[64,128], index: 1, kind: input, shape index: {}]
  %s2 = inlined_call_operand.hbm [shape: f32[1,128], index: 2, kind: input, shape index: {}]
  %s3 = inlined_call_operand.vmem [shape: bf16[512,128], index: 3, kind: output, shape index: {}]
  %s4 = sld [smem:[#allocation0]]
  $region30: #{_lambda_.6} parent=0
    _
  %s6 = ssub.s32 1, %s4
  %s7 = scalar_select 0, %s6, %s4
  $region1: #{_lambda_.6} parent=0
    #allocation2 [shape = 'u8[16384]{0}', space=vmem, size = 0x4000, scoped, tag = 'input window, operand 1, single buffered']
    #allocation3 [shape = 's32[1]{0}', space=sflag, size = 0x4, scoped, tag = 'scoped memory for _lambda_.6']
    #allocation4 [shape = 'u8[512]{0}', space=vmem, size = 0x400, scoped, tag = 'input window, operand 2, single buffered']
    #allocation5 [shape = 's32[1]{0}', space=sflag, size = 0x4, scoped, tag = 'scoped memory for _lambda_.6']
    %8 = vsyncpa [#allocation3], 0
    %9 = vsyncpa [#allocation5], 0
    // Predicated region
    $region2: #{_lambda_.6} parent=1 // pred_check
      _
    $region3: #{_lambda_.6} parent=1 // pred_check_branch
      %11 = sbr.rel (0) target = $region5
    $region4: #{_lambda_.6} parent=1 // pred_region
      _
    $region5: #{_lambda_.6} parent=1 // pred_fallthru
      _
    // Predicated region
    $region6: #{_lambda_.6} parent=1 // pred_check
      _
    $region7: #{_lambda_.6} parent=1 // pred_check_branch
      %13 = sbr.rel (0) target = $region9
    $region8: #{_lambda_.6} parent=1 // pred_region
      %15 = vsyncadd [#allocation3], 0
      %s16 = sshll.u32 %s1, 4
      %s17 = int_to_ptr.hbm [resolvable:$true] %s16
      %s18 = sshll.u32 [#allocation2], 4
      %s19 = int_to_ptr.vmem [resolvable:$true] %s18
      %24 = dma.hbm_to_vmem [thread:$0]  %s17, 512, %s19, [#allocation3], 64, 64, 4
    $region9: #{_lambda_.6} parent=1 // pred_fallthru
      _
    // Predicated region
    $region10: #{_lambda_.6} parent=1 // pred_check
      _
    $region11: #{_lambda_.6} parent=1 // pred_check_branch
      %26 = sbr.rel (0) target = $region13
    $region12: #{_lambda_.6} parent=1 // pred_region
      %28 = vsyncadd [#allocation5], 0
      %s30 = sshll.u32 %s2, 4
      %s31 = int_to_ptr.hbm [resolvable:$true] %s30
      %s32 = sshll.u32 [#allocation4], 4
      %s33 = int_to_ptr.vmem [resolvable:$true] %s32
      %35 = dma.hbm_to_vmem [thread:$0]  %s31, 16, %s33, [#allocation5]
    $region13: #{_lambda_.6} parent=1 // pred_fallthru
      _
    // Predicated region
    $region14: #{_lambda_.6} parent=1 // pred_check
      _
    $region15: #{_lambda_.6} parent=1 // pred_check_branch
      %37 = sbr.rel (0) target = $region17
    $region16: #{_lambda_.6} parent=1 // pred_region
      %39 = dma.done [#allocation3], 512
    $region17: #{_lambda_.6} parent=1 // pred_fallthru
      _
    // Predicated region
    $region18: #{_lambda_.6} parent=1 // pred_check
      _
    $region19: #{_lambda_.6} parent=1 // pred_check_branch
      %41 = sbr.rel (0) target = $region21
    $region20: #{_lambda_.6} parent=1 // pred_region
      %43 = dma.done [#allocation5], 16
    $region21: #{_lambda_.6} parent=1 // pred_fallthru
      _
    %v45 = vld [vmem:[%s0] sm:$0xf]
    %v46 = vld [vmem:[%s0 + $0x4] sm:$0xf]
    %v47 = vld [vmem:[%s0 + $0x8] sm:$0xf]
    %v48 = vld [vmem:[%s0 + $0xc] sm:$0xf]
    %v49 = vld [vmem:[%s0 + $0x10] sm:$0xf]
    %v50 = vld [vmem:[%s0 + $0x14] sm:$0xf]
    %v51 = vld [vmem:[%s0 + $0x18] sm:$0xf]
    %v52 = vld [vmem:[%s0 + $0x1c] sm:$0xf]
    %v53 = vld [vmem:[%s0 + $0x20] sm:$0xf]
    %v54 = vld [vmem:[%s0 + $0x24] sm:$0xf]
    %v55 = vld [vmem:[%s0 + $0x28] sm:$0xf]
    %v56 = vld [vmem:[%s0 + $0x2c] sm:$0xf]
    %v57 = vld [vmem:[%s0 + $0x30] sm:$0xf]
    %v58 = vld [vmem:[%s0 + $0x34] sm:$0xf]
    %v59 = vld [vmem:[%s0 + $0x38] sm:$0xf]
    %v60 = vld [vmem:[%s0 + $0x3c] sm:$0xf]
    %v61 = vld [vmem:[%s0 + $0x40] sm:$0xf]
    %v62 = vld [vmem:[%s0 + $0x44] sm:$0xf]
    %v63 = vld [vmem:[%s0 + $0x48] sm:$0xf]
    %v64 = vld [vmem:[%s0 + $0x4c] sm:$0xf]
    %v65 = vld [vmem:[%s0 + $0x50] sm:$0xf]
    %v66 = vld [vmem:[%s0 + $0x54] sm:$0xf]
    %v67 = vld [vmem:[%s0 + $0x58] sm:$0xf]
    %v68 = vld [vmem:[%s0 + $0x5c] sm:$0xf]
    %v69 = vld [vmem:[%s0 + $0x60] sm:$0xf]
    %v70 = vld [vmem:[%s0 + $0x64] sm:$0xf]
    %v71 = vld [vmem:[%s0 + $0x68] sm:$0xf]
    %v72 = vld [vmem:[%s0 + $0x6c] sm:$0xf]
    %v73 = vld [vmem:[%s0 + $0x70] sm:$0xf]
    %v74 = vld [vmem:[%s0 + $0x74] sm:$0xf]
    %v75 = vld [vmem:[%s0 + $0x78] sm:$0xf]
    %v76 = vld [vmem:[%s0 + $0x7c] sm:$0xf]
    %v77 = vld [vmem:[%s0 + $0x80] sm:$0xf]
    %v78 = vld [vmem:[%s0 + $0x84] sm:$0xf]
    %v79 = vld [vmem:[%s0 + $0x88] sm:$0xf]
    %v80 = vld [vmem:[%s0 + $0x8c] sm:$0xf]
    %v81 = vld [vmem:[%s0 + $0x90] sm:$0xf]
    %v82 = vld [vmem:[%s0 + $0x94] sm:$0xf]
    %v83 = vld [vmem:[%s0 + $0x98] sm:$0xf]
    %v84 = vld [vmem:[%s0 + $0x9c] sm:$0xf]
    %v85 = vld [vmem:[%s0 + $0xa0] sm:$0xf]
    %v86 = vld [vmem:[%s0 + $0xa4] sm:$0xf]
    %v87 = vld [vmem:[%s0 + $0xa8] sm:$0xf]
    %v88 = vld [vmem:[%s0 + $0xac] sm:$0xf]
    %v89 = vld [vmem:[%s0 + $0xb0] sm:$0xf]
    %v90 = vld [vmem:[%s0 + $0xb4] sm:$0xf]
    %v91 = vld [vmem:[%s0 + $0xb8] sm:$0xf]
    %v92 = vld [vmem:[%s0 + $0xbc] sm:$0xf]
    %v93 = vld [vmem:[%s0 + $0xc0] sm:$0xf]
    %v94 = vld [vmem:[%s0 + $0xc4] sm:$0xf]
    %v95 = vld [vmem:[%s0 + $0xc8] sm:$0xf]
    %v96 = vld [vmem:[%s0 + $0xcc] sm:$0xf]
    %v97 = vld [vmem:[%s0 + $0xd0] sm:$0xf]
    %v98 = vld [vmem:[%s0 + $0xd4] sm:$0xf]
    %v99 = vld [vmem:[%s0 + $0xd8] sm:$0xf]
    %v100 = vld [vmem:[%s0 + $0xdc] sm:$0xf]
    %v101 = vld [vmem:[%s0 + $0xe0] sm:$0xf]
    %v102 = vld [vmem:[%s0 + $0xe4] sm:$0xf]
    %v103 = vld [vmem:[%s0 + $0xe8] sm:$0xf]
    %v104 = vld [vmem:[%s0 + $0xec] sm:$0xf]
    %v105 = vld [vmem:[%s0 + $0xf0] sm:$0xf]
    %v106 = vld [vmem:[%s0 + $0xf4] sm:$0xf]
    %v107 = vld [vmem:[%s0 + $0xf8] sm:$0xf]
    %v108 = vld [vmem:[%s0 + $0xfc] sm:$0xf]
    %v109 = vld [vmem:[#allocation2] sm:$0xf]
    %v110 = vld [vmem:[#allocation2 + $0x4] sm:$0xf]
    %v111 = vld [vmem:[#allocation2 + $0x8] sm:$0xf]
    %v112 = vld [vmem:[#allocation2 + $0xc] sm:$0xf]
    %v113 = vld [vmem:[#allocation2 + $0x10] sm:$0xf]
    %v114 = vld [vmem:[#allocation2 + $0x14] sm:$0xf]
    %v115 = vld [vmem:[#allocation2 + $0x18] sm:$0xf]
    %v116 = vld [vmem:[#allocation2 + $0x1c] sm:$0xf]
    %v117 = vld [vmem:[#allocation4] sm:$0x1]
    %v119 = vperm.slane %v117, 0
    %v185 = vunpack.c.l.b16 %v45
    %v186 = vunpack.c.l.b16 %v46
    %v187 = vunpack.c.l.b16 %v47
    %v188 = vunpack.c.l.b16 %v48
    %v189 = vunpack.c.l.b16 %v49
    %v190 = vunpack.c.l.b16 %v50
    %v191 = vunpack.c.l.b16 %v51
    %v192 = vunpack.c.l.b16 %v52
    %v193 = vunpack.c.l.b16 %v53
    %v194 = vunpack.c.l.b16 %v54
    %v195 = vunpack.c.l.b16 %v55
    %v196 = vunpack.c.l.b16 %v56
    %v197 = vunpack.c.l.b16 %v57
    %v198 = vunpack.c.l.b16 %v58
    %v199 = vunpack.c.l.b16 %v59
    %v200 = vunpack.c.l.b16 %v60
    %v201 = vunpack.c.l.b16 %v61
    %v202 = vunpack.c.l.b16 %v62
    %v203 = vunpack.c.l.b16 %v63
    %v204 = vunpack.c.l.b16 %v64
    %v205 = vunpack.c.l.b16 %v65
    %v206 = vunpack.c.l.b16 %v66
    %v207 = vunpack.c.l.b16 %v67
    %v208 = vunpack.c.l.b16 %v68
    %v209 = vunpack.c.l.b16 %v69
    %v210 = vunpack.c.l.b16 %v70
    %v211 = vunpack.c.l.b16 %v71
    %v212 = vunpack.c.l.b16 %v72
    %v213 = vunpack.c.l.b16 %v73
    %v214 = vunpack.c.l.b16 %v74
    %v215 = vunpack.c.l.b16 %v75
    %v216 = vunpack.c.l.b16 %v76
    %v217 = vunpack.c.l.b16 %v77
    %v218 = vunpack.c.l.b16 %v78
    %v219 = vunpack.c.l.b16 %v79
    %v220 = vunpack.c.l.b16 %v80
    %v221 = vunpack.c.l.b16 %v81
    %v222 = vunpack.c.l.b16 %v82
    %v223 = vunpack.c.l.b16 %v83
    %v224 = vunpack.c.l.b16 %v84
    %v225 = vunpack.c.l.b16 %v85
    %v226 = vunpack.c.l.b16 %v86
    %v227 = vunpack.c.l.b16 %v87
    %v228 = vunpack.c.l.b16 %v88
    %v229 = vunpack.c.l.b16 %v89
    %v230 = vunpack.c.l.b16 %v90
    %v231 = vunpack.c.l.b16 %v91
    %v232 = vunpack.c.l.b16 %v92
    %v233 = vunpack.c.l.b16 %v93
    %v234 = vunpack.c.l.b16 %v94
    %v235 = vunpack.c.l.b16 %v95
    %v236 = vunpack.c.l.b16 %v96
    %v237 = vunpack.c.l.b16 %v97
    %v238 = vunpack.c.l.b16 %v98
    %v239 = vunpack.c.l.b16 %v99
    %v240 = vunpack.c.l.b16 %v100
    %v241 = vunpack.c.l.b16 %v101
    %v242 = vunpack.c.l.b16 %v102
    %v243 = vunpack.c.l.b16 %v103
    %v244 = vunpack.c.l.b16 %v104
    %v245 = vunpack.c.l.b16 %v105
    %v246 = vunpack.c.l.b16 %v106
    %v247 = vunpack.c.l.b16 %v107
    %v248 = vunpack.c.l.b16 %v108
    %v249 = vpack.c.b16 %v186, %v185
    %v250 = vpack.c.b16 %v188, %v187
    %v251 = vpack.c.b16 %v190, %v189
    %v252 = vpack.c.b16 %v192, %v191
    %v253 = vpack.c.b16 %v194, %v193
    %v254 = vpack.c.b16 %v196, %v195
    %v255 = vpack.c.b16 %v198, %v197
    %v256 = vpack.c.b16 %v200, %v199
    %v257 = vpack.c.b16 %v202, %v201
    %v258 = vpack.c.b16 %v204, %v203
    %v259 = vpack.c.b16 %v206, %v205
    %v260 = vpack.c.b16 %v208, %v207
    %v261 = vpack.c.b16 %v210, %v209
    %v262 = vpack.c.b16 %v212, %v211
    %v263 = vpack.c.b16 %v214, %v213
    %v264 = vpack.c.b16 %v216, %v215
    %v265 = vpack.c.b16 %v218, %v217
    %v266 = vpack.c.b16 %v220, %v219
    %v267 = vpack.c.b16 %v222, %v221
    %v268 = vpack.c.b16 %v224, %v223
    %v269 = vpack.c.b16 %v226, %v225
    %v270 = vpack.c.b16 %v228, %v227
    %v271 = vpack.c.b16 %v230, %v229
    %v272 = vpack.c.b16 %v232, %v231
    %v273 = vpack.c.b16 %v234, %v233
    %v274 = vpack.c.b16 %v236, %v235
    %v275 = vpack.c.b16 %v238, %v237
    %v276 = vpack.c.b16 %v240, %v239
    %v277 = vpack.c.b16 %v242, %v241
    %v278 = vpack.c.b16 %v244, %v243
    %v279 = vpack.c.b16 %v246, %v245
    %v280 = vpack.c.b16 %v248, %v247
    %v289 = vunpack.c.l.b16 %v109
    %v290 = vunpack.c.l.b16 %v110
    %v291 = vunpack.c.l.b16 %v111
    %v292 = vunpack.c.l.b16 %v112
    %v293 = vunpack.c.l.b16 %v113
    %v294 = vunpack.c.l.b16 %v114
    %v295 = vunpack.c.l.b16 %v115
    %v296 = vunpack.c.l.b16 %v116
    %v297 = vpack.c.b16 %v290, %v289
    %v298 = vpack.c.b16 %v292, %v291
    %v299 = vpack.c.b16 %v294, %v293
    %v300 = vpack.c.b16 %v296, %v295
    %vm305 = vcmask 523264
    %v307 = vsel %vm305, %v249, 0
    %v310 = vsel %vm305, %v250, 0
    %v313 = vsel %vm305, %v251, 0
    %v316 = vsel %vm305, %v252, 0
    %v319 = vsel %vm305, %v253, 0
    %v322 = vsel %vm305, %v254, 0
    %v325 = vsel %vm305, %v255, 0
    %v328 = vsel %vm305, %v256, 0
    %v331 = vsel %vm305, %v257, 0
    %v334 = vsel %vm305, %v258, 0
    %v337 = vsel %vm305, %v259, 0
    %v340 = vsel %vm305, %v260, 0
    %v343 = vsel %vm305, %v261, 0
    %v346 = vsel %vm305, %v262, 0
    %v349 = vsel %vm305, %v263, 0
    %v352 = vsel %vm305, %v264, 0
    %v355 = vsel %vm305, %v265, 0
    %v358 = vsel %vm305, %v266, 0
    %v361 = vsel %vm305, %v267, 0
    %v364 = vsel %vm305, %v268, 0
    %v367 = vsel %vm305, %v269, 0
    %v370 = vsel %vm305, %v270, 0
    %v373 = vsel %vm305, %v271, 0
    %v376 = vsel %vm305, %v272, 0
    %v379 = vsel %vm305, %v273, 0
    %v382 = vsel %vm305, %v274, 0
    %v385 = vsel %vm305, %v275, 0
    %v388 = vsel %vm305, %v276, 0
    %v391 = vsel %vm305, %v277, 0
    %v394 = vsel %vm305, %v278, 0
    %v397 = vsel %vm305, %v279, 0
    %v400 = vsel %vm305, %v280, 0
    %402 = vmatpush.bf16.msra.mxu0 0
    %403 = vmatpush.bf16.msra.mxu0 0
    %404 = vmatpush.bf16.msra.mxu0 0
    %405 = vmatpush.bf16.msra.mxu0 0
    %406 = vmatpush.bf16.msra.mxu0 %v300
    %407 = vmatpush.bf16.msra.mxu0 %v299
    %408 = vmatpush.bf16.msra.mxu0 %v298
    %409 = vmatpush.bf16.msra.mxu0 %v297
    %410 = vmatmul.bf16.gmra.mxu0 %v307
    %v411 = vpop.f32.mrf.mxu0
    %v412 = vadd.f32 %v119, %v411
    %v413 = vpop.f32.mrf.mxu0
    %v414 = vadd.f32 %v119, %v413
    %415 = vmatmul.bf16.gmra.mxu0 %v310
    %v416 = vpop.f32.mrf.mxu0
    %v417 = vadd.f32 %v119, %v416
    %v418 = vpop.f32.mrf.mxu0
    %v419 = vadd.f32 %v119, %v418
    %420 = vmatmul.bf16.gmra.mxu0 %v313
    %v421 = vpop.f32.mrf.mxu0
    %v422 = vadd.f32 %v119, %v421
    %v423 = vpop.f32.mrf.mxu0
    %v424 = vadd.f32 %v119, %v423
    %425 = vmatmul.bf16.gmra.mxu0 %v316
    %v426 = vpop.f32.mrf.mxu0
    %v427 = vadd.f32 %v119, %v426
    %v428 = vpop.f32.mrf.mxu0
    %v429 = vadd.f32 %v119, %v428
    %430 = vmatmul.bf16.gmra.mxu0 %v319
    %v431 = vpop.f32.mrf.mxu0
    %v432 = vadd.f32 %v119, %v431
    %v433 = vpop.f32.mrf.mxu0
    %v434 = vadd.f32 %v119, %v433
    %435 = vmatmul.bf16.gmra.mxu0 %v322
    %v436 = vpop.f32.mrf.mxu0
    %v437 = vadd.f32 %v119, %v436
    %v438 = vpop.f32.mrf.mxu0
    %v439 = vadd.f32 %v119, %v438
    %440 = vmatmul.bf16.gmra.mxu0 %v325
    %v441 = vpop.f32.mrf.mxu0
    %v442 = vadd.f32 %v119, %v441
    %v443 = vpop.f32.mrf.mxu0
    %v444 = vadd.f32 %v119, %v443
    %445 = vmatmul.bf16.gmra.mxu0 %v328
    %v446 = vpop.f32.mrf.mxu0
    %v447 = vadd.f32 %v119, %v446
    %v448 = vpop.f32.mrf.mxu0
    %v449 = vadd.f32 %v119, %v448
    %450 = vmatmul.bf16.gmra.mxu0 %v331
    %v451 = vpop.f32.mrf.mxu0
    %v452 = vadd.f32 %v119, %v451
    %v453 = vpop.f32.mrf.mxu0
    %v454 = vadd.f32 %v119, %v453
    %455 = vmatmul.bf16.gmra.mxu0 %v334
    %v456 = vpop.f32.mrf.mxu0
    %v457 = vadd.f32 %v119, %v456
    %v458 = vpop.f32.mrf.mxu0
    %v459 = vadd.f32 %v119, %v458
    %460 = vmatmul.bf16.gmra.mxu0 %v337
    %v461 = vpop.f32.mrf.mxu0
    %v462 = vadd.f32 %v119, %v461
    %v463 = vpop.f32.mrf.mxu0
    %v464 = vadd.f32 %v119, %v463
    %465 = vmatmul.bf16.gmra.mxu0 %v340
    %v466 = vpop.f32.mrf.mxu0
    %v467 = vadd.f32 %v119, %v466
    %v468 = vpop.f32.mrf.mxu0
    %v469 = vadd.f32 %v119, %v468
    %470 = vmatmul.bf16.gmra.mxu0 %v343
    %v471 = vpop.f32.mrf.mxu0
    %v472 = vadd.f32 %v119, %v471
    %v473 = vpop.f32.mrf.mxu0
    %v474 = vadd.f32 %v119, %v473
    %475 = vmatmul.bf16.gmra.mxu0 %v346
    %v476 = vpop.f32.mrf.mxu0
    %v477 = vadd.f32 %v119, %v476
    %v478 = vpop.f32.mrf.mxu0
    %v479 = vadd.f32 %v119, %v478
    %480 = vmatmul.bf16.gmra.mxu0 %v349
    %v481 = vpop.f32.mrf.mxu0
    %v482 = vadd.f32 %v119, %v481
    %v483 = vpop.f32.mrf.mxu0
    %v484 = vadd.f32 %v119, %v483
    %485 = vmatmul.bf16.gmra.mxu0 %v352
    %v486 = vpop.f32.mrf.mxu0
    %v487 = vadd.f32 %v119, %v486
    %v488 = vpop.f32.mrf.mxu0
    %v489 = vadd.f32 %v119, %v488
    %490 = vmatmul.bf16.gmra.mxu0 %v355
    %v491 = vpop.f32.mrf.mxu0
    %v492 = vadd.f32 %v119, %v491
    %v493 = vpop.f32.mrf.mxu0
    %v494 = vadd.f32 %v119, %v493
    %495 = vmatmul.bf16.gmra.mxu0 %v358
    %v496 = vpop.f32.mrf.mxu0
    %v497 = vadd.f32 %v119, %v496
    %v498 = vpop.f32.mrf.mxu0
    %v499 = vadd.f32 %v119, %v498
    %500 = vmatmul.bf16.gmra.mxu0 %v361
    %v501 = vpop.f32.mrf.mxu0
    %v502 = vadd.f32 %v119, %v501
    %v503 = vpop.f32.mrf.mxu0
    %v504 = vadd.f32 %v119, %v503
    %505 = vmatmul.bf16.gmra.mxu0 %v364
    %v506 = vpop.f32.mrf.mxu0
    %v507 = vadd.f32 %v119, %v506
    %v508 = vpop.f32.mrf.mxu0
    %v509 = vadd.f32 %v119, %v508
    %510 = vmatmul.bf16.gmra.mxu0 %v367
    %v511 = vpop.f32.mrf.mxu0
    %v512 = vadd.f32 %v119, %v511
    %v513 = vpop.f32.mrf.mxu0
    %v514 = vadd.f32 %v119, %v513
    %515 = vmatmul.bf16.gmra.mxu0 %v370
    %v516 = vpop.f32.mrf.mxu0
    %v517 = vadd.f32 %v119, %v516
    %v518 = vpop.f32.mrf.mxu0
    %v519 = vadd.f32 %v119, %v518
    %520 = vmatmul.bf16.gmra.mxu0 %v373
    %v521 = vpop.f32.mrf.mxu0
    %v522 = vadd.f32 %v119, %v521
    %v523 = vpop.f32.mrf.mxu0
    %v524 = vadd.f32 %v119, %v523
    %525 = vmatmul.bf16.gmra.mxu0 %v376
    %v526 = vpop.f32.mrf.mxu0
    %v527 = vadd.f32 %v119, %v526
    %v528 = vpop.f32.mrf.mxu0
    %v529 = vadd.f32 %v119, %v528
    %530 = vmatmul.bf16.gmra.mxu0 %v379
    %v531 = vpop.f32.mrf.mxu0
    %v532 = vadd.f32 %v119, %v531
    %v533 = vpop.f32.mrf.mxu0
    %v534 = vadd.f32 %v119, %v533
    %535 = vmatmul.bf16.gmra.mxu0 %v382
    %v536 = vpop.f32.mrf.mxu0
    %v537 = vadd.f32 %v119, %v536
    %v538 = vpop.f32.mrf.mxu0
    %v539 = vadd.f32 %v119, %v538
    %540 = vmatmul.bf16.gmra.mxu0 %v385
    %v541 = vpop.f32.mrf.mxu0
    %v542 = vadd.f32 %v119, %v541
    %v543 = vpop.f32.mrf.mxu0
    %v544 = vadd.f32 %v119, %v543
    %545 = vmatmul.bf16.gmra.mxu0 %v388
    %v546 = vpop.f32.mrf.mxu0
    %v547 = vadd.f32 %v119, %v546
    %v548 = vpop.f32.mrf.mxu0
    %v549 = vadd.f32 %v119, %v548
    %550 = vmatmul.bf16.gmra.mxu0 %v391
    %v551 = vpop.f32.mrf.mxu0
    %v552 = vadd.f32 %v119, %v551
    %v553 = vpop.f32.mrf.mxu0
    %v554 = vadd.f32 %v119, %v553
    %555 = vmatmul.bf16.gmra.mxu0 %v394
    %v556 = vpop.f32.mrf.mxu0
    %v557 = vadd.f32 %v119, %v556
    %v558 = vpop.f32.mrf.mxu0
    %v559 = vadd.f32 %v119, %v558
    %560 = vmatmul.bf16.gmra.mxu0 %v397
    %v561 = vpop.f32.mrf.mxu0
    %v562 = vadd.f32 %v119, %v561
    %v563 = vpop.f32.mrf.mxu0
    %v564 = vadd.f32 %v119, %v563
    %565 = vmatmul.bf16.gmra.mxu0 %v400
    %v566 = vpop.f32.mrf.mxu0
    %v567 = vadd.f32 %v119, %v566
    %v568 = vpop.f32.mrf.mxu0
    %v569 = vadd.f32 %v119, %v568
    %570 = vdwg.mxu0
    %v571 = vmax.f32 %v412, 0.0
    %v572 = vmax.f32 %v414, 0.0
    %v573 = vmax.f32 %v417, 0.0
    %v574 = vmax.f32 %v419, 0.0
    %v575 = vmax.f32 %v422, 0.0
    %v576 = vmax.f32 %v424, 0.0
    %v577 = vmax.f32 %v427, 0.0
    %v578 = vmax.f32 %v429, 0.0
    %v579 = vmax.f32 %v432, 0.0
    %v580 = vmax.f32 %v434, 0.0
    %v581 = vmax.f32 %v437, 0.0
    %v582 = vmax.f32 %v439, 0.0
    %v583 = vmax.f32 %v442, 0.0
    %v584 = vmax.f32 %v444, 0.0
    %v585 = vmax.f32 %v447, 0.0
    %v586 = vmax.f32 %v449, 0.0
    %v587 = vmax.f32 %v452, 0.0
    %v588 = vmax.f32 %v454, 0.0
    %v589 = vmax.f32 %v457, 0.0
    %v590 = vmax.f32 %v459, 0.0
    %v591 = vmax.f32 %v462, 0.0
    %v592 = vmax.f32 %v464, 0.0
    %v593 = vmax.f32 %v467, 0.0
    %v594 = vmax.f32 %v469, 0.0
    %v595 = vmax.f32 %v472, 0.0
    %v596 = vmax.f32 %v474, 0.0
    %v597 = vmax.f32 %v477, 0.0
    %v598 = vmax.f32 %v479, 0.0
    %v599 = vmax.f32 %v482, 0.0
    %v600 = vmax.f32 %v484, 0.0
    %v601 = vmax.f32 %v487, 0.0
    %v602 = vmax.f32 %v489, 0.0
    %v603 = vmax.f32 %v492, 0.0
    %v604 = vmax.f32 %v494, 0.0
    %v605 = vmax.f32 %v497, 0.0
    %v606 = vmax.f32 %v499, 0.0
    %v607 = vmax.f32 %v502, 0.0
    %v608 = vmax.f32 %v504, 0.0
    %v609 = vmax.f32 %v507, 0.0
    %v610 = vmax.f32 %v509, 0.0
    %v611 = vmax.f32 %v512, 0.0
    %v612 = vmax.f32 %v514, 0.0
    %v613 = vmax.f32 %v517, 0.0
    %v614 = vmax.f32 %v519, 0.0
    %v615 = vmax.f32 %v522, 0.0
    %v616 = vmax.f32 %v524, 0.0
    %v617 = vmax.f32 %v527, 0.0
    %v618 = vmax.f32 %v529, 0.0
    %v619 = vmax.f32 %v532, 0.0
    %v620 = vmax.f32 %v534, 0.0
    %v621 = vmax.f32 %v537, 0.0
    %v622 = vmax.f32 %v539, 0.0
    %v623 = vmax.f32 %v542, 0.0
    %v624 = vmax.f32 %v544, 0.0
    %v625 = vmax.f32 %v547, 0.0
    %v626 = vmax.f32 %v549, 0.0
    %v627 = vmax.f32 %v552, 0.0
    %v628 = vmax.f32 %v554, 0.0
    %v629 = vmax.f32 %v557, 0.0
    %v630 = vmax.f32 %v559, 0.0
    %v631 = vmax.f32 %v562, 0.0
    %v632 = vmax.f32 %v564, 0.0
    %v633 = vmax.f32 %v567, 0.0
    %v634 = vmax.f32 %v569, 0.0
    %v635 = vpack.c.bf16 %v571, %v571
    %v636 = vpack.c.bf16 %v572, %v572
    %v637 = vpack.c.bf16 %v573, %v573
    %v638 = vpack.c.bf16 %v574, %v574
    %v639 = vpack.c.bf16 %v575, %v575
    %v640 = vpack.c.bf16 %v576, %v576
    %v641 = vpack.c.bf16 %v577, %v577
    %v642 = vpack.c.bf16 %v578, %v578
    %v643 = vpack.c.bf16 %v579, %v579
    %v644 = vpack.c.bf16 %v580, %v580
    %v645 = vpack.c.bf16 %v581, %v581
    %v646 = vpack.c.bf16 %v582, %v582
    %v647 = vpack.c.bf16 %v583, %v583
    %v648 = vpack.c.bf16 %v584, %v584
    %v649 = vpack.c.bf16 %v585, %v585
    %v650 = vpack.c.bf16 %v586, %v586
    %v651 = vpack.c.bf16 %v587, %v587
    %v652 = vpack.c.bf16 %v588, %v588
    %v653 = vpack.c.bf16 %v589, %v589
    %v654 = vpack.c.bf16 %v590, %v590
    %v655 = vpack.c.bf16 %v591, %v591
    %v656 = vpack.c.bf16 %v592, %v592
    %v657 = vpack.c.bf16 %v593, %v593
    %v658 = vpack.c.bf16 %v594, %v594
    %v659 = vpack.c.bf16 %v595, %v595
    %v660 = vpack.c.bf16 %v596, %v596
    %v661 = vpack.c.bf16 %v597, %v597
    %v662 = vpack.c.bf16 %v598, %v598
    %v663 = vpack.c.bf16 %v599, %v599
    %v664 = vpack.c.bf16 %v600, %v600
    %v665 = vpack.c.bf16 %v601, %v601
    %v666 = vpack.c.bf16 %v602, %v602
    %v667 = vpack.c.bf16 %v603, %v603
    %v668 = vpack.c.bf16 %v604, %v604
    %v669 = vpack.c.bf16 %v605, %v605
    %v670 = vpack.c.bf16 %v606, %v606
    %v671 = vpack.c.bf16 %v607, %v607
    %v672 = vpack.c.bf16 %v608, %v608
    %v673 = vpack.c.bf16 %v609, %v609
    %v674 = vpack.c.bf16 %v610, %v610
    %v675 = vpack.c.bf16 %v611, %v611
    %v676 = vpack.c.bf16 %v612, %v612
    %v677 = vpack.c.bf16 %v613, %v613
    %v678 = vpack.c.bf16 %v614, %v614
    %v679 = vpack.c.bf16 %v615, %v615
    %v680 = vpack.c.bf16 %v616, %v616
    %v681 = vpack.c.bf16 %v617, %v617
    %v682 = vpack.c.bf16 %v618, %v618
    %v683 = vpack.c.bf16 %v619, %v619
    %v684 = vpack.c.bf16 %v620, %v620
    %v685 = vpack.c.bf16 %v621, %v621
    %v686 = vpack.c.bf16 %v622, %v622
    %v687 = vpack.c.bf16 %v623, %v623
    %v688 = vpack.c.bf16 %v624, %v624
    %v689 = vpack.c.bf16 %v625, %v625
    %v690 = vpack.c.bf16 %v626, %v626
    %v691 = vpack.c.bf16 %v627, %v627
    %v692 = vpack.c.bf16 %v628, %v628
    %v693 = vpack.c.bf16 %v629, %v629
    %v694 = vpack.c.bf16 %v630, %v630
    %v695 = vpack.c.bf16 %v631, %v631
    %v696 = vpack.c.bf16 %v632, %v632
    %v697 = vpack.c.bf16 %v633, %v633
    %v698 = vpack.c.bf16 %v634, %v634
    %699 = vst [vmem:[%s3] sm:$0xf] %v635
    %700 = vst [vmem:[%s3 + $0x4] sm:$0xf] %v636
    %701 = vst [vmem:[%s3 + $0x8] sm:$0xf] %v637
    %702 = vst [vmem:[%s3 + $0xc] sm:$0xf] %v638
    %703 = vst [vmem:[%s3 + $0x10] sm:$0xf] %v639
    %704 = vst [vmem:[%s3 + $0x14] sm:$0xf] %v640
    %705 = vst [vmem:[%s3 + $0x18] sm:$0xf] %v641
    %706 = vst [vmem:[%s3 + $0x1c] sm:$0xf] %v642
    %707 = vst [vmem:[%s3 + $0x20] sm:$0xf] %v643
    %708 = vst [vmem:[%s3 + $0x24] sm:$0xf] %v644
    %709 = vst [vmem:[%s3 + $0x28] sm:$0xf] %v645
    %710 = vst [vmem:[%s3 + $0x2c] sm:$0xf] %v646
    %711 = vst [vmem:[%s3 + $0x30] sm:$0xf] %v647
    %712 = vst [vmem:[%s3 + $0x34] sm:$0xf] %v648
    %713 = vst [vmem:[%s3 + $0x38] sm:$0xf] %v649
    %714 = vst [vmem:[%s3 + $0x3c] sm:$0xf] %v650
    %715 = vst [vmem:[%s3 + $0x40] sm:$0xf] %v651
    %716 = vst [vmem:[%s3 + $0x44] sm:$0xf] %v652
    %717 = vst [vmem:[%s3 + $0x48] sm:$0xf] %v653
    %718 = vst [vmem:[%s3 + $0x4c] sm:$0xf] %v654
    %719 = vst [vmem:[%s3 + $0x50] sm:$0xf] %v655
    %720 = vst [vmem:[%s3 + $0x54] sm:$0xf] %v656
    %721 = vst [vmem:[%s3 + $0x58] sm:$0xf] %v657
    %722 = vst [vmem:[%s3 + $0x5c] sm:$0xf] %v658
    %723 = vst [vmem:[%s3 + $0x60] sm:$0xf] %v659
    %724 = vst [vmem:[%s3 + $0x64] sm:$0xf] %v660
    %725 = vst [vmem:[%s3 + $0x68] sm:$0xf] %v661
    %726 = vst [vmem:[%s3 + $0x6c] sm:$0xf] %v662
    %727 = vst [vmem:[%s3 + $0x70] sm:$0xf] %v663
    %728 = vst [vmem:[%s3 + $0x74] sm:$0xf] %v664
    %729 = vst [vmem:[%s3 + $0x78] sm:$0xf] %v665
    %730 = vst [vmem:[%s3 + $0x7c] sm:$0xf] %v666
    %731 = vst [vmem:[%s3 + $0x80] sm:$0xf] %v667
    %732 = vst [vmem:[%s3 + $0x84] sm:$0xf] %v668
    %733 = vst [vmem:[%s3 + $0x88] sm:$0xf] %v669
    %734 = vst [vmem:[%s3 + $0x8c] sm:$0xf] %v670
    %735 = vst [vmem:[%s3 + $0x90] sm:$0xf] %v671
    %736 = vst [vmem:[%s3 + $0x94] sm:$0xf] %v672
    %737 = vst [vmem:[%s3 + $0x98] sm:$0xf] %v673
    %738 = vst [vmem:[%s3 + $0x9c] sm:$0xf] %v674
    %739 = vst [vmem:[%s3 + $0xa0] sm:$0xf] %v675
    %740 = vst [vmem:[%s3 + $0xa4] sm:$0xf] %v676
    %741 = vst [vmem:[%s3 + $0xa8] sm:$0xf] %v677
    %742 = vst [vmem:[%s3 + $0xac] sm:$0xf] %v678
    %743 = vst [vmem:[%s3 + $0xb0] sm:$0xf] %v679
    %744 = vst [vmem:[%s3 + $0xb4] sm:$0xf] %v680
    %745 = vst [vmem:[%s3 + $0xb8] sm:$0xf] %v681
    %746 = vst [vmem:[%s3 + $0xbc] sm:$0xf] %v682
    %747 = vst [vmem:[%s3 + $0xc0] sm:$0xf] %v683
    %748 = vst [vmem:[%s3 + $0xc4] sm:$0xf] %v684
    %749 = vst [vmem:[%s3 + $0xc8] sm:$0xf] %v685
    %750 = vst [vmem:[%s3 + $0xcc] sm:$0xf] %v686
    %751 = vst [vmem:[%s3 + $0xd0] sm:$0xf] %v687
    %752 = vst [vmem:[%s3 + $0xd4] sm:$0xf] %v688
    %753 = vst [vmem:[%s3 + $0xd8] sm:$0xf] %v689
    %754 = vst [vmem:[%s3 + $0xdc] sm:$0xf] %v690
    %755 = vst [vmem:[%s3 + $0xe0] sm:$0xf] %v691
    %756 = vst [vmem:[%s3 + $0xe4] sm:$0xf] %v692
    %757 = vst [vmem:[%s3 + $0xe8] sm:$0xf] %v693
    %758 = vst [vmem:[%s3 + $0xec] sm:$0xf] %v694
    %759 = vst [vmem:[%s3 + $0xf0] sm:$0xf] %v695
    %760 = vst [vmem:[%s3 + $0xf4] sm:$0xf] %v696
    %761 = vst [vmem:[%s3 + $0xf8] sm:$0xf] %v697
    %762 = vst [vmem:[%s3 + $0xfc] sm:$0xf] %v698
    // Predicated region
    $region22: #{_lambda_.6} parent=1 // pred_check
      _
    $region23: #{_lambda_.6} parent=1 // pred_check_branch
      %764 = sbr.rel (0) target = $region25
    $region24: #{_lambda_.6} parent=1 // pred_region
      _
    $region25: #{_lambda_.6} parent=1 // pred_fallthru
      _
    // Predicated region
    $region26: #{_lambda_.6} parent=1 // pred_check
      _
    $region27: #{_lambda_.6} parent=1 // pred_check_branch
      %766 = sbr.rel (0) target = $region29
    $region28: #{_lambda_.6} parent=1 // pred_region
      _
    $region29: #{_lambda_.6} parent=1 // pred_fallthru
      _
    %767 = vsyncpa [#allocation3], 1
    %768 = vsyncpa [#allocation5], 1

// kernel: _lambda_.8
$region0: #{_lambda_.8}
  #allocation0 [shape = 'u32[]', space=smem, size = 0x4, offset = 0x4, fixed_abs, tag = 'smem constant byte address 0x4 - core index']
  #allocation1 [shape = 'u32[72,128]{1,0:T(1,128)}', space=vmem, size = 0x9000, scoped, tag = 'internal scratch']
  %s0 = inlined_call_operand.vmem [shape: bf16[2,64,128], index: 0, kind: input, shape index: {}]
  %s1 = inlined_call_operand.vmem [shape: bf16[128,128], index: 1, kind: input, shape index: {}]
  %s2 = inlined_call_operand.vmem [shape: f32[1,128], index: 2, kind: input, shape index: {}]
  %s3 = inlined_call_operand.vmem [shape: bf16[2,64,128], index: 3, kind: output, shape index: {0}]
  %s4 = inlined_call_operand.vmem [shape: f32[2,1,128], index: 4, kind: output, shape index: {1}]
  %5 = xla_tuple %s3, %s4
  %s6 = sld [smem:[#allocation0]]
  $region61: #{_lambda_.8} parent=0
    _
  %s8 = ssub.s32 1, %s6
  %s9 = scalar_select 0, %s8, %s6
  loop: start=0, step=1, limit=4
  $region2: #{_lambda_.8} parent=0 // loop_pre_header
    _
  $region3: #{_lambda_.8} parent=0 // loop_header
    %s11 = sphi 0, %s15
    %p12 = scmp.ge.s32.totalorder %s11, 4
    %s18 = sphi 0, %s30
    %s19 = sphi 0, %s26
    %s20 = sphi 0, %s18
    %s21 = sphi 0, %s19
    %s22 = sphi 0, %s20
    %s23 = sphi 0, %s21
    %s35 = sphi 0, %s37
    %s38 = sphi 0, %s35
    %s39 = sphi 0, %s38
    %s55 = sphi 0, %s39
    %s59 = sphi 0, %s59
    %s61 = sphi 0, %s59
    %s62 = sphi 0, %s61
    %s76 = sphi 0, %s62
    %s80 = sphi 0, %s80
    %s82 = sphi 0, %s80
    %s83 = sphi 0, %s82
    %s97 = sphi 0, %s83
    %s105 = sphi 0, %s107
    %s108 = sphi 0, %s105
    %s109 = sphi 0, %s108
    %s125 = sphi 0, %s109
    %s131 = sphi 0, %s133
    %s134 = sphi 0, %s131
    %s135 = sphi 0, %s134
    %s151 = sphi 0, %s135
  $region4: #{_lambda_.8} parent=0 // loop_header_branch
    %14 = sbr.rel (%p12) target = $region8
  $region5: #{_lambda_.8} parent=0 // loop_body
    %s16 = ssub.s32 %s11, 1
    %s17 = ssub.s32 %s11, 2
    %s24 = sadd.s32 1, %s19
    %p25 = scmp.ge.s32.totalorder %s24, 1
    %s26 = scalar_select %p25, 0, %s24
    %s27 = sadd.s32 1, %s18
    %s28 = scalar_select %p25, %s27, %s18
    %p29 = scmp.ge.s32.totalorder %s28, 2
    %s30 = scalar_select %p29, 0, %s28
    %s31 = ssub.s32 %s18, %s30
    %s32 = ssub.s32 %s19, %s26
    %s33 = sor.u32 %s31, %s32
    %p34 = scmp.eq.s32.totalorder %s33, 0
    %s36 = sadd.s32 %s35, 1
    %s37 = scalar_select %p34, %s35, %s36
    %p40 = pneg %p34
    %p41 = scmp.eq.s32.totalorder %s11, 1
    %p42 = por %p40, %p41
    %p43 = scmp.ne.s32.totalorder %s35, %s38
    %p44 = scmp.eq.s32.totalorder %s11, 0
    %p45 = por %p43, %p44
    %p46 = scmp.ne.s32.totalorder %s35, %s38
    %p47 = scmp.eq.s32.totalorder %s16, 1
    %p48 = por %p46, %p47
    %p49 = scmp.ne.s32.totalorder %s38, %s39
    %p50 = scmp.eq.s32.totalorder %s16, 0
    %p51 = por %p49, %p50
    %p52 = scmp.ne.s32.totalorder %s38, %s39
    %p53 = scmp.eq.s32.totalorder %s17, 1
    %p54 = por %p52, %p53
    %p56 = scmp.ne.s32.totalorder %s39, %s55
    %p57 = scmp.eq.s32.totalorder %s17, 0
    %p58 = por %p56, %p57
    %s60 = sadd.s32 %s59, 1
    %p63 = scmp.eq.s32.totalorder %s11, 1
    %p64 = scmp.ne.s32.totalorder %s59, %s61
    %p65 = scmp.eq.s32.totalorder %s11, 0
    %p66 = por %p64, %p65
    %p67 = scmp.ne.s32.totalorder %s59, %s61
    %p68 = scmp.eq.s32.totalorder %s16, 1
    %p69 = por %p67, %p68
    %p70 = scmp.ne.s32.totalorder %s61, %s62
    %p71 = scmp.eq.s32.totalorder %s16, 0
    %p72 = por %p70, %p71
    %p73 = scmp.ne.s32.totalorder %s61, %s62
    %p74 = scmp.eq.s32.totalorder %s17, 1
    %p75 = por %p73, %p74
    %p77 = scmp.ne.s32.totalorder %s62, %s76
    %p78 = scmp.eq.s32.totalorder %s17, 0
    %p79 = por %p77, %p78
    %s81 = sadd.s32 %s80, 1
    %p84 = scmp.eq.s32.totalorder %s11, 1
    %p85 = scmp.ne.s32.totalorder %s80, %s82
    %p86 = scmp.eq.s32.totalorder %s11, 0
    %p87 = por %p85, %p86
    %p88 = scmp.ne.s32.totalorder %s80, %s82
    %p89 = scmp.eq.s32.totalorder %s16, 1
    %p90 = por %p88, %p89
    %p91 = scmp.ne.s32.totalorder %s82, %s83
    %p92 = scmp.eq.s32.totalorder %s16, 0
    %p93 = por %p91, %p92
    %p94 = scmp.ne.s32.totalorder %s82, %s83
    %p95 = scmp.eq.s32.totalorder %s17, 1
    %p96 = por %p94, %p95
    %p98 = scmp.ne.s32.totalorder %s83, %s97
    %p99 = scmp.eq.s32.totalorder %s17, 0
    %p100 = por %p98, %p99
    %s101 = ssub.s32 %s18, %s30
    %s102 = ssub.s32 %s19, %s26
    %s103 = sor.u32 %s101, %s102
    %p104 = scmp.eq.s32.totalorder %s103, 0
    %s106 = sadd.s32 %s105, 1
    %s107 = scalar_select %p104, %s105, %s106
    %p110 = pneg %p104
    %p111 = scmp.eq.s32.totalorder %s11, 1
    %p112 = por %p110, %p111
    %p113 = scmp.ne.s32.totalorder %s105, %s108
    %p114 = scmp.eq.s32.totalorder %s11, 0
    %p115 = por %p113, %p114
    %p116 = scmp.ne.s32.totalorder %s105, %s108
    %p117 = scmp.eq.s32.totalorder %s16, 1
    %p118 = por %p116, %p117
    %p119 = scmp.ne.s32.totalorder %s108, %s109
    %p120 = scmp.eq.s32.totalorder %s16, 0
    %p121 = por %p119, %p120
    %p122 = scmp.ne.s32.totalorder %s108, %s109
    %p123 = scmp.eq.s32.totalorder %s17, 1
    %p124 = por %p122, %p123
    %p126 = scmp.ne.s32.totalorder %s109, %s125
    %p127 = scmp.eq.s32.totalorder %s17, 0
    %p128 = por %p126, %p127
    %s129 = ssub.s32 %s18, %s30
    %p130 = scmp.eq.s32.totalorder %s129, 0
    %s132 = sadd.s32 %s131, 1
    %s133 = scalar_select %p130, %s131, %s132
    %p136 = pneg %p130
    %p137 = scmp.eq.s32.totalorder %s11, 1
    %p138 = por %p136, %p137
    %p139 = scmp.ne.s32.totalorder %s131, %s134
    %p140 = scmp.eq.s32.totalorder %s11, 0
    %p141 = por %p139, %p140
    %p142 = scmp.ne.s32.totalorder %s131, %s134
    %p143 = scmp.eq.s32.totalorder %s16, 1
    %p144 = por %p142, %p143
    %p145 = scmp.ne.s32.totalorder %s134, %s135
    %p146 = scmp.eq.s32.totalorder %s16, 0
    %p147 = por %p145, %p146
    %p148 = scmp.ne.s32.totalorder %s134, %s135
    %p149 = scmp.eq.s32.totalorder %s17, 1
    %p150 = por %p148, %p149
    %p152 = scmp.ne.s32.totalorder %s135, %s151
    %p153 = scmp.eq.s32.totalorder %s17, 0
    %p154 = por %p152, %p153
    %p155 = scmp.le.s32.totalorder 1, %s11
    %p156 = scmp.lt.s32.totalorder %s11, 3
    %p157 = pnand %p155, %p156
    %p158 = pneg %p157
    // Predicated region
    $region9: #{_lambda_.8} parent=5 // pred_check
      _
    $region10: #{_lambda_.8} parent=5 // pred_check_branch
      %160 = sbr.rel (%p157) target = $region12
    $region11: #{_lambda_.8} parent=5 // pred_region
      %s161 = ssub.s32 %s11, 1
      // Predicated region
      $region13: #{_lambda_.8} parent=11 // pred_check
        %p162 = pneg %p72
      $region14: #{_lambda_.8} parent=11 // pred_check_branch
        %164 = sbr.rel (%p162) target = $region16
      $region15: #{_lambda_.8} parent=11 // pred_region
        _
      $region16: #{_lambda_.8} parent=11 // pred_fallthru
        _
      // Predicated region
      $region17: #{_lambda_.8} parent=11 // pred_check
        %p165 = pneg %p93
      $region18: #{_lambda_.8} parent=11 // pred_check_branch
        %167 = sbr.rel (%p165) target = $region20
      $region19: #{_lambda_.8} parent=11 // pred_region
        _
      $region20: #{_lambda_.8} parent=11 // pred_fallthru
        _
    $region12: #{_lambda_.8} parent=5 // pred_fallthru
      _
    %p168 = scmp.lt.s32.totalorder %s11, 2
    // Predicated region
    $region21: #{_lambda_.8} parent=5 // pred_check
      %p169 = pneg %p168
    $region22: #{_lambda_.8} parent=5 // pred_check_branch
      %171 = sbr.rel (%p169) target = $region24
    $region23: #{_lambda_.8} parent=5 // pred_region
      // Predicated region
      $region25: #{_lambda_.8} parent=23 // pred_check
        %p172 = pneg %p45
      $region26: #{_lambda_.8} parent=23 // pred_check_branch
        %174 = sbr.rel (%p172) target = $region28
      $region27: #{_lambda_.8} parent=23 // pred_region
        %s175 = smul.u32 8, %s19
        %p176 = scmp.lt.s32.totalorder %s18, 1
        %s177 = scalar_select %p176, %s18, 1
        %p178 = scmp.lt.s32.totalorder %s175, 7
        %s179 = scalar_select %p178, %s175, 7
        %s180 = smul.addr %s177, 8
        %s181 = sadd.s32 %s179, %s180
        %s182 = smul.addr %s181, 4
        %s183 = scalar_lea.vmem %s0, %s182
        %s184 = smul.u32 8, %s19
      $region28: #{_lambda_.8} parent=23 // pred_fallthru
        _
    $region24: #{_lambda_.8} parent=5 // pred_fallthru
      _
    %p185 = scmp.le.s32.totalorder 1, %s11
    %p186 = scmp.lt.s32.totalorder %s11, 3
    %p187 = pnand %p185, %p186
    %p188 = pneg %p187
    // Predicated region
    $region29: #{_lambda_.8} parent=5 // pred_check
      _
    $region30: #{_lambda_.8} parent=5 // pred_check_branch
      %190 = sbr.rel (%p187) target = $region32
    $region31: #{_lambda_.8} parent=5 // pred_region
      %s191 = ssub.s32 %s11, 1
      %s192 = smul.u32 8, %s21
      %p193 = scmp.lt.s32.totalorder %s20, 1
      %s194 = scalar_select %p193, %s20, 1
      %p195 = scmp.lt.s32.totalorder %s192, 7
      %s196 = scalar_select %p195, %s192, 7
      %s197 = smul.addr %s194, 8
      %s198 = sadd.s32 %s196, %s197
      %s199 = smul.addr %s198, 4
      %s200 = scalar_lea.vmem %s0, %s199
      %p201 = pneg %p51
      %p202 = pneg %p48
      %p203 = pneg %p72
      %p204 = pneg %p69
      %p205 = pneg %p93
      %p206 = pneg %p90
      %p207 = pneg %p121
      %p208 = pneg %p118
      %s209 = smul.u32 8, %s21
      %p210 = scmp.lt.s32.totalorder %s20, 1
      %s211 = scalar_select %p210, %s20, 1
      %p212 = scmp.lt.s32.totalorder %s209, 7
      %s213 = scalar_select %p212, %s209, 7
      %s214 = smul.addr %s211, 8
      %s215 = sadd.s32 %s213, %s214
      %s216 = smul.addr %s215, 4
      %s217 = scalar_lea.vmem %s3, %s216
      %p218 = pneg %p147
      %p219 = pneg %p144
      %p220 = scmp.lt.s32.totalorder %s20, 1
      %s221 = scalar_select %p220, %s20, 1
      %s222 = scalar_lea.vmem %s4, %s221
      %s223 = smul.u32 8, %s21
      %p224 = scmp.lt.s32.totalorder %s20, 1
      %s225 = scalar_select %p224, %s20, 1
      %p226 = scmp.lt.s32.totalorder %s223, 7
      %s227 = scalar_select %p226, %s223, 7
      %s228 = smul.addr %s225, 8
      %s229 = sadd.s32 %s227, %s228
      %s230 = smul.addr %s229, 4
      %s231 = scalar_lea.vmem %s0, %s230
      %s232 = smul.u32 8, %s21
      %s233 = smul.u32 8, %s21
      %p234 = scmp.lt.s32.totalorder %s20, 1
      %s235 = scalar_select %p234, %s20, 1
      %p236 = scmp.lt.s32.totalorder %s233, 7
      %s237 = scalar_select %p236, %s233, 7
      %s238 = smul.addr %s235, 8
      %s239 = sadd.s32 %s237, %s238
      %s240 = smul.addr %s239, 4
      %s241 = scalar_lea.vmem %s3, %s240
      %s242 = smul.u32 8, %s21
      %p243 = scmp.lt.s32.totalorder %s20, 1
      %s244 = scalar_select %p243, %s20, 1
      %s245 = scalar_lea.vmem %s4, %s244
      %v246 = vld [vmem:[%s231] sm:$0xf]
      %v247 = vld [vmem:[%s231 + $0x4] sm:$0xf]
      %v248 = vld [vmem:[%s231 + $0x8] sm:$0xf]
      %v249 = vld [vmem:[%s231 + $0xc] sm:$0xf]
      %v250 = vld [vmem:[%s231 + $0x10] sm:$0xf]
      %v251 = vld [vmem:[%s231 + $0x14] sm:$0xf]
      %v252 = vld [vmem:[%s231 + $0x18] sm:$0xf]
      %v253 = vld [vmem:[%s231 + $0x1c] sm:$0xf]
      %v254 = vld [vmem:[%s1] sm:$0xf]
      %v255 = vld [vmem:[%s1 + $0x4] sm:$0xf]
      %v256 = vld [vmem:[%s1 + $0x8] sm:$0xf]
      %v257 = vld [vmem:[%s1 + $0xc] sm:$0xf]
      %v258 = vld [vmem:[%s1 + $0x10] sm:$0xf]
      %v259 = vld [vmem:[%s1 + $0x14] sm:$0xf]
      %v260 = vld [vmem:[%s1 + $0x18] sm:$0xf]
      %v261 = vld [vmem:[%s1 + $0x1c] sm:$0xf]
      %v262 = vld [vmem:[%s1 + $0x20] sm:$0xf]
      %v263 = vld [vmem:[%s1 + $0x24] sm:$0xf]
      %v264 = vld [vmem:[%s1 + $0x28] sm:$0xf]
      %v265 = vld [vmem:[%s1 + $0x2c] sm:$0xf]
      %v266 = vld [vmem:[%s1 + $0x30] sm:$0xf]
      %v267 = vld [vmem:[%s1 + $0x34] sm:$0xf]
      %v268 = vld [vmem:[%s1 + $0x38] sm:$0xf]
      %v269 = vld [vmem:[%s1 + $0x3c] sm:$0xf]
      %v278 = vunpack.c.l.b16 %v246
      %v279 = vunpack.c.l.b16 %v247
      %v280 = vunpack.c.l.b16 %v248
      %v281 = vunpack.c.l.b16 %v249
      %v282 = vunpack.c.l.b16 %v250
      %v283 = vunpack.c.l.b16 %v251
      %v284 = vunpack.c.l.b16 %v252
      %v285 = vunpack.c.l.b16 %v253
      %v286 = vpack.c.b16 %v279, %v278
      %v287 = vpack.c.b16 %v281, %v280
      %v288 = vpack.c.b16 %v283, %v282
      %v289 = vpack.c.b16 %v285, %v284
      %v310 = vunpack.c.l.b16 %v254
      %v311 = vunpack.c.l.b16 %v255
      %v312 = vunpack.c.l.b16 %v256
      %v313 = vunpack.c.l.b16 %v257
      %v314 = vunpack.c.l.b16 %v258
      %v315 = vunpack.c.l.b16 %v259
      %v316 = vunpack.c.l.b16 %v260
      %v317 = vunpack.c.l.b16 %v261
      %v318 = vunpack.c.l.b16 %v262
      %v319 = vunpack.c.l.b16 %v263
      %v320 = vunpack.c.l.b16 %v264
      %v321 = vunpack.c.l.b16 %v265
      %v322 = vunpack.c.l.b16 %v266
      %v323 = vunpack.c.l.b16 %v267
      %v324 = vunpack.c.l.b16 %v268
      %v325 = vunpack.c.l.b16 %v269
      %v326 = vpack.c.b16 %v311, %v310
      %v327 = vpack.c.b16 %v313, %v312
      %v328 = vpack.c.b16 %v315, %v314
      %v329 = vpack.c.b16 %v317, %v316
      %v330 = vpack.c.b16 %v319, %v318
      %v331 = vpack.c.b16 %v321, %v320
      %v332 = vpack.c.b16 %v323, %v322
      %v333 = vpack.c.b16 %v325, %v324
      %342 = vmatpush.bf16.msra.mxu0 %v333
      %343 = vmatpush.bf16.msra.mxu0 %v332
      %344 = vmatpush.bf16.msra.mxu0 %v331
      %345 = vmatpush.bf16.msra.mxu0 %v330
      %346 = vmatpush.bf16.msra.mxu0 %v329
      %347 = vmatpush.bf16.msra.mxu0 %v328
      %348 = vmatpush.bf16.msra.mxu0 %v327
      %349 = vmatpush.bf16.msra.mxu0 %v326
      %350 = vmatmul.bf16.gmra.mxu0 %v286
      %v351 = vpop.f32.mrf.mxu0
      %v352 = vadd.f32 0.0, %v351
      %v353 = vpop.f32.mrf.mxu0
      %v354 = vadd.f32 0.0, %v353
      %355 = vmatmul.bf16.gmra.mxu0 %v287
      %v356 = vpop.f32.mrf.mxu0
      %v357 = vadd.f32 0.0, %v356
      %v358 = vpop.f32.mrf.mxu0
      %v359 = vadd.f32 0.0, %v358
      %360 = vmatmul.bf16.gmra.mxu0 %v288
      %v361 = vpop.f32.mrf.mxu0
      %v362 = vadd.f32 0.0, %v361
      %v363 = vpop.f32.mrf.mxu0
      %v364 = vadd.f32 0.0, %v363
      %365 = vmatmul.bf16.gmra.mxu0 %v289
      %v366 = vpop.f32.mrf.mxu0
      %v367 = vadd.f32 0.0, %v366
      %v368 = vpop.f32.mrf.mxu0
      %v369 = vadd.f32 0.0, %v368
      %370 = vdwg.mxu0
      %v371 = vld [vmem:[%s2] sm:$0x1]
      %v373 = vperm.slane %v371, 0
      %v375 = vadd.f32 %v352, %v373
      %v376 = vadd.f32 %v354, %v373
      %v377 = vadd.f32 %v357, %v373
      %v378 = vadd.f32 %v359, %v373
      %v379 = vadd.f32 %v362, %v373
      %v380 = vadd.f32 %v364, %v373
      %v381 = vadd.f32 %v367, %v373
      %v382 = vadd.f32 %v369, %v373
      %v383 = vpack.c.bf16 %v375, %v375
      %v384 = vpack.c.bf16 %v376, %v376
      %v385 = vpack.c.bf16 %v377, %v377
      %v386 = vpack.c.bf16 %v378, %v378
      %v387 = vpack.c.bf16 %v379, %v379
      %v388 = vpack.c.bf16 %v380, %v380
      %v389 = vpack.c.bf16 %v381, %v381
      %v390 = vpack.c.bf16 %v382, %v382
      %391 = vst [vmem:[%s241] sm:$0xf] %v383
      %392 = vst [vmem:[%s241 + $0x4] sm:$0xf] %v384
      %393 = vst [vmem:[%s241 + $0x8] sm:$0xf] %v385
      %394 = vst [vmem:[%s241 + $0xc] sm:$0xf] %v386
      %395 = vst [vmem:[%s241 + $0x10] sm:$0xf] %v387
      %396 = vst [vmem:[%s241 + $0x14] sm:$0xf] %v388
      %397 = vst [vmem:[%s241 + $0x18] sm:$0xf] %v389
      %398 = vst [vmem:[%s241 + $0x1c] sm:$0xf] %v390
      %v399 = vadd.f32 %v352, %v354
      %v400 = vadd.f32 %v399, %v357
      %v401 = vadd.f32 %v400, %v359
      %v402 = vadd.f32 %v401, %v362
      %v403 = vadd.f32 %v402, %v364
      %v404 = vadd.f32 %v403, %v367
      %v405 = vadd.f32 %v404, %v369
      %v406 = vrot.slane %v405, 4
      %v407 = vadd.f32 %v405, %v406
      %v408 = vrot.slane %v407, 2
      %v409 = vadd.f32 %v407, %v408
      %v410 = vrot.slane %v409, 1
      %v411 = vadd.f32 %v409, %v410
      %p412 = scmp.eq.s32.totalorder %s21, 0
      // Predicated region
      $region33: #{_lambda_.8} parent=31 // pred_check
        %p413 = pneg %p412
      $region34: #{_lambda_.8} parent=31 // pred_check_branch
        %415 = sbr.rel (%p413) target = $region36
      $region35: #{_lambda_.8} parent=31 // pred_region
        %416 = vst [vmem:[%s245] sm:$0x1] %v411
      $region36: #{_lambda_.8} parent=31 // pred_fallthru
        _
      %p417 = scmp.gt.s32.totalorder %s21, 0
      // Predicated region
      $region37: #{_lambda_.8} parent=31 // pred_check
        %p418 = pneg %p417
      $region38: #{_lambda_.8} parent=31 // pred_check_branch
        %420 = sbr.rel (%p418) target = $region40
      $region39: #{_lambda_.8} parent=31 // pred_region
        %v421 = vld [vmem:[%s245] sm:$0x1]
        %v422 = vadd.f32 %v421, %v411
        %423 = vst [vmem:[%s245] sm:$0x1] %v422
      $region40: #{_lambda_.8} parent=31 // pred_fallthru
        _
      %s424 = smul.u32 8, %s21
      %p425 = scmp.lt.s32.totalorder %s20, 1
      %s426 = scalar_select %p425, %s20, 1
      %p427 = scmp.lt.s32.totalorder %s424, 7
      %s428 = scalar_select %p427, %s424, 7
      %s429 = smul.addr %s426, 8
      %s430 = sadd.s32 %s428, %s429
      %s431 = smul.addr %s430, 4
      %s432 = scalar_lea.vmem %s3, %s431
      %p433 = scmp.lt.s32.totalorder %s20, 1
      %s434 = scalar_select %p433, %s20, 1
      %s435 = scalar_lea.vmem %s4, %s434
      // Predicated region
      $region41: #{_lambda_.8} parent=31 // pred_check
        %p436 = pneg %p118
      $region42: #{_lambda_.8} parent=31 // pred_check_branch
        %438 = sbr.rel (%p436) target = $region44
      $region43: #{_lambda_.8} parent=31 // pred_region
        %s439 = smul.u32 8, %s21
      $region44: #{_lambda_.8} parent=31 // pred_fallthru
        _
      // Predicated region
      $region45: #{_lambda_.8} parent=31 // pred_check
        %p440 = pneg %p144
      $region46: #{_lambda_.8} parent=31 // pred_check_branch
        %442 = sbr.rel (%p440) target = $region48
      $region47: #{_lambda_.8} parent=31 // pred_region
        _
      $region48: #{_lambda_.8} parent=31 // pred_fallthru
        _
    $region32: #{_lambda_.8} parent=5 // pred_fallthru
      _
    %p443 = scmp.le.s32.totalorder 2, %s11
    // Predicated region
    $region49: #{_lambda_.8} parent=5 // pred_check
      %p444 = pneg %p443
    $region50: #{_lambda_.8} parent=5 // pred_check_branch
      %446 = sbr.rel (%p444) target = $region52
    $region51: #{_lambda_.8} parent=5 // pred_region
      %s447 = ssub.s32 %s11, 2
      // Predicated region
      $region53: #{_lambda_.8} parent=51 // pred_check
        %p448 = pneg %p124
      $region54: #{_lambda_.8} parent=51 // pred_check_branch
        %450 = sbr.rel (%p448) target = $region56
      $region55: #{_lambda_.8} parent=51 // pred_region
        %s451 = smul.u32 8, %s23
        %p452 = scmp.lt.s32.totalorder %s22, 1
        %s453 = scalar_select %p452, %s22, 1
        %p454 = scmp.lt.s32.totalorder %s451, 7
        %s455 = scalar_select %p454, %s451, 7
        %s456 = smul.addr %s453, 8
        %s457 = sadd.s32 %s455, %s456
        %s458 = smul.addr %s457, 4
        %s459 = scalar_lea.vmem %s3, %s458
      $region56: #{_lambda_.8} parent=51 // pred_fallthru
        _
      // Predicated region
      $region57: #{_lambda_.8} parent=51 // pred_check
        %p460 = pneg %p150
      $region58: #{_lambda_.8} parent=51 // pred_check_branch
        %462 = sbr.rel (%p460) target = $region60
      $region59: #{_lambda_.8} parent=51 // pred_region
        %p463 = scmp.lt.s32.totalorder %s22, 1
        %s464 = scalar_select %p463, %s22, 1
        %s465 = scalar_lea.vmem %s4, %s464
      $region60: #{_lambda_.8} parent=51 // pred_fallthru
        _
    $region52: #{_lambda_.8} parent=5 // pred_fallthru
      _
  $region6: #{_lambda_.8} parent=0 // loop_footer
    %s15 = sadd.s32 1, %s11
  $region7: #{_lambda_.8} parent=0 // loop_footer_branch
    %10 = sbr.rel target = $region3
  $region8: #{_lambda_.8} parent=0 // loop_exit
    _

// kernel: _lambda_.7
$region0: #{_lambda_.7}
  #allocation0 [shape = 'u32[]', space=smem, size = 0x4, offset = 0x4, fixed_abs, tag = 'smem constant byte address 0x4 - core index']
  #allocation1 [shape = 'u32[72,128]{1,0:T(1,128)}', space=vmem, size = 0x9000, scoped, tag = 'internal scratch']
  %s0 = inlined_call_operand.vmem [shape: bf16[2,1,2,2,98,64], index: 0, kind: input, shape index: {}]
  %s1 = inlined_call_operand.vmem [shape: bf16[1,576,128], index: 1, kind: input, shape index: {}]
  %s2 = inlined_call_operand.vmem [shape: f32[1,1,128], index: 2, kind: input, shape index: {}]
  %s3 = inlined_call_operand.vmem [shape: bf16[2,88,128], index: 3, kind: output, shape index: {}]
  %s4 = sld [smem:[#allocation0]]
  $region45: #{_lambda_.7} parent=0
    _
  %s6 = ssub.s32 1, %s4
  %s7 = scalar_select 0, %s6, %s4
  loop: start=0, step=1, limit=4
  $region2: #{_lambda_.7} parent=0 // loop_pre_header
    _
  $region3: #{_lambda_.7} parent=0 // loop_header
    %s9 = sphi 0, %s13
    %p10 = scmp.ge.s32.totalorder %s9, 4
    %s16 = sphi 0, %s35
    %s17 = sphi 0, %s31
    %s18 = sphi 0, %s27
    %s19 = sphi 0, %s16
    %s20 = sphi 0, %s17
    %s21 = sphi 0, %s18
    %s22 = sphi 0, %s19
    %s23 = sphi 0, %s20
    %s24 = sphi 0, %s21
    %s42 = sphi 0, %s44
    %s45 = sphi 0, %s42
    %s46 = sphi 0, %s45
    %s62 = sphi 0, %s46
    %s68 = sphi 0, %s70
    %s71 = sphi 0, %s68
    %s72 = sphi 0, %s71
    %s88 = sphi 0, %s72
    %s94 = sphi 0, %s96
    %s97 = sphi 0, %s94
    %s98 = sphi 0, %s97
    %s114 = sphi 0, %s98
    %s124 = sphi 0, %s126
    %s127 = sphi 0, %s124
    %s128 = sphi 0, %s127
    %s144 = sphi 0, %s128
  $region4: #{_lambda_.7} parent=0 // loop_header_branch
    %12 = sbr.rel (%p10) target = $region8
  $region5: #{_lambda_.7} parent=0 // loop_body
    %s14 = ssub.s32 %s9, 1
    %s15 = ssub.s32 %s9, 2
    %s25 = sadd.s32 1, %s18
    %p26 = scmp.ge.s32.totalorder %s25, 1
    %s27 = scalar_select %p26, 0, %s25
    %s28 = sadd.s32 1, %s17
    %s29 = scalar_select %p26, %s28, %s17
    %p30 = scmp.ge.s32.totalorder %s29, 2
    %s31 = scalar_select %p30, 0, %s29
    %s32 = sadd.s32 1, %s16
    %s33 = scalar_select %p30, %s32, %s16
    %p34 = scmp.ge.s32.totalorder %s33, 1
    %s35 = scalar_select %p34, 0, %s33
    %s36 = ssub.s32 %s17, %s31
    %s37 = ssub.s32 %s18, %s27
    %s38 = sor.u32 %s36, %s37
    %s39 = ssub.s32 %s16, %s35
    %s40 = sor.u32 %s38, %s39
    %p41 = scmp.eq.s32.totalorder %s40, 0
    %s43 = sadd.s32 %s42, 1
    %s44 = scalar_select %p41, %s42, %s43
    %p47 = pneg %p41
    %p48 = scmp.eq.s32.totalorder %s9, 1
    %p49 = por %p47, %p48
    %p50 = scmp.ne.s32.totalorder %s42, %s45
    %p51 = scmp.eq.s32.totalorder %s9, 0
    %p52 = por %p50, %p51
    %p53 = scmp.ne.s32.totalorder %s42, %s45
    %p54 = scmp.eq.s32.totalorder %s14, 1
    %p55 = por %p53, %p54
    %p56 = scmp.ne.s32.totalorder %s45, %s46
    %p57 = scmp.eq.s32.totalorder %s14, 0
    %p58 = por %p56, %p57
    %p59 = scmp.ne.s32.totalorder %s45, %s46
    %p60 = scmp.eq.s32.totalorder %s15, 1
    %p61 = por %p59, %p60
    %p63 = scmp.ne.s32.totalorder %s46, %s62
    %p64 = scmp.eq.s32.totalorder %s15, 0
    %p65 = por %p63, %p64
    %s66 = ssub.s32 %s16, %s35
    %p67 = scmp.eq.s32.totalorder %s66, 0
    %s69 = sadd.s32 %s68, 1
    %s70 = scalar_select %p67, %s68, %s69
    %p73 = pneg %p67
    %p74 = scmp.eq.s32.totalorder %s9, 1
    %p75 = por %p73, %p74
    %p76 = scmp.ne.s32.totalorder %s68, %s71
    %p77 = scmp.eq.s32.totalorder %s9, 0
    %p78 = por %p76, %p77
    %p79 = scmp.ne.s32.totalorder %s68, %s71
    %p80 = scmp.eq.s32.totalorder %s14, 1
    %p81 = por %p79, %p80
    %p82 = scmp.ne.s32.totalorder %s71, %s72
    %p83 = scmp.eq.s32.totalorder %s14, 0
    %p84 = por %p82, %p83
    %p85 = scmp.ne.s32.totalorder %s71, %s72
    %p86 = scmp.eq.s32.totalorder %s15, 1
    %p87 = por %p85, %p86
    %p89 = scmp.ne.s32.totalorder %s72, %s88
    %p90 = scmp.eq.s32.totalorder %s15, 0
    %p91 = por %p89, %p90
    %s92 = ssub.s32 %s16, %s35
    %p93 = scmp.eq.s32.totalorder %s92, 0
    %s95 = sadd.s32 %s94, 1
    %s96 = scalar_select %p93, %s94, %s95
    %p99 = pneg %p93
    %p100 = scmp.eq.s32.totalorder %s9, 1
    %p101 = por %p99, %p100
    %p102 = scmp.ne.s32.totalorder %s94, %s97
    %p103 = scmp.eq.s32.totalorder %s9, 0
    %p104 = por %p102, %p103
    %p105 = scmp.ne.s32.totalorder %s94, %s97
    %p106 = scmp.eq.s32.totalorder %s14, 1
    %p107 = por %p105, %p106
    %p108 = scmp.ne.s32.totalorder %s97, %s98
    %p109 = scmp.eq.s32.totalorder %s14, 0
    %p110 = por %p108, %p109
    %p111 = scmp.ne.s32.totalorder %s97, %s98
    %p112 = scmp.eq.s32.totalorder %s15, 1
    %p113 = por %p111, %p112
    %p115 = scmp.ne.s32.totalorder %s98, %s114
    %p116 = scmp.eq.s32.totalorder %s15, 0
    %p117 = por %p115, %p116
    %s118 = ssub.s32 %s17, %s31
    %s119 = ssub.s32 %s18, %s27
    %s120 = sor.u32 %s118, %s119
    %s121 = ssub.s32 %s16, %s35
    %s122 = sor.u32 %s120, %s121
    %p123 = scmp.eq.s32.totalorder %s122, 0
    %s125 = sadd.s32 %s124, 1
    %s126 = scalar_select %p123, %s124, %s125
    %p129 = pneg %p123
    %p130 = scmp.eq.s32.totalorder %s9, 1
    %p131 = por %p129, %p130
    %p132 = scmp.ne.s32.totalorder %s124, %s127
    %p133 = scmp.eq.s32.totalorder %s9, 0
    %p134 = por %p132, %p133
    %p135 = scmp.ne.s32.totalorder %s124, %s127
    %p136 = scmp.eq.s32.totalorder %s14, 1
    %p137 = por %p135, %p136
    %p138 = scmp.ne.s32.totalorder %s127, %s128
    %p139 = scmp.eq.s32.totalorder %s14, 0
    %p140 = por %p138, %p139
    %p141 = scmp.ne.s32.totalorder %s127, %s128
    %p142 = scmp.eq.s32.totalorder %s15, 1
    %p143 = por %p141, %p142
    %p145 = scmp.ne.s32.totalorder %s128, %s144
    %p146 = scmp.eq.s32.totalorder %s15, 0
    %p147 = por %p145, %p146
    %p148 = scmp.le.s32.totalorder 1, %s9
    %p149 = scmp.lt.s32.totalorder %s9, 3
    %p150 = pnand %p148, %p149
    %p151 = pneg %p150
    // Predicated region
    $region9: #{_lambda_.7} parent=5 // pred_check
      _
    $region10: #{_lambda_.7} parent=5 // pred_check_branch
      %153 = sbr.rel (%p150) target = $region12
    $region11: #{_lambda_.7} parent=5 // pred_region
      %s154 = ssub.s32 %s9, 1
      // Predicated region
      $region13: #{_lambda_.7} parent=11 // pred_check
        %p155 = pneg %p84
      $region14: #{_lambda_.7} parent=11 // pred_check_branch
        %157 = sbr.rel (%p155) target = $region16
      $region15: #{_lambda_.7} parent=11 // pred_region
        %p158 = scmp.lt.s32.totalorder %s19, 0
        %s159 = scalar_select %p158, %s19, 0
        %s160 = smul.addr %s159, 72
        %s161 = smul.addr %s160, 4
        %s162 = scalar_lea.vmem %s1, %s161
      $region16: #{_lambda_.7} parent=11 // pred_fallthru
        _
      // Predicated region
      $region17: #{_lambda_.7} parent=11 // pred_check
        %p163 = pneg %p110
      $region18: #{_lambda_.7} parent=11 // pred_check_branch
        %165 = sbr.rel (%p163) target = $region20
      $region19: #{_lambda_.7} parent=11 // pred_region
        %p166 = scmp.lt.s32.totalorder %s19, 0
        %s167 = scalar_select %p166, %s19, 0
        %s168 = scalar_lea.vmem %s2, %s167
      $region20: #{_lambda_.7} parent=11 // pred_fallthru
        _
    $region12: #{_lambda_.7} parent=5 // pred_fallthru
      _
    %p169 = scmp.lt.s32.totalorder %s9, 2
    // Predicated region
    $region21: #{_lambda_.7} parent=5 // pred_check
      %p170 = pneg %p169
    $region22: #{_lambda_.7} parent=5 // pred_check_branch
      %172 = sbr.rel (%p170) target = $region24
    $region23: #{_lambda_.7} parent=5 // pred_region
      // Predicated region
      $region25: #{_lambda_.7} parent=23 // pred_check
        %p173 = pneg %p52
      $region26: #{_lambda_.7} parent=23 // pred_check_branch
        %175 = sbr.rel (%p173) target = $region28
      $region27: #{_lambda_.7} parent=23 // pred_region
        %p176 = scmp.lt.s32.totalorder %s17, 1
        %s177 = scalar_select %p176, %s17, 1
        %p178 = scmp.lt.s32.totalorder %s18, 0
        %s179 = scalar_select %p178, %s18, 0
        %p180 = scmp.lt.s32.totalorder %s16, 0
        %s181 = scalar_select %p180, %s16, 0
        %s182 = smul.addr %s179, 52
        %s183 = sadd.s32 %s181, %s182
        %s184 = smul.addr %s177, 52
        %s185 = sadd.s32 %s183, %s184
        %s186 = smul.addr %s185, 4
        %s187 = scalar_lea.vmem %s0, %s186
      $region28: #{_lambda_.7} parent=23 // pred_fallthru
        _
    $region24: #{_lambda_.7} parent=5 // pred_fallthru
      _
    %p188 = scmp.le.s32.totalorder 1, %s9
    %p189 = scmp.lt.s32.totalorder %s9, 3
    %p190 = pnand %p188, %p189
    %p191 = pneg %p190
    // Predicated region
    $region29: #{_lambda_.7} parent=5 // pred_check
      _
    $region30: #{_lambda_.7} parent=5 // pred_check_branch
      %193 = sbr.rel (%p190) target = $region32
    $region31: #{_lambda_.7} parent=5 // pred_region
      %s194 = ssub.s32 %s9, 1
      %p195 = scmp.lt.s32.totalorder %s20, 1
      %s196 = scalar_select %p195, %s20, 1
      %p197 = scmp.lt.s32.totalorder %s21, 0
      %s198 = scalar_select %p197, %s21, 0
      %p199 = scmp.lt.s32.totalorder %s19, 0
      %s200 = scalar_select %p199, %s19, 0
      %s201 = smul.addr %s198, 52
      %s202 = sadd.s32 %s200, %s201
      %s203 = smul.addr %s196, 52
      %s204 = sadd.s32 %s202, %s203
      %s205 = smul.addr %s204, 4
      %s206 = scalar_lea.vmem %s0, %s205
      %p207 = pneg %p58
      %p208 = pneg %p55
      %p209 = scmp.lt.s32.totalorder %s19, 0
      %s210 = scalar_select %p209, %s19, 0
      %s211 = smul.addr %s210, 72
      %s212 = smul.addr %s211, 4
      %s213 = scalar_lea.vmem %s1, %s212
      %p214 = pneg %p84
      %p215 = pneg %p81
      %p216 = scmp.lt.s32.totalorder %s19, 0
      %s217 = scalar_select %p216, %s19, 0
      %s218 = scalar_lea.vmem %s2, %s217
      %p219 = pneg %p110
      %p220 = pneg %p107
      %p221 = pneg %p140
      %p222 = pneg %p137
      %s223 = smul.u32 11, %s21
      %p224 = scmp.lt.s32.totalorder %s20, 1
      %s225 = scalar_select %p224, %s20, 1
      %p226 = scmp.lt.s32.totalorder %s223, 10
      %s227 = scalar_select %p226, %s223, 10
      %p228 = scmp.lt.s32.totalorder %s19, 0
      %s229 = scalar_select %p228, %s19, 0
      %s230 = sadd.s32 %s229, %s227
      %s231 = smul.addr %s225, 11
      %s232 = sadd.s32 %s230, %s231
      %s233 = smul.addr %s232, 4
      %s234 = scalar_lea.vmem %s3, %s233
      %p235 = scmp.lt.s32.totalorder %s20, 1
      %s236 = scalar_select %p235, %s20, 1
      %p237 = scmp.lt.s32.totalorder %s21, 0
      %s238 = scalar_select %p237, %s21, 0
      %p239 = scmp.lt.s32.totalorder %s19, 0
      %s240 = scalar_select %p239, %s19, 0
      %s241 = smul.addr %s238, 52
      %s242 = sadd.s32 %s240, %s241
      %s243 = smul.addr %s236, 52
      %s244 = sadd.s32 %s242, %s243
      %s245 = smul.addr %s244, 4
      %s246 = scalar_lea.vmem %s0, %s245
      %p247 = scmp.lt.s32.totalorder %s19, 0
      %s248 = scalar_select %p247, %s19, 0
      %s249 = smul.addr %s248, 72
      %s250 = smul.addr %s249, 4
      %s251 = scalar_lea.vmem %s1, %s250
      %p252 = scmp.lt.s32.totalorder %s19, 0
      %s253 = scalar_select %p252, %s19, 0
      %s254 = scalar_lea.vmem %s2, %s253
      %s255 = smul.u32 11, %s21
      %p256 = scmp.lt.s32.totalorder %s20, 1
      %s257 = scalar_select %p256, %s20, 1
      %p258 = scmp.lt.s32.totalorder %s255, 10
      %s259 = scalar_select %p258, %s255, 10
      %p260 = scmp.lt.s32.totalorder %s19, 0
      %s261 = scalar_select %p260, %s19, 0
      %s262 = sadd.s32 %s261, %s259
      %s263 = smul.addr %s257, 11
      %s264 = sadd.s32 %s262, %s263
      %s265 = smul.addr %s264, 4
      %s266 = scalar_lea.vmem %s3, %s265
      %s267 = smul.u32 11, %s21
      %v269 = vld [vmem:[%s246] sm:$0xf]
      %v270 = vld [vmem:[%s246 + $0x4] sm:$0xf]
      %v271 = vld [vmem:[%s246 + $0x8] sm:$0xf]
      %v272 = vld [vmem:[%s246 + $0xc] sm:$0xf]
      %v273 = vld [vmem:[%s246 + $0x10] sm:$0xf]
      %v274 = vld [vmem:[%s246 + $0x14] sm:$0xf]
      %v275 = vld [vmem:[%s246 + $0x18] sm:$0xf]
      %v276 = vld [vmem:[%s246 + $0x1c] sm:$0xf]
      %v277 = vld [vmem:[%s246 + $0x20] sm:$0xf]
      %v278 = vld [vmem:[%s246 + $0x24] sm:$0xf]
      %v279 = vld [vmem:[%s246 + $0x28] sm:$0xf]
      %s280 = scalar_lea.vmem %s246, 52
      %v281 = vld [vmem:[%s280] sm:$0xf]
      %v282 = vld [vmem:[%s280 + $0x4] sm:$0xf]
      %v283 = vld [vmem:[%s280 + $0x8] sm:$0xf]
      %v284 = vld [vmem:[%s280 + $0xc] sm:$0xf]
      %v285 = vld [vmem:[%s280 + $0x10] sm:$0xf]
      %v286 = vld [vmem:[%s280 + $0x14] sm:$0xf]
      %v287 = vld [vmem:[%s280 + $0x18] sm:$0xf]
      %v288 = vld [vmem:[%s280 + $0x1c] sm:$0xf]
      %v289 = vld [vmem:[%s280 + $0x20] sm:$0xf]
      %v290 = vld [vmem:[%s280 + $0x24] sm:$0xf]
      %v291 = vld [vmem:[%s280 + $0x28] sm:$0xf]
      %v292 = vld [vmem:[%s246 + $0x2c] sm:$0x1]
      %s293 = scalar_lea.vmem %s246, 104
      %v294 = vld [vmem:[%s293] sm:$0xf]
      %v295 = vld [vmem:[%s293 + $0x4] sm:$0xf]
      %v296 = vld [vmem:[%s293 + $0x8] sm:$0xf]
      %v297 = vld [vmem:[%s293 + $0xc] sm:$0xf]
      %v298 = vld [vmem:[%s293 + $0x10] sm:$0xf]
      %v299 = vld [vmem:[%s293 + $0x14] sm:$0xf]
      %v300 = vld [vmem:[%s293 + $0x18] sm:$0xf]
      %v301 = vld [vmem:[%s293 + $0x1c] sm:$0xf]
      %v302 = vld [vmem:[%s293 + $0x20] sm:$0xf]
      %v303 = vld [vmem:[%s293 + $0x24] sm:$0xf]
      %v304 = vld [vmem:[%s293 + $0x28] sm:$0xf]
      %s305 = scalar_lea.vmem %s246, 156
      %v306 = vld [vmem:[%s305] sm:$0xf]
      %v307 = vld [vmem:[%s305 + $0x4] sm:$0xf]
      %v308 = vld [vmem:[%s305 + $0x8] sm:$0xf]
      %v309 = vld [vmem:[%s305 + $0xc] sm:$0xf]
      %v310 = vld [vmem:[%s305 + $0x10] sm:$0xf]
      %v311 = vld [vmem:[%s305 + $0x14] sm:$0xf]
      %v312 = vld [vmem:[%s305 + $0x18] sm:$0xf]
      %v313 = vld [vmem:[%s305 + $0x1c] sm:$0xf]
      %v314 = vld [vmem:[%s305 + $0x20] sm:$0xf]
      %v315 = vld [vmem:[%s305 + $0x24] sm:$0xf]
      %v316 = vld [vmem:[%s305 + $0x28] sm:$0xf]
      %v317 = vld [vmem:[%s293 + $0x2c] sm:$0x1]
      %v318 = vld [vmem:[%s246 + $0x2c] sm:$0xf]
      %v319 = vld [vmem:[%s246 + $0x30] sm:$0x1]
      %v320 = vld [vmem:[%s280 + $0x2c] sm:$0xf]
      %v321 = vld [vmem:[%s280 + $0x30] sm:$0x1]
      %v322 = vld [vmem:[%s246 + $0x4] sm:$0xe]
      %v334 = vunpack.c.l.b16 %v269
      %v335 = vunpack.c.l.b16 %v270
      %v336 = vunpack.c.l.b16 %v271
      %v337 = vunpack.c.l.b16 %v272
      %v338 = vunpack.c.l.b16 %v273
      %v339 = vunpack.c.l.b16 %v274
      %v340 = vunpack.c.l.b16 %v275
      %v341 = vunpack.c.l.b16 %v276
      %v342 = vunpack.c.l.b16 %v277
      %v343 = vunpack.c.l.b16 %v278
      %v344 = vunpack.c.l.b16 %v279
      %v345 = vpack.c.b16 %v335, %v334
      %v346 = vpack.c.b16 %v337, %v336
      %v347 = vpack.c.b16 %v339, %v338
      %v348 = vpack.c.b16 %v341, %v340
      %v349 = vpack.c.b16 %v343, %v342
      %v350 = vpack.c.b16 %v344, %v344
      %v362 = vunpack.c.l.b16 %v281
      %v363 = vunpack.c.l.b16 %v282
      %v364 = vunpack.c.l.b16 %v283
      %v365 = vunpack.c.l.b16 %v284
      %v366 = vunpack.c.l.b16 %v285
      %v367 = vunpack.c.l.b16 %v286
      %v368 = vunpack.c.l.b16 %v287
      %v369 = vunpack.c.l.b16 %v288
      %v370 = vunpack.c.l.b16 %v289
      %v371 = vunpack.c.l.b16 %v290
      %v372 = vunpack.c.l.b16 %v291
      %v373 = vpack.c.b16 %v363, %v362
      %v374 = vpack.c.b16 %v365, %v364
      %v375 = vpack.c.b16 %v367, %v366
      %v376 = vpack.c.b16 %v369, %v368
      %v377 = vpack.c.b16 %v371, %v370
      %v378 = vpack.c.b16 %v372, %v372
      %379 = vrot.lane.b32.xlu0 %v373, 64
      %v380 = vpop.permute.xlu0 %379
      %381 = vrot.lane.b32.xlu0 %v374, 64
      %v382 = vpop.permute.xlu0 %381
      %383 = vrot.lane.b32.xlu0 %v375, 64
      %v384 = vpop.permute.xlu0 %383
      %385 = vrot.lane.b32.xlu0 %v376, 64
      %v386 = vpop.permute.xlu0 %385
      %387 = vrot.lane.b32.xlu0 %v377, 64
      %v388 = vpop.permute.xlu0 %387
      %389 = vrot.lane.b32.xlu0 %v378, 64
      %v390 = vpop.permute.xlu0 %389
      %v392 = vunpack.c.l.b16 %v292
      %v393 = vpack.c.b16 %v392, %v344
      %vm394 = vsmask.f32 7424
      %v396 = vshrl.u32 %v345, 16
      %v398 = vshll.u32 %v345, 16
      %v400 = vrot.slane %v398, 1
      %v401 = vor.u32 %v396, %v400
      %v403 = vshll.u32 %v346, 16
      %v405 = vrot.slane %v403, 1
      %v406 = vsel %vm394, %v401, %v405
      %v407 = vshrl.u32 %v346, 16
      %v409 = vor.u32 %v407, %v405
      %v411 = vshll.u32 %v347, 16
      %v413 = vrot.slane %v411, 1
      %v414 = vsel %vm394, %v409, %v413
      %v415 = vshrl.u32 %v347, 16
      %v417 = vor.u32 %v415, %v413
      %v419 = vshll.u32 %v348, 16
      %v421 = vrot.slane %v419, 1
      %v422 = vsel %vm394, %v417, %v421
      %v423 = vshrl.u32 %v348, 16
      %v425 = vor.u32 %v423, %v421
      %v427 = vshll.u32 %v349, 16
      %v429 = vrot.slane %v427, 1
      %v430 = vsel %vm394, %v425, %v429
      %v431 = vshrl.u32 %v349, 16
      %v433 = vor.u32 %v431, %v429
      %v435 = vshll.u32 %v393, 16
      %v437 = vrot.slane %v435, 1
      %v438 = vsel %vm394, %v433, %v437
      %v439 = vshrl.u32 %v393, 16
      %v441 = vor.u32 %v439, %v437
      %v453 = vunpack.c.l.b16 %v294
      %v454 = vunpack.c.l.b16 %v295
      %v455 = vunpack.c.l.b16 %v296
      %v456 = vunpack.c.l.b16 %v297
      %v457 = vunpack.c.l.b16 %v298
      %v458 = vunpack.c.l.b16 %v299
      %v459 = vunpack.c.l.b16 %v300
      %v460 = vunpack.c.l.b16 %v301
      %v461 = vunpack.c.l.b16 %v302
      %v462 = vunpack.c.l.b16 %v303
      %v463 = vunpack.c.l.b16 %v304
      %v464 = vpack.c.b16 %v454, %v453
      %v465 = vpack.c.b16 %v456, %v455
      %v466 = vpack.c.b16 %v458, %v457
      %v467 = vpack.c.b16 %v460, %v459
      %v468 = vpack.c.b16 %v462, %v461
      %v469 = vpack.c.b16 %v463, %v463
      %470 = vrot.lane.b32.xlu0 %v464, 64
      %v471 = vpop.permute.xlu0 %470
      %472 = vrot.lane.b32.xlu0 %v465, 64
      %v473 = vpop.permute.xlu0 %472
      %474 = vrot.lane.b32.xlu0 %v466, 64
      %v475 = vpop.permute.xlu0 %474
      %476 = vrot.lane.b32.xlu0 %v467, 64
      %v477 = vpop.permute.xlu0 %476
      %478 = vrot.lane.b32.xlu0 %v468, 64
      %v479 = vpop.permute.xlu0 %478
      %480 = vrot.lane.b32.xlu0 %v469, 64
      %v481 = vpop.permute.xlu0 %480
      %v493 = vunpack.c.l.b16 %v306
      %v494 = vunpack.c.l.b16 %v307
      %v495 = vunpack.c.l.b16 %v308
      %v496 = vunpack.c.l.b16 %v309
      %v497 = vunpack.c.l.b16 %v310
      %v498 = vunpack.c.l.b16 %v311
      %v499 = vunpack.c.l.b16 %v312
      %v500 = vunpack.c.l.b16 %v313
      %v501 = vunpack.c.l.b16 %v314
      %v502 = vunpack.c.l.b16 %v315
      %v503 = vunpack.c.l.b16 %v316
      %v504 = vpack.c.b16 %v494, %v493
      %v505 = vpack.c.b16 %v496, %v495
      %v506 = vpack.c.b16 %v498, %v497
      %v507 = vpack.c.b16 %v500, %v499
      %v508 = vpack.c.b16 %v502, %v501
      %v509 = vpack.c.b16 %v503, %v503
      %v511 = vunpack.c.l.b16 %v317
      %v512 = vpack.c.b16 %v511, %v463
      %v514 = vshrl.u32 %v464, 16
      %v516 = vshll.u32 %v464, 16
      %v518 = vrot.slane %v516, 1
      %v519 = vor.u32 %v514, %v518
      %v521 = vshll.u32 %v465, 16
      %v523 = vrot.slane %v521, 1
      %v524 = vsel %vm394, %v519, %v523
      %v525 = vshrl.u32 %v465, 16
      %v527 = vor.u32 %v525, %v523
      %v529 = vshll.u32 %v466, 16
      %v531 = vrot.slane %v529, 1
      %v532 = vsel %vm394, %v527, %v531
      %v533 = vshrl.u32 %v466, 16
      %v535 = vor.u32 %v533, %v531
      %v537 = vshll.u32 %v467, 16
      %v539 = vrot.slane %v537, 1
      %v540 = vsel %vm394, %v535, %v539
      %v541 = vshrl.u32 %v467, 16
      %v543 = vor.u32 %v541, %v539
      %v545 = vshll.u32 %v468, 16
      %v547 = vrot.slane %v545, 1
      %v548 = vsel %vm394, %v543, %v547
      %v549 = vshrl.u32 %v468, 16
      %v551 = vor.u32 %v549, %v547
      %v553 = vshll.u32 %v512, 16
      %v555 = vrot.slane %v553, 1
      %v556 = vsel %vm394, %v551, %v555
      %v557 = vshrl.u32 %v512, 16
      %v559 = vor.u32 %v557, %v555
      %560 = vrot.lane.b32.xlu0 %v524, 64
      %v561 = vpop.permute.xlu0 %560
      %562 = vrot.lane.b32.xlu0 %v532, 64
      %v563 = vpop.permute.xlu0 %562
      %564 = vrot.lane.b32.xlu0 %v540, 64
      %v565 = vpop.permute.xlu0 %564
      %566 = vrot.lane.b32.xlu0 %v548, 64
      %v567 = vpop.permute.xlu0 %566
      %568 = vrot.lane.b32.xlu0 %v556, 64
      %v569 = vpop.permute.xlu0 %568
      %570 = vrot.lane.b32.xlu0 %v559, 64
      %v571 = vpop.permute.xlu0 %570
      %v574 = vunpack.c.l.b16 %v318
      %v575 = vunpack.c.l.b16 %v319
      %v576 = vpack.c.b16 %v336, %v335
      %v577 = vpack.c.b16 %v338, %v337
      %v578 = vpack.c.b16 %v340, %v339
      %v579 = vpack.c.b16 %v342, %v341
      %v580 = vpack.c.b16 %v344, %v343
      %v581 = vpack.c.b16 %v575, %v574
      %v583 = vshrl.u32 %v576, 16
      %v585 = vshll.u32 %v576, 16
      %v587 = vrot.slane %v585, 1
      %v588 = vor.u32 %v583, %v587
      %v590 = vshll.u32 %v577, 16
      %v592 = vrot.slane %v590, 1
      %v593 = vsel %vm394, %v588, %v592
      %v594 = vshrl.u32 %v577, 16
      %v596 = vor.u32 %v594, %v592
      %v598 = vshll.u32 %v578, 16
      %v600 = vrot.slane %v598, 1
      %v601 = vsel %vm394, %v596, %v600
      %v602 = vshrl.u32 %v578, 16
      %v604 = vor.u32 %v602, %v600
      %v606 = vshll.u32 %v579, 16
      %v608 = vrot.slane %v606, 1
      %v609 = vsel %vm394, %v604, %v608
      %v610 = vshrl.u32 %v579, 16
      %v612 = vor.u32 %v610, %v608
      %v614 = vshll.u32 %v580, 16
      %v616 = vrot.slane %v614, 1
      %v617 = vsel %vm394, %v612, %v616
      %v618 = vshrl.u32 %v580, 16
      %v620 = vor.u32 %v618, %v616
      %v622 = vshll.u32 %v581, 16
      %v624 = vrot.slane %v622, 1
      %v625 = vsel %vm394, %v620, %v624
      %v626 = vshrl.u32 %v581, 16
      %v628 = vor.u32 %v626, %v624
      %v631 = vunpack.c.l.b16 %v320
      %v632 = vunpack.c.l.b16 %v321
      %v633 = vpack.c.b16 %v364, %v363
      %v634 = vpack.c.b16 %v366, %v365
      %v635 = vpack.c.b16 %v368, %v367
      %v636 = vpack.c.b16 %v370, %v369
      %v637 = vpack.c.b16 %v372, %v371
      %v638 = vpack.c.b16 %v632, %v631
      %v640 = vshrl.u32 %v633, 16
      %v642 = vshll.u32 %v633, 16
      %v644 = vrot.slane %v642, 1
      %v645 = vor.u32 %v640, %v644
      %v647 = vshll.u32 %v634, 16
      %v649 = vrot.slane %v647, 1
      %v650 = vsel %vm394, %v645, %v649
      %v651 = vshrl.u32 %v634, 16
      %v653 = vor.u32 %v651, %v649
      %v655 = vshll.u32 %v635, 16
      %v657 = vrot.slane %v655, 1
      %v658 = vsel %vm394, %v653, %v657
      %v659 = vshrl.u32 %v635, 16
      %v661 = vor.u32 %v659, %v657
      %v663 = vshll.u32 %v636, 16
      %v665 = vrot.slane %v663, 1
      %v666 = vsel %vm394, %v661, %v665
      %v667 = vshrl.u32 %v636, 16
      %v669 = vor.u32 %v667, %v665
      %v671 = vshll.u32 %v637, 16
      %v673 = vrot.slane %v671, 1
      %v674 = vsel %vm394, %v669, %v673
      %v675 = vshrl.u32 %v637, 16
      %v677 = vor.u32 %v675, %v673
      %v679 = vshll.u32 %v638, 16
      %v681 = vrot.slane %v679, 1
      %v682 = vsel %vm394, %v677, %v681
      %v683 = vshrl.u32 %v638, 16
      %v685 = vor.u32 %v683, %v681
      %686 = vrot.lane.b32.xlu0 %v650, 64
      %v687 = vpop.permute.xlu0 %686
      %688 = vrot.lane.b32.xlu0 %v658, 64
      %v689 = vpop.permute.xlu0 %688
      %690 = vrot.lane.b32.xlu0 %v666, 64
      %v691 = vpop.permute.xlu0 %690
      %692 = vrot.lane.b32.xlu0 %v674, 64
      %v693 = vpop.permute.xlu0 %692
      %694 = vrot.lane.b32.xlu0 %v682, 64
      %v695 = vpop.permute.xlu0 %694
      %696 = vrot.lane.b32.xlu0 %v685, 64
      %v697 = vpop.permute.xlu0 %696
      %v699 = vunpack.c.l.b16 %v322
      %v700 = vpack.c.b16 %v336, %v699
      %vm701 = vcmask 1046528
      %v702 = vrot.slane %v700, 1
      %v703 = vrot.slane %v577, 1
      %v704 = vsel %vm701, %v702, %v703
      %v705 = vrot.slane %v578, 1
      %v706 = vsel %vm701, %v703, %v705
      %v707 = vrot.slane %v579, 1
      %v708 = vsel %vm701, %v705, %v707
      %v709 = vrot.slane %v580, 1
      %v710 = vsel %vm701, %v707, %v709
      %v711 = vrot.slane %v581, 1
      %v712 = vsel %vm701, %v709, %v711
      %vm713 = vcmask 523264
      %v715 = vsel %vm713, %v345, %v380
      %v718 = vsel %vm713, %v346, %v382
      %v721 = vsel %vm713, %v347, %v384
      %v724 = vsel %vm713, %v348, %v386
      %v727 = vsel %vm713, %v349, %v388
      %v731 = vsel %vm713, %v350, %v390
      %v735 = vsel %vm713, %v406, %v471
      %v739 = vsel %vm713, %v414, %v473
      %v743 = vsel %vm713, %v422, %v475
      %v747 = vsel %vm713, %v430, %v477
      %v751 = vsel %vm713, %v438, %v479
      %v755 = vsel %vm713, %v441, %v481
      %v759 = vsel %vm713, %v504, %v561
      %v763 = vsel %vm713, %v505, %v563
      %v767 = vsel %vm713, %v506, %v565
      %v771 = vsel %vm713, %v507, %v567
      %v775 = vsel %vm713, %v508, %v569
      %v779 = vsel %vm713, %v509, %v571
      %v783 = vsel %vm713, %v593, %v687
      %v787 = vsel %vm713, %v601, %v689
      %v791 = vsel %vm713, %v609, %v691
      %v795 = vsel %vm713, %v617, %v693
      %v799 = vsel %vm713, %v625, %v695
      %v803 = vsel %vm713, %v628, %v697
      %v805 = vld [vmem:[%s251] sm:$0xf]
      %v806 = vld [vmem:[%s251 + $0x4] sm:$0xf]
      %v807 = vld [vmem:[%s251 + $0x8] sm:$0xf]
      %v808 = vld [vmem:[%s251 + $0xc] sm:$0xf]
      %v809 = vld [vmem:[%s251 + $0x10] sm:$0xf]
      %v810 = vld [vmem:[%s251 + $0x14] sm:$0xf]
      %v811 = vld [vmem:[%s251 + $0x18] sm:$0xf]
      %v812 = vld [vmem:[%s251 + $0x1c] sm:$0xf]
      %v813 = vld [vmem:[%s251 + $0x20] sm:$0xf]
      %v814 = vld [vmem:[%s251 + $0x24] sm:$0xf]
      %v815 = vld [vmem:[%s251 + $0x28] sm:$0xf]
      %v816 = vld [vmem:[%s251 + $0x2c] sm:$0xf]
      %v817 = vld [vmem:[%s251 + $0x30] sm:$0xf]
      %v818 = vld [vmem:[%s251 + $0x34] sm:$0xf]
      %v819 = vld [vmem:[%s251 + $0x38] sm:$0xf]
      %v820 = vld [vmem:[%s251 + $0x3c] sm:$0xf]
      %v821 = vld [vmem:[%s251 + $0x40] sm:$0xf]
      %v822 = vld [vmem:[%s251 + $0x44] sm:$0xf]
      %v823 = vld [vmem:[%s251 + $0x48] sm:$0xf]
      %v824 = vld [vmem:[%s251 + $0x4c] sm:$0xf]
      %v825 = vld [vmem:[%s251 + $0x50] sm:$0xf]
      %v826 = vld [vmem:[%s251 + $0x54] sm:$0xf]
      %v827 = vld [vmem:[%s251 + $0x58] sm:$0xf]
      %v828 = vld [vmem:[%s251 + $0x5c] sm:$0xf]
      %v829 = vld [vmem:[%s251 + $0x60] sm:$0xf]
      %v830 = vld [vmem:[%s251 + $0x64] sm:$0xf]
      %v831 = vld [vmem:[%s251 + $0x68] sm:$0xf]
      %v832 = vld [vmem:[%s251 + $0x6c] sm:$0xf]
      %v833 = vld [vmem:[%s251 + $0x70] sm:$0xf]
      %v834 = vld [vmem:[%s251 + $0x74] sm:$0xf]
      %v835 = vld [vmem:[%s251 + $0x78] sm:$0xf]
      %v836 = vld [vmem:[%s251 + $0x7c] sm:$0xf]
      %v837 = vld [vmem:[%s251 + $0x80] sm:$0xf]
      %v838 = vld [vmem:[%s251 + $0x84] sm:$0xf]
      %v839 = vld [vmem:[%s251 + $0x88] sm:$0xf]
      %v840 = vld [vmem:[%s251 + $0x8c] sm:$0xf]
      %v841 = vld [vmem:[%s251 + $0x90] sm:$0xf]
      %v842 = vld [vmem:[%s251 + $0x94] sm:$0xf]
      %v843 = vld [vmem:[%s251 + $0x98] sm:$0xf]
      %v844 = vld [vmem:[%s251 + $0x9c] sm:$0xf]
      %v845 = vld [vmem:[%s251 + $0xa0] sm:$0xf]
      %v846 = vld [vmem:[%s251 + $0xa4] sm:$0xf]
      %v847 = vld [vmem:[%s251 + $0xa8] sm:$0xf]
      %v848 = vld [vmem:[%s251 + $0xac] sm:$0xf]
      %v849 = vld [vmem:[%s251 + $0xb0] sm:$0xf]
      %v850 = vld [vmem:[%s251 + $0xb4] sm:$0xf]
      %v851 = vld [vmem:[%s251 + $0xb8] sm:$0xf]
      %v852 = vld [vmem:[%s251 + $0xbc] sm:$0xf]
      %v853 = vld [vmem:[%s251 + $0xc0] sm:$0xf]
      %v854 = vld [vmem:[%s251 + $0xc4] sm:$0xf]
      %v855 = vld [vmem:[%s251 + $0xc8] sm:$0xf]
      %v856 = vld [vmem:[%s251 + $0xcc] sm:$0xf]
      %v857 = vld [vmem:[%s251 + $0xd0] sm:$0xf]
      %v858 = vld [vmem:[%s251 + $0xd4] sm:$0xf]
      %v859 = vld [vmem:[%s251 + $0xd8] sm:$0xf]
      %v860 = vld [vmem:[%s251 + $0xdc] sm:$0xf]
      %v861 = vld [vmem:[%s251 + $0xe0] sm:$0xf]
      %v862 = vld [vmem:[%s251 + $0xe4] sm:$0xf]
      %v863 = vld [vmem:[%s251 + $0xe8] sm:$0xf]
      %v864 = vld [vmem:[%s251 + $0xec] sm:$0xf]
      %v865 = vld [vmem:[%s251 + $0xf0] sm:$0xf]
      %v866 = vld [vmem:[%s251 + $0xf4] sm:$0xf]
      %v867 = vld [vmem:[%s251 + $0xf8] sm:$0xf]
      %v868 = vld [vmem:[%s251 + $0xfc] sm:$0xf]
      %v869 = vld [vmem:[%s251 + $0x100] sm:$0xf]
      %v870 = vld [vmem:[%s251 + $0x104] sm:$0xf]
      %v871 = vld [vmem:[%s251 + $0x108] sm:$0xf]
      %v872 = vld [vmem:[%s251 + $0x10c] sm:$0xf]
      %v873 = vld [vmem:[%s251 + $0x110] sm:$0xf]
      %v874 = vld [vmem:[%s251 + $0x114] sm:$0xf]
      %v875 = vld [vmem:[%s251 + $0x118] sm:$0xf]
      %v876 = vld [vmem:[%s251 + $0x11c] sm:$0xf]
      %v877 = vld [vmem:[%s254] sm:$0x1]
      %v879 = vperm.slane %v877, 0
      %v953 = vunpack.c.l.b16 %v805
      %v954 = vunpack.c.l.b16 %v806
      %v955 = vunpack.c.l.b16 %v807
      %v956 = vunpack.c.l.b16 %v808
      %v957 = vunpack.c.l.b16 %v809
      %v958 = vunpack.c.l.b16 %v810
      %v959 = vunpack.c.l.b16 %v811
      %v960 = vunpack.c.l.b16 %v812
      %v961 = vunpack.c.l.b16 %v813
      %v962 = vunpack.c.l.b16 %v814
      %v963 = vunpack.c.l.b16 %v815
      %v964 = vunpack.c.l.b16 %v816
      %v965 = vunpack.c.l.b16 %v817
      %v966 = vunpack.c.l.b16 %v818
      %v967 = vunpack.c.l.b16 %v819
      %v968 = vunpack.c.l.b16 %v820
      %v969 = vunpack.c.l.b16 %v821
      %v970 = vunpack.c.l.b16 %v822
      %v971 = vunpack.c.l.b16 %v823
      %v972 = vunpack.c.l.b16 %v824
      %v973 = vunpack.c.l.b16 %v825
      %v974 = vunpack.c.l.b16 %v826
      %v975 = vunpack.c.l.b16 %v827
      %v976 = vunpack.c.l.b16 %v828
      %v977 = vunpack.c.l.b16 %v829
      %v978 = vunpack.c.l.b16 %v830
      %v979 = vunpack.c.l.b16 %v831
      %v980 = vunpack.c.l.b16 %v832
      %v981 = vunpack.c.l.b16 %v833
      %v982 = vunpack.c.l.b16 %v834
      %v983 = vunpack.c.l.b16 %v835
      %v984 = vunpack.c.l.b16 %v836
      %v985 = vunpack.c.l.b16 %v837
      %v986 = vunpack.c.l.b16 %v838
      %v987 = vunpack.c.l.b16 %v839
      %v988 = vunpack.c.l.b16 %v840
      %v989 = vunpack.c.l.b16 %v841
      %v990 = vunpack.c.l.b16 %v842
      %v991 = vunpack.c.l.b16 %v843
      %v992 = vunpack.c.l.b16 %v844
      %v993 = vunpack.c.l.b16 %v845
      %v994 = vunpack.c.l.b16 %v846
      %v995 = vunpack.c.l.b16 %v847
      %v996 = vunpack.c.l.b16 %v848
      %v997 = vunpack.c.l.b16 %v849
      %v998 = vunpack.c.l.b16 %v850
      %v999 = vunpack.c.l.b16 %v851
      %v1000 = vunpack.c.l.b16 %v852
      %v1001 = vunpack.c.l.b16 %v853
      %v1002 = vunpack.c.l.b16 %v854
      %v1003 = vunpack.c.l.b16 %v855
      %v1004 = vunpack.c.l.b16 %v856
      %v1005 = vunpack.c.l.b16 %v857
      %v1006 = vunpack.c.l.b16 %v858
      %v1007 = vunpack.c.l.b16 %v859
      %v1008 = vunpack.c.l.b16 %v860
      %v1009 = vunpack.c.l.b16 %v861
      %v1010 = vunpack.c.l.b16 %v862
      %v1011 = vunpack.c.l.b16 %v863
      %v1012 = vunpack.c.l.b16 %v864
      %v1013 = vunpack.c.l.b16 %v865
      %v1014 = vunpack.c.l.b16 %v866
      %v1015 = vunpack.c.l.b16 %v867
      %v1016 = vunpack.c.l.b16 %v868
      %v1017 = vunpack.c.l.b16 %v869
      %v1018 = vunpack.c.l.b16 %v870
      %v1019 = vunpack.c.l.b16 %v871
      %v1020 = vunpack.c.l.b16 %v872
      %v1021 = vunpack.c.l.b16 %v873
      %v1022 = vunpack.c.l.b16 %v874
      %v1023 = vunpack.c.l.b16 %v875
      %v1024 = vunpack.c.l.b16 %v876
      %v1025 = vpack.c.b16 %v954, %v953
      %v1026 = vpack.c.b16 %v956, %v955
      %v1027 = vpack.c.b16 %v958, %v957
      %v1028 = vpack.c.b16 %v960, %v959
      %v1029 = vpack.c.b16 %v962, %v961
      %v1030 = vpack.c.b16 %v964, %v963
      %v1031 = vpack.c.b16 %v966, %v965
      %v1032 = vpack.c.b16 %v968, %v967
      %v1033 = vpack.c.b16 %v970, %v969
      %v1034 = vpack.c.b16 %v972, %v971
      %v1035 = vpack.c.b16 %v974, %v973
      %v1036 = vpack.c.b16 %v976, %v975
      %v1037 = vpack.c.b16 %v978, %v977
      %v1038 = vpack.c.b16 %v980, %v979
      %v1039 = vpack.c.b16 %v982, %v981
      %v1040 = vpack.c.b16 %v984, %v983
      %v1041 = vpack.c.b16 %v986, %v985
      %v1042 = vpack.c.b16 %v988, %v987
      %v1043 = vpack.c.b16 %v990, %v989
      %v1044 = vpack.c.b16 %v992, %v991
      %v1045 = vpack.c.b16 %v994, %v993
      %v1046 = vpack.c.b16 %v996, %v995
      %v1047 = vpack.c.b16 %v998, %v997
      %v1048 = vpack.c.b16 %v1000, %v999
      %v1049 = vpack.c.b16 %v1002, %v1001
      %v1050 = vpack.c.b16 %v1004, %v1003
      %v1051 = vpack.c.b16 %v1006, %v1005
      %v1052 = vpack.c.b16 %v1008, %v1007
      %v1053 = vpack.c.b16 %v1010, %v1009
      %v1054 = vpack.c.b16 %v1012, %v1011
      %v1055 = vpack.c.b16 %v1014, %v1013
      %v1056 = vpack.c.b16 %v1016, %v1015
      %v1057 = vpack.c.b16 %v1018, %v1017
      %v1058 = vpack.c.b16 %v1020, %v1019
      %v1059 = vpack.c.b16 %v1022, %v1021
      %v1060 = vpack.c.b16 %v1024, %v1023
      %v1098 = vsel %vm713, %v704, 0
      %v1101 = vsel %vm713, %v706, 0
      %v1104 = vsel %vm713, %v708, 0
      %v1107 = vsel %vm713, %v710, 0
      %v1110 = vsel %vm713, %v712, 0
      %v1113 = vsel %vm713, %v711, 0
      %1115 = vmatpush.bf16.msra.mxu0 %v1032
      %1116 = vmatpush.bf16.msra.mxu0 %v1031
      %1117 = vmatpush.bf16.msra.mxu0 %v1030
      %1118 = vmatpush.bf16.msra.mxu0 %v1029
      %1119 = vmatpush.bf16.msra.mxu0 %v1028
      %1120 = vmatpush.bf16.msra.mxu0 %v1027
      %1121 = vmatpush.bf16.msra.mxu0 %v1026
      %1122 = vmatpush.bf16.msra.mxu0 %v1025
      %1123 = vmatmul.bf16.gmra.mxu0 %v715
      %v1124 = vpop.f32.mrf.mxu0
      %v1125 = vadd.f32 %v879, %v1124
      %v1126 = vpop.f32.mrf.mxu0
      %v1127 = vadd.f32 %v879, %v1126
      %1128 = vmatmul.bf16.gmra.mxu0 %v718
      %v1129 = vpop.f32.mrf.mxu0
      %v1130 = vadd.f32 %v879, %v1129
      %v1131 = vpop.f32.mrf.mxu0
      %v1132 = vadd.f32 %v879, %v1131
      %1133 = vmatmul.bf16.gmra.mxu0 %v721
      %v1134 = vpop.f32.mrf.mxu0
      %v1135 = vadd.f32 %v879, %v1134
      %v1136 = vpop.f32.mrf.mxu0
      %v1137 = vadd.f32 %v879, %v1136
      %1138 = vmatmul.bf16.gmra.mxu0 %v724
      %v1139 = vpop.f32.mrf.mxu0
      %v1140 = vadd.f32 %v879, %v1139
      %v1141 = vpop.f32.mrf.mxu0
      %v1142 = vadd.f32 %v879, %v1141
      %1143 = vmatmul.bf16.gmra.mxu0 %v727
      %v1144 = vpop.f32.mrf.mxu0
      %v1145 = vadd.f32 %v879, %v1144
      %v1146 = vpop.f32.mrf.mxu0
      %v1147 = vadd.f32 %v879, %v1146
      %1148 = vmatmul.bf16.gmra.mxu0 %v731
      %v1149 = vpop.f32.mrf.mxu0
      %v1150 = vadd.f32 %v879, %v1149
      %v1151 = vpop.f32.mrf.mxu0
      %1152 = vdwg.mxu0
      %1153 = vmatpush.bf16.msra.mxu0 %v1040
      %1154 = vmatpush.bf16.msra.mxu0 %v1039
      %1155 = vmatpush.bf16.msra.mxu0 %v1038
      %1156 = vmatpush.bf16.msra.mxu0 %v1037
      %1157 = vmatpush.bf16.msra.mxu0 %v1036
      %1158 = vmatpush.bf16.msra.mxu0 %v1035
      %1159 = vmatpush.bf16.msra.mxu0 %v1034
      %1160 = vmatpush.bf16.msra.mxu0 %v1033
      %1161 = vmatmul.bf16.gmra.mxu0 %v735
      %v1162 = vpop.f32.mrf.mxu0
      %v1163 = vadd.f32 %v1125, %v1162
      %v1164 = vpop.f32.mrf.mxu0
      %v1165 = vadd.f32 %v1127, %v1164
      %1166 = vmatmul.bf16.gmra.mxu0 %v739
      %v1167 = vpop.f32.mrf.mxu0
      %v1168 = vadd.f32 %v1130, %v1167
      %v1169 = vpop.f32.mrf.mxu0
      %v1170 = vadd.f32 %v1132, %v1169
      %1171 = vmatmul.bf16.gmra.mxu0 %v743
      %v1172 = vpop.f32.mrf.mxu0
      %v1173 = vadd.f32 %v1135, %v1172
      %v1174 = vpop.f32.mrf.mxu0
      %v1175 = vadd.f32 %v1137, %v1174
      %1176 = vmatmul.bf16.gmra.mxu0 %v747
      %v1177 = vpop.f32.mrf.mxu0
      %v1178 = vadd.f32 %v1140, %v1177
      %v1179 = vpop.f32.mrf.mxu0
      %v1180 = vadd.f32 %v1142, %v1179
      %1181 = vmatmul.bf16.gmra.mxu0 %v751
      %v1182 = vpop.f32.mrf.mxu0
      %v1183 = vadd.f32 %v1145, %v1182
      %v1184 = vpop.f32.mrf.mxu0
      %v1185 = vadd.f32 %v1147, %v1184
      %1186 = vmatmul.bf16.gmra.mxu0 %v755
      %v1187 = vpop.f32.mrf.mxu0
      %v1188 = vadd.f32 %v1150, %v1187
      %v1189 = vpop.f32.mrf.mxu0
      %1190 = vdwg.mxu0
      %1191 = vmatpush.bf16.msra.mxu0 %v1048
      %1192 = vmatpush.bf16.msra.mxu0 %v1047
      %1193 = vmatpush.bf16.msra.mxu0 %v1046
      %1194 = vmatpush.bf16.msra.mxu0 %v1045
      %1195 = vmatpush.bf16.msra.mxu0 %v1044
      %1196 = vmatpush.bf16.msra.mxu0 %v1043
      %1197 = vmatpush.bf16.msra.mxu0 %v1042
      %1198 = vmatpush.bf16.msra.mxu0 %v1041
      %1199 = vmatmul.bf16.gmra.mxu0 %v759
      %v1200 = vpop.f32.mrf.mxu0
      %v1201 = vadd.f32 %v1163, %v1200
      %v1202 = vpop.f32.mrf.mxu0
      %v1203 = vadd.f32 %v1165, %v1202
      %1204 = vmatmul.bf16.gmra.mxu0 %v763
      %v1205 = vpop.f32.mrf.mxu0
      %v1206 = vadd.f32 %v1168, %v1205
      %v1207 = vpop.f32.mrf.mxu0
      %v1208 = vadd.f32 %v1170, %v1207
      %1209 = vmatmul.bf16.gmra.mxu0 %v767
      %v1210 = vpop.f32.mrf.mxu0
      %v1211 = vadd.f32 %v1173, %v1210
      %v1212 = vpop.f32.mrf.mxu0
      %v1213 = vadd.f32 %v1175, %v1212
      %1214 = vmatmul.bf16.gmra.mxu0 %v771
      %v1215 = vpop.f32.mrf.mxu0
      %v1216 = vadd.f32 %v1178, %v1215
      %v1217 = vpop.f32.mrf.mxu0
      %v1218 = vadd.f32 %v1180, %v1217
      %1219 = vmatmul.bf16.gmra.mxu0 %v775
      %v1220 = vpop.f32.mrf.mxu0
      %v1221 = vadd.f32 %v1183, %v1220
      %v1222 = vpop.f32.mrf.mxu0
      %v1223 = vadd.f32 %v1185, %v1222
      %1224 = vmatmul.bf16.gmra.mxu0 %v779
      %v1225 = vpop.f32.mrf.mxu0
      %v1226 = vadd.f32 %v1188, %v1225
      %v1227 = vpop.f32.mrf.mxu0
      %1228 = vdwg.mxu0
      %1229 = vmatpush.bf16.msra.mxu0 %v1056
      %1230 = vmatpush.bf16.msra.mxu0 %v1055
      %1231 = vmatpush.bf16.msra.mxu0 %v1054
      %1232 = vmatpush.bf16.msra.mxu0 %v1053
      %1233 = vmatpush.bf16.msra.mxu0 %v1052
      %1234 = vmatpush.bf16.msra.mxu0 %v1051
      %1235 = vmatpush.bf16.msra.mxu0 %v1050
      %1236 = vmatpush.bf16.msra.mxu0 %v1049
      %1237 = vmatmul.bf16.gmra.mxu0 %v783
      %v1238 = vpop.f32.mrf.mxu0
      %v1239 = vadd.f32 %v1201, %v1238
      %v1240 = vpop.f32.mrf.mxu0
      %v1241 = vadd.f32 %v1203, %v1240
      %1242 = vmatmul.bf16.gmra.mxu0 %v787
      %v1243 = vpop.f32.mrf.mxu0
      %v1244 = vadd.f32 %v1206, %v1243
      %v1245 = vpop.f32.mrf.mxu0
      %v1246 = vadd.f32 %v1208, %v1245
      %1247 = vmatmul.bf16.gmra.mxu0 %v791
      %v1248 = vpop.f32.mrf.mxu0
      %v1249 = vadd.f32 %v1211, %v1248
      %v1250 = vpop.f32.mrf.mxu0
      %v1251 = vadd.f32 %v1213, %v1250
      %1252 = vmatmul.bf16.gmra.mxu0 %v795
      %v1253 = vpop.f32.mrf.mxu0
      %v1254 = vadd.f32 %v1216, %v1253
      %v1255 = vpop.f32.mrf.mxu0
      %v1256 = vadd.f32 %v1218, %v1255
      %1257 = vmatmul.bf16.gmra.mxu0 %v799
      %v1258 = vpop.f32.mrf.mxu0
      %v1259 = vadd.f32 %v1221, %v1258
      %v1260 = vpop.f32.mrf.mxu0
      %v1261 = vadd.f32 %v1223, %v1260
      %1262 = vmatmul.bf16.gmra.mxu0 %v803
      %v1263 = vpop.f32.mrf.mxu0
      %v1264 = vadd.f32 %v1226, %v1263
      %v1265 = vpop.f32.mrf.mxu0
      %1266 = vdwg.mxu0
      %1267 = vmatpush.bf16.msra.mxu0 0
      %1268 = vmatpush.bf16.msra.mxu0 0
      %1269 = vmatpush.bf16.msra.mxu0 0
      %1270 = vmatpush.bf16.msra.mxu0 0
      %1271 = vmatpush.bf16.msra.mxu0 %v1060
      %1272 = vmatpush.bf16.msra.mxu0 %v1059
      %1273 = vmatpush.bf16.msra.mxu0 %v1058
      %1274 = vmatpush.bf16.msra.mxu0 %v1057
      %1275 = vmatmul.bf16.gmra.mxu0 %v1098
      %v1276 = vpop.f32.mrf.mxu0
      %v1277 = vadd.f32 %v1239, %v1276
      %v1278 = vpop.f32.mrf.mxu0
      %v1279 = vadd.f32 %v1241, %v1278
      %1280 = vmatmul.bf16.gmra.mxu0 %v1101
      %v1281 = vpop.f32.mrf.mxu0
      %v1282 = vadd.f32 %v1244, %v1281
      %v1283 = vpop.f32.mrf.mxu0
      %v1284 = vadd.f32 %v1246, %v1283
      %1285 = vmatmul.bf16.gmra.mxu0 %v1104
      %v1286 = vpop.f32.mrf.mxu0
      %v1287 = vadd.f32 %v1249, %v1286
      %v1288 = vpop.f32.mrf.mxu0
      %v1289 = vadd.f32 %v1251, %v1288
      %1290 = vmatmul.bf16.gmra.mxu0 %v1107
      %v1291 = vpop.f32.mrf.mxu0
      %v1292 = vadd.f32 %v1254, %v1291
      %v1293 = vpop.f32.mrf.mxu0
      %v1294 = vadd.f32 %v1256, %v1293
      %1295 = vmatmul.bf16.gmra.mxu0 %v1110
      %v1296 = vpop.f32.mrf.mxu0
      %v1297 = vadd.f32 %v1259, %v1296
      %v1298 = vpop.f32.mrf.mxu0
      %v1299 = vadd.f32 %v1261, %v1298
      %1300 = vmatmul.bf16.gmra.mxu0 %v1113
      %v1301 = vpop.f32.mrf.mxu0
      %v1302 = vadd.f32 %v1264, %v1301
      %v1303 = vpop.f32.mrf.mxu0
      %1304 = vdwg.mxu0
      %v1305 = vmax.f32 %v1277, 0.0
      %v1306 = vmax.f32 %v1279, 0.0
      %v1307 = vmax.f32 %v1282, 0.0
      %v1308 = vmax.f32 %v1284, 0.0
      %v1309 = vmax.f32 %v1287, 0.0
      %v1310 = vmax.f32 %v1289, 0.0
      %v1311 = vmax.f32 %v1292, 0.0
      %v1312 = vmax.f32 %v1294, 0.0
      %v1313 = vmax.f32 %v1297, 0.0
      %v1314 = vmax.f32 %v1299, 0.0
      %v1315 = vmax.f32 %v1302, 0.0
      %v1316 = vpack.c.bf16 %v1305, %v1305
      %v1317 = vpack.c.bf16 %v1306, %v1306
      %v1318 = vpack.c.bf16 %v1307, %v1307
      %v1319 = vpack.c.bf16 %v1308, %v1308
      %v1320 = vpack.c.bf16 %v1309, %v1309
      %v1321 = vpack.c.bf16 %v1310, %v1310
      %v1322 = vpack.c.bf16 %v1311, %v1311
      %v1323 = vpack.c.bf16 %v1312, %v1312
      %v1324 = vpack.c.bf16 %v1313, %v1313
      %v1325 = vpack.c.bf16 %v1314, %v1314
      %v1326 = vpack.c.bf16 %v1315, %v1315
      %1327 = vst [vmem:[%s266] sm:$0xf] %v1316
      %1328 = vst [vmem:[%s266 + $0x4] sm:$0xf] %v1317
      %1329 = vst [vmem:[%s266 + $0x8] sm:$0xf] %v1318
      %1330 = vst [vmem:[%s266 + $0xc] sm:$0xf] %v1319
      %1331 = vst [vmem:[%s266 + $0x10] sm:$0xf] %v1320
      %1332 = vst [vmem:[%s266 + $0x14] sm:$0xf] %v1321
      %1333 = vst [vmem:[%s266 + $0x18] sm:$0xf] %v1322
      %1334 = vst [vmem:[%s266 + $0x1c] sm:$0xf] %v1323
      %1335 = vst [vmem:[%s266 + $0x20] sm:$0xf] %v1324
      %1336 = vst [vmem:[%s266 + $0x24] sm:$0xf] %v1325
      %1337 = vst [vmem:[%s266 + $0x28] sm:$0xf] %v1326
      %s1338 = smul.u32 11, %s21
      %p1339 = scmp.lt.s32.totalorder %s20, 1
      %s1340 = scalar_select %p1339, %s20, 1
      %p1341 = scmp.lt.s32.totalorder %s1338, 10
      %s1342 = scalar_select %p1341, %s1338, 10
      %p1343 = scmp.lt.s32.totalorder %s19, 0
      %s1344 = scalar_select %p1343, %s19, 0
      %s1345 = sadd.s32 %s1344, %s1342
      %s1346 = smul.addr %s1340, 11
      %s1347 = sadd.s32 %s1345, %s1346
      %s1348 = smul.addr %s1347, 4
      %s1349 = scalar_lea.vmem %s3, %s1348
      // Predicated region
      $region33: #{_lambda_.7} parent=31 // pred_check
        %p1350 = pneg %p137
      $region34: #{_lambda_.7} parent=31 // pred_check_branch
        %1352 = sbr.rel (%p1350) target = $region36
      $region35: #{_lambda_.7} parent=31 // pred_region
        %s1353 = smul.u32 11, %s21
      $region36: #{_lambda_.7} parent=31 // pred_fallthru
        _
    $region32: #{_lambda_.7} parent=5 // pred_fallthru
      _
    %p1354 = scmp.le.s32.totalorder 2, %s9
    // Predicated region
    $region37: #{_lambda_.7} parent=5 // pred_check
      %p1355 = pneg %p1354
    $region38: #{_lambda_.7} parent=5 // pred_check_branch
      %1357 = sbr.rel (%p1355) target = $region40
    $region39: #{_lambda_.7} parent=5 // pred_region
      %s1358 = ssub.s32 %s9, 2
      // Predicated region
      $region41: #{_lambda_.7} parent=39 // pred_check
        %p1359 = pneg %p143
      $region42: #{_lambda_.7} parent=39 // pred_check_branch
        %1361 = sbr.rel (%p1359) target = $region44
      $region43: #{_lambda_.7} parent=39 // pred_region
        %s1362 = smul.u32 11, %s24
        %p1363 = scmp.lt.s32.totalorder %s23, 1
        %s1364 = scalar_select %p1363, %s23, 1
        %p1365 = scmp.lt.s32.totalorder %s1362, 10
        %s1366 = scalar_select %p1365, %s1362, 10
        %p1367 = scmp.lt.s32.totalorder %s22, 0
        %s1368 = scalar_select %p1367, %s22, 0
        %s1369 = sadd.s32 %s1368, %s1366
        %s1370 = smul.addr %s1364, 11
        %s1371 = sadd.s32 %s1369, %s1370
        %s1372 = smul.addr %s1371, 4
        %s1373 = scalar_lea.vmem %s3, %s1372
      $region44: #{_lambda_.7} parent=39 // pred_fallthru
        _
    $region40: #{_lambda_.7} parent=5 // pred_fallthru
      _
  $region6: #{_lambda_.7} parent=0 // loop_footer
    %s13 = sadd.s32 1, %s9
  $region7: #{_lambda_.7} parent=0 // loop_footer_branch
    %8 = sbr.rel target = $region3
  $region8: #{_lambda_.7} parent=0 // loop_exit
    _

// kernel: _lambda_.5
$region0: #{_lambda_.5}
  #allocation0 [shape = 'u32[]', space=smem, size = 0x4, offset = 0x4, fixed_abs, tag = 'smem constant byte address 0x4 - core index']
  #allocation1 [shape = 'u32[72,128]{1,0:T(1,128)}', space=vmem, size = 0x9000, scoped, tag = 'internal scratch']
  %s0 = inlined_call_operand.vmem [shape: bf16[128,64], index: 0, kind: input, shape index: {}]
  %s1 = inlined_call_operand.vmem [shape: bf16[64,128], index: 1, kind: input, shape index: {}]
  %s2 = inlined_call_operand.vmem [shape: f32[1,128], index: 2, kind: input, shape index: {}]
  %s3 = inlined_call_operand.vmem [shape: bf16[128,128], index: 3, kind: output, shape index: {}]
  %s4 = sld [smem:[#allocation0]]
  $region22: #{_lambda_.5} parent=0
    _
  %s6 = ssub.s32 1, %s4
  %s7 = scalar_select 0, %s6, %s4
  // Predicated region
  $region2: #{_lambda_.5} parent=0 // pred_check
    _
  $region3: #{_lambda_.5} parent=0 // pred_check_branch
    %9 = sbr.rel (0) target = $region5
  $region4: #{_lambda_.5} parent=0 // pred_region
    _
  $region5: #{_lambda_.5} parent=0 // pred_fallthru
    _
  // Predicated region
  $region6: #{_lambda_.5} parent=0 // pred_check
    _
  $region7: #{_lambda_.5} parent=0 // pred_check_branch
    %11 = sbr.rel (0) target = $region9
  $region8: #{_lambda_.5} parent=0 // pred_region
    _
  $region9: #{_lambda_.5} parent=0 // pred_fallthru
    _
  // Predicated region
  $region10: #{_lambda_.5} parent=0 // pred_check
    _
  $region11: #{_lambda_.5} parent=0 // pred_check_branch
    %13 = sbr.rel (0) target = $region13
  $region12: #{_lambda_.5} parent=0 // pred_region
    _
  $region13: #{_lambda_.5} parent=0 // pred_fallthru
    _
  %v15 = vld [vmem:[%s0] sm:$0xf]
  %v16 = vld [vmem:[%s0 + $0x4] sm:$0xf]
  %v17 = vld [vmem:[%s0 + $0x8] sm:$0xf]
  %v18 = vld [vmem:[%s0 + $0xc] sm:$0xf]
  %v19 = vld [vmem:[%s0 + $0x10] sm:$0xf]
  %v20 = vld [vmem:[%s0 + $0x14] sm:$0xf]
  %v21 = vld [vmem:[%s0 + $0x18] sm:$0xf]
  %v22 = vld [vmem:[%s0 + $0x1c] sm:$0xf]
  %v23 = vld [vmem:[%s0 + $0x20] sm:$0xf]
  %v24 = vld [vmem:[%s0 + $0x24] sm:$0xf]
  %v25 = vld [vmem:[%s0 + $0x28] sm:$0xf]
  %v26 = vld [vmem:[%s0 + $0x2c] sm:$0xf]
  %v27 = vld [vmem:[%s0 + $0x30] sm:$0xf]
  %v28 = vld [vmem:[%s0 + $0x34] sm:$0xf]
  %v29 = vld [vmem:[%s0 + $0x38] sm:$0xf]
  %v30 = vld [vmem:[%s0 + $0x3c] sm:$0xf]
  %v31 = vld [vmem:[%s1] sm:$0xf]
  %v32 = vld [vmem:[%s1 + $0x4] sm:$0xf]
  %v33 = vld [vmem:[%s1 + $0x8] sm:$0xf]
  %v34 = vld [vmem:[%s1 + $0xc] sm:$0xf]
  %v35 = vld [vmem:[%s1 + $0x10] sm:$0xf]
  %v36 = vld [vmem:[%s1 + $0x14] sm:$0xf]
  %v37 = vld [vmem:[%s1 + $0x18] sm:$0xf]
  %v38 = vld [vmem:[%s1 + $0x1c] sm:$0xf]
  %v39 = vld [vmem:[%s2] sm:$0x1]
  %v41 = vperm.slane %v39, 0
  %v59 = vunpack.c.l.b16 %v15
  %v60 = vunpack.c.l.b16 %v16
  %v61 = vunpack.c.l.b16 %v17
  %v62 = vunpack.c.l.b16 %v18
  %v63 = vunpack.c.l.b16 %v19
  %v64 = vunpack.c.l.b16 %v20
  %v65 = vunpack.c.l.b16 %v21
  %v66 = vunpack.c.l.b16 %v22
  %v67 = vunpack.c.l.b16 %v23
  %v68 = vunpack.c.l.b16 %v24
  %v69 = vunpack.c.l.b16 %v25
  %v70 = vunpack.c.l.b16 %v26
  %v71 = vunpack.c.l.b16 %v27
  %v72 = vunpack.c.l.b16 %v28
  %v73 = vunpack.c.l.b16 %v29
  %v74 = vunpack.c.l.b16 %v30
  %v75 = vpack.c.b16 %v60, %v59
  %v76 = vpack.c.b16 %v62, %v61
  %v77 = vpack.c.b16 %v64, %v63
  %v78 = vpack.c.b16 %v66, %v65
  %v79 = vpack.c.b16 %v68, %v67
  %v80 = vpack.c.b16 %v70, %v69
  %v81 = vpack.c.b16 %v72, %v71
  %v82 = vpack.c.b16 %v74, %v73
  %v91 = vunpack.c.l.b16 %v31
  %v92 = vunpack.c.l.b16 %v32
  %v93 = vunpack.c.l.b16 %v33
  %v94 = vunpack.c.l.b16 %v34
  %v95 = vunpack.c.l.b16 %v35
  %v96 = vunpack.c.l.b16 %v36
  %v97 = vunpack.c.l.b16 %v37
  %v98 = vunpack.c.l.b16 %v38
  %v99 = vpack.c.b16 %v92, %v91
  %v100 = vpack.c.b16 %v94, %v93
  %v101 = vpack.c.b16 %v96, %v95
  %v102 = vpack.c.b16 %v98, %v97
  %vm107 = vcmask 523264
  %v109 = vsel %vm107, %v75, 0
  %v112 = vsel %vm107, %v76, 0
  %v115 = vsel %vm107, %v77, 0
  %v118 = vsel %vm107, %v78, 0
  %v121 = vsel %vm107, %v79, 0
  %v124 = vsel %vm107, %v80, 0
  %v127 = vsel %vm107, %v81, 0
  %v130 = vsel %vm107, %v82, 0
  %132 = vmatpush.bf16.msra.mxu0 0
  %133 = vmatpush.bf16.msra.mxu0 0
  %134 = vmatpush.bf16.msra.mxu0 0
  %135 = vmatpush.bf16.msra.mxu0 0
  %136 = vmatpush.bf16.msra.mxu0 %v102
  %137 = vmatpush.bf16.msra.mxu0 %v101
  %138 = vmatpush.bf16.msra.mxu0 %v100
  %139 = vmatpush.bf16.msra.mxu0 %v99
  %140 = vmatmul.bf16.gmra.mxu0 %v109
  %v141 = vpop.f32.mrf.mxu0
  %v142 = vadd.f32 %v41, %v141
  %v143 = vpop.f32.mrf.mxu0
  %v144 = vadd.f32 %v41, %v143
  %145 = vmatmul.bf16.gmra.mxu0 %v112
  %v146 = vpop.f32.mrf.mxu0
  %v147 = vadd.f32 %v41, %v146
  %v148 = vpop.f32.mrf.mxu0
  %v149 = vadd.f32 %v41, %v148
  %150 = vmatmul.bf16.gmra.mxu0 %v115
  %v151 = vpop.f32.mrf.mxu0
  %v152 = vadd.f32 %v41, %v151
  %v153 = vpop.f32.mrf.mxu0
  %v154 = vadd.f32 %v41, %v153
  %155 = vmatmul.bf16.gmra.mxu0 %v118
  %v156 = vpop.f32.mrf.mxu0
  %v157 = vadd.f32 %v41, %v156
  %v158 = vpop.f32.mrf.mxu0
  %v159 = vadd.f32 %v41, %v158
  %160 = vmatmul.bf16.gmra.mxu0 %v121
  %v161 = vpop.f32.mrf.mxu0
  %v162 = vadd.f32 %v41, %v161
  %v163 = vpop.f32.mrf.mxu0
  %v164 = vadd.f32 %v41, %v163
  %165 = vmatmul.bf16.gmra.mxu0 %v124
  %v166 = vpop.f32.mrf.mxu0
  %v167 = vadd.f32 %v41, %v166
  %v168 = vpop.f32.mrf.mxu0
  %v169 = vadd.f32 %v41, %v168
  %170 = vmatmul.bf16.gmra.mxu0 %v127
  %v171 = vpop.f32.mrf.mxu0
  %v172 = vadd.f32 %v41, %v171
  %v173 = vpop.f32.mrf.mxu0
  %v174 = vadd.f32 %v41, %v173
  %175 = vmatmul.bf16.gmra.mxu0 %v130
  %v176 = vpop.f32.mrf.mxu0
  %v177 = vadd.f32 %v41, %v176
  %v178 = vpop.f32.mrf.mxu0
  %v179 = vadd.f32 %v41, %v178
  %180 = vdwg.mxu0
  %v181 = vpack.c.bf16 %v142, %v142
  %v182 = vpack.c.bf16 %v144, %v144
  %v183 = vpack.c.bf16 %v147, %v147
  %v184 = vpack.c.bf16 %v149, %v149
  %v185 = vpack.c.bf16 %v152, %v152
  %v186 = vpack.c.bf16 %v154, %v154
  %v187 = vpack.c.bf16 %v157, %v157
  %v188 = vpack.c.bf16 %v159, %v159
  %v189 = vpack.c.bf16 %v162, %v162
  %v190 = vpack.c.bf16 %v164, %v164
  %v191 = vpack.c.bf16 %v167, %v167
  %v192 = vpack.c.bf16 %v169, %v169
  %v193 = vpack.c.bf16 %v172, %v172
  %v194 = vpack.c.bf16 %v174, %v174
  %v195 = vpack.c.bf16 %v177, %v177
  %v196 = vpack.c.bf16 %v179, %v179
  %197 = vst [vmem:[%s3] sm:$0xf] %v181
  %198 = vst [vmem:[%s3 + $0x4] sm:$0xf] %v182
  %199 = vst [vmem:[%s3 + $0x8] sm:$0xf] %v183
  %200 = vst [vmem:[%s3 + $0xc] sm:$0xf] %v184
  %201 = vst [vmem:[%s3 + $0x10] sm:$0xf] %v185
  %202 = vst [vmem:[%s3 + $0x14] sm:$0xf] %v186
  %203 = vst [vmem:[%s3 + $0x18] sm:$0xf] %v187
  %204 = vst [vmem:[%s3 + $0x1c] sm:$0xf] %v188
  %205 = vst [vmem:[%s3 + $0x20] sm:$0xf] %v189
  %206 = vst [vmem:[%s3 + $0x24] sm:$0xf] %v190
  %207 = vst [vmem:[%s3 + $0x28] sm:$0xf] %v191
  %208 = vst [vmem:[%s3 + $0x2c] sm:$0xf] %v192
  %209 = vst [vmem:[%s3 + $0x30] sm:$0xf] %v193
  %210 = vst [vmem:[%s3 + $0x34] sm:$0xf] %v194
  %211 = vst [vmem:[%s3 + $0x38] sm:$0xf] %v195
  %212 = vst [vmem:[%s3 + $0x3c] sm:$0xf] %v196
  // Predicated region
  $region14: #{_lambda_.5} parent=0 // pred_check
    _
  $region15: #{_lambda_.5} parent=0 // pred_check_branch
    %214 = sbr.rel (0) target = $region17
  $region16: #{_lambda_.5} parent=0 // pred_region
    _
  $region17: #{_lambda_.5} parent=0 // pred_fallthru
    _
  // Predicated region
  $region18: #{_lambda_.5} parent=0 // pred_check
    _
  $region19: #{_lambda_.5} parent=0 // pred_check_branch
    %216 = sbr.rel (0) target = $region21
  $region20: #{_lambda_.5} parent=0 // pred_region
    _
  $region21: #{_lambda_.5} parent=0 // pred_fallthru
    _

// kernel: _lambda_.9
$region0: #{_lambda_.9}
  #allocation0 [shape = 'u32[]', space=smem, size = 0x4, offset = 0x4, fixed_abs, tag = 'smem constant byte address 0x4 - core index']
  #allocation1 [shape = 'u32[72,128]{1,0:T(1,128)}', space=vmem, size = 0x9000, scoped, tag = 'internal scratch']
  %s0 = inlined_call_operand.vmem [shape: bf16[2,64,128], index: 0, kind: input, shape index: {}]
  %s1 = inlined_call_operand.vmem [shape: bf16[2,64,128], index: 1, kind: input, shape index: {}]
  %s2 = inlined_call_operand.vmem [shape: f32[2,1,128], index: 2, kind: input, shape index: {}]
  %s3 = inlined_call_operand.hbm [shape: f32[2,64,128], index: 3, kind: output, shape index: {}]
  %s4 = sld [smem:[#allocation0]]
  $region45: #{_lambda_.9} parent=0
    _
  %s6 = ssub.s32 1, %s4
  %s7 = scalar_select 0, %s6, %s4
  $region1: #{_lambda_.9} parent=0
    #allocation2 [shape = 'u8[65536]{0}', space=vmem, size = 0x10000, scoped, tag = 'output window, operand 0']
    #allocation3 [shape = 's32[2]{0}', space=sflag, size = 0x8, scoped, tag = 'scoped memory for _lambda_.9']
    %8 = vsyncpa [#allocation3], 0
    %s9 = scalar_lea.sflag [#allocation3], 1
    %10 = vsyncpa %s9, 0
    loop: start=0, step=1, limit=4
    $region2: #{_lambda_.9} parent=1 // loop_pre_header
      _
    $region3: #{_lambda_.9} parent=1 // loop_header
      %s12 = sphi 0, %s16
      %p13 = scmp.ge.s32.totalorder %s12, 4
      %s19 = sphi 0, %s31
      %s20 = sphi 0, %s27
      %s21 = sphi 0, %s19
      %s22 = sphi 0, %s20
      %s23 = sphi 0, %s21
      %s24 = sphi 0, %s22
      %s36 = sphi 0, %s38
      %s39 = sphi 0, %s36
      %s40 = sphi 0, %s39
      %s56 = sphi 0, %s40
      %s64 = sphi 0, %s66
      %s67 = sphi 0, %s64
      %s68 = sphi 0, %s67
      %s84 = sphi 0, %s68
      %s90 = sphi 0, %s92
      %s93 = sphi 0, %s90
      %s94 = sphi 0, %s93
      %s110 = sphi 0, %s94
      %s118 = sphi 0, %s120
      %s121 = sphi 0, %s118
      %s122 = sphi 0, %s121
      %s138 = sphi 0, %s122
    $region4: #{_lambda_.9} parent=1 // loop_header_branch
      %15 = sbr.rel (%p13) target = $region8
    $region5: #{_lambda_.9} parent=1 // loop_body
      %s17 = ssub.s32 %s12, 1
      %s18 = ssub.s32 %s12, 2
      %s25 = sadd.s32 1, %s20
      %p26 = scmp.ge.s32.totalorder %s25, 1
      %s27 = scalar_select %p26, 0, %s25
      %s28 = sadd.s32 1, %s19
      %s29 = scalar_select %p26, %s28, %s19
      %p30 = scmp.ge.s32.totalorder %s29, 2
      %s31 = scalar_select %p30, 0, %s29
      %s32 = ssub.s32 %s19, %s31
      %s33 = ssub.s32 %s20, %s27
      %s34 = sor.u32 %s32, %s33
      %p35 = scmp.eq.s32.totalorder %s34, 0
      %s37 = sadd.s32 %s36, 1
      %s38 = scalar_select %p35, %s36, %s37
      %p41 = pneg %p35
      %p42 = scmp.eq.s32.totalorder %s12, 1
      %p43 = por %p41, %p42
      %p44 = scmp.ne.s32.totalorder %s36, %s39
      %p45 = scmp.eq.s32.totalorder %s12, 0
      %p46 = por %p44, %p45
      %p47 = scmp.ne.s32.totalorder %s36, %s39
      %p48 = scmp.eq.s32.totalorder %s17, 1
      %p49 = por %p47, %p48
      %p50 = scmp.ne.s32.totalorder %s39, %s40
      %p51 = scmp.eq.s32.totalorder %s17, 0
      %p52 = por %p50, %p51
      %p53 = scmp.ne.s32.totalorder %s39, %s40
      %p54 = scmp.eq.s32.totalorder %s18, 1
      %p55 = por %p53, %p54
      %p57 = scmp.ne.s32.totalorder %s40, %s56
      %p58 = scmp.eq.s32.totalorder %s18, 0
      %p59 = por %p57, %p58
      %s60 = ssub.s32 %s19, %s31
      %s61 = ssub.s32 %s20, %s27
      %s62 = sor.u32 %s60, %s61
      %p63 = scmp.eq.s32.totalorder %s62, 0
      %s65 = sadd.s32 %s64, 1
      %s66 = scalar_select %p63, %s64, %s65
      %p69 = pneg %p63
      %p70 = scmp.eq.s32.totalorder %s12, 1
      %p71 = por %p69, %p70
      %p72 = scmp.ne.s32.totalorder %s64, %s67
      %p73 = scmp.eq.s32.totalorder %s12, 0
      %p74 = por %p72, %p73
      %p75 = scmp.ne.s32.totalorder %s64, %s67
      %p76 = scmp.eq.s32.totalorder %s17, 1
      %p77 = por %p75, %p76
      %p78 = scmp.ne.s32.totalorder %s67, %s68
      %p79 = scmp.eq.s32.totalorder %s17, 0
      %p80 = por %p78, %p79
      %p81 = scmp.ne.s32.totalorder %s67, %s68
      %p82 = scmp.eq.s32.totalorder %s18, 1
      %p83 = por %p81, %p82
      %p85 = scmp.ne.s32.totalorder %s68, %s84
      %p86 = scmp.eq.s32.totalorder %s18, 0
      %p87 = por %p85, %p86
      %s88 = ssub.s32 %s19, %s31
      %p89 = scmp.eq.s32.totalorder %s88, 0
      %s91 = sadd.s32 %s90, 1
      %s92 = scalar_select %p89, %s90, %s91
      %p95 = pneg %p89
      %p96 = scmp.eq.s32.totalorder %s12, 1
      %p97 = por %p95, %p96
      %p98 = scmp.ne.s32.totalorder %s90, %s93
      %p99 = scmp.eq.s32.totalorder %s12, 0
      %p100 = por %p98, %p99
      %p101 = scmp.ne.s32.totalorder %s90, %s93
      %p102 = scmp.eq.s32.totalorder %s17, 1
      %p103 = por %p101, %p102
      %p104 = scmp.ne.s32.totalorder %s93, %s94
      %p105 = scmp.eq.s32.totalorder %s17, 0
      %p106 = por %p104, %p105
      %p107 = scmp.ne.s32.totalorder %s93, %s94
      %p108 = scmp.eq.s32.totalorder %s18, 1
      %p109 = por %p107, %p108
      %p111 = scmp.ne.s32.totalorder %s94, %s110
      %p112 = scmp.eq.s32.totalorder %s18, 0
      %p113 = por %p111, %p112
      %s114 = ssub.s32 %s19, %s31
      %s115 = ssub.s32 %s20, %s27
      %s116 = sor.u32 %s114, %s115
      %p117 = scmp.eq.s32.totalorder %s116, 0
      %s119 = sadd.s32 %s118, 1
      %s120 = scalar_select %p117, %s118, %s119
      %p123 = pneg %p117
      %p124 = scmp.eq.s32.totalorder %s12, 1
      %p125 = por %p123, %p124
      %p126 = scmp.ne.s32.totalorder %s118, %s121
      %p127 = scmp.eq.s32.totalorder %s12, 0
      %p128 = por %p126, %p127
      %p129 = scmp.ne.s32.totalorder %s118, %s121
      %p130 = scmp.eq.s32.totalorder %s17, 1
      %p131 = por %p129, %p130
      %p132 = scmp.ne.s32.totalorder %s121, %s122
      %p133 = scmp.eq.s32.totalorder %s17, 0
      %p134 = por %p132, %p133
      %p135 = scmp.ne.s32.totalorder %s121, %s122
      %p136 = scmp.eq.s32.totalorder %s18, 1
      %p137 = por %p135, %p136
      %p139 = scmp.ne.s32.totalorder %s122, %s138
      %p140 = scmp.eq.s32.totalorder %s18, 0
      %p141 = por %p139, %p140
      %p142 = scmp.le.s32.totalorder 1, %s12
      %p143 = scmp.lt.s32.totalorder %s12, 3
      %p144 = pnand %p142, %p143
      %p145 = pneg %p144
      // Predicated region
      $region9: #{_lambda_.9} parent=5 // pred_check
        _
      $region10: #{_lambda_.9} parent=5 // pred_check_branch
        %147 = sbr.rel (%p144) target = $region12
      $region11: #{_lambda_.9} parent=5 // pred_region
        %s148 = ssub.s32 %s12, 1
      $region12: #{_lambda_.9} parent=5 // pred_fallthru
        _
      %p149 = scmp.lt.s32.totalorder %s12, 2
      // Predicated region
      $region13: #{_lambda_.9} parent=5 // pred_check
        %p150 = pneg %p149
      $region14: #{_lambda_.9} parent=5 // pred_check_branch
        %152 = sbr.rel (%p150) target = $region16
      $region15: #{_lambda_.9} parent=5 // pred_region
        // Predicated region
        $region17: #{_lambda_.9} parent=15 // pred_check
          %p153 = pneg %p46
        $region18: #{_lambda_.9} parent=15 // pred_check_branch
          %155 = sbr.rel (%p153) target = $region20
        $region19: #{_lambda_.9} parent=15 // pred_region
          %s156 = smul.u32 8, %s20
          %p157 = scmp.lt.s32.totalorder %s19, 1
          %s158 = scalar_select %p157, %s19, 1
          %p159 = scmp.lt.s32.totalorder %s156, 7
          %s160 = scalar_select %p159, %s156, 7
          %s161 = smul.addr %s158, 8
          %s162 = sadd.s32 %s160, %s161
          %s163 = smul.addr %s162, 4
          %s164 = scalar_lea.vmem %s0, %s163
          %s165 = smul.u32 8, %s20
        $region20: #{_lambda_.9} parent=15 // pred_fallthru
          _
        // Predicated region
        $region21: #{_lambda_.9} parent=15 // pred_check
          %p166 = pneg %p74
        $region22: #{_lambda_.9} parent=15 // pred_check_branch
          %168 = sbr.rel (%p166) target = $region24
        $region23: #{_lambda_.9} parent=15 // pred_region
          %s169 = smul.u32 8, %s20
          %p170 = scmp.lt.s32.totalorder %s19, 1
          %s171 = scalar_select %p170, %s19, 1
          %p172 = scmp.lt.s32.totalorder %s169, 7
          %s173 = scalar_select %p172, %s169, 7
          %s174 = smul.addr %s171, 8
          %s175 = sadd.s32 %s173, %s174
          %s176 = smul.addr %s175, 4
          %s177 = scalar_lea.vmem %s1, %s176
          %s178 = smul.u32 8, %s20
        $region24: #{_lambda_.9} parent=15 // pred_fallthru
          _
        // Predicated region
        $region25: #{_lambda_.9} parent=15 // pred_check
          %p179 = pneg %p100
        $region26: #{_lambda_.9} parent=15 // pred_check_branch
          %181 = sbr.rel (%p179) target = $region28
        $region27: #{_lambda_.9} parent=15 // pred_region
          %p182 = scmp.lt.s32.totalorder %s19, 1
          %s183 = scalar_select %p182, %s19, 1
          %s184 = scalar_lea.vmem %s2, %s183
        $region28: #{_lambda_.9} parent=15 // pred_fallthru
          _
      $region16: #{_lambda_.9} parent=5 // pred_fallthru
        _
      %p185 = scmp.le.s32.totalorder 1, %s12
      %p186 = scmp.lt.s32.totalorder %s12, 3
      %p187 = pnand %p185, %p186
      %p188 = pneg %p187
      // Predicated region
      $region29: #{_lambda_.9} parent=5 // pred_check
        _
      $region30: #{_lambda_.9} parent=5 // pred_check_branch
        %190 = sbr.rel (%p187) target = $region32
      $region31: #{_lambda_.9} parent=5 // pred_region
        %s191 = ssub.s32 %s12, 1
        %s192 = smul.u32 8, %s22
        %p193 = scmp.lt.s32.totalorder %s21, 1
        %s194 = scalar_select %p193, %s21, 1
        %p195 = scmp.lt.s32.totalorder %s192, 7
        %s196 = scalar_select %p195, %s192, 7
        %s197 = smul.addr %s194, 8
        %s198 = sadd.s32 %s196, %s197
        %s199 = smul.addr %s198, 4
        %s200 = scalar_lea.vmem %s0, %s199
        %p201 = pneg %p52
        %p202 = pneg %p49
        %s203 = smul.u32 8, %s22
        %p204 = scmp.lt.s32.totalorder %s21, 1
        %s205 = scalar_select %p204, %s21, 1
        %p206 = scmp.lt.s32.totalorder %s203, 7
        %s207 = scalar_select %p206, %s203, 7
        %s208 = smul.addr %s205, 8
        %s209 = sadd.s32 %s207, %s208
        %s210 = smul.addr %s209, 4
        %s211 = scalar_lea.vmem %s1, %s210
        %p212 = pneg %p80
        %p213 = pneg %p77
        %p214 = scmp.lt.s32.totalorder %s21, 1
        %s215 = scalar_select %p214, %s21, 1
        %s216 = scalar_lea.vmem %s2, %s215
        %p217 = pneg %p106
        %p218 = pneg %p103
        %p219 = pneg %p134
        %p220 = pneg %p131
        %s221 = sand.u32 %s121, 1
        %s222 = scalar_lea.sflag [#allocation3], %s221
        %s223 = sand.u32 %s121, 1
        %s224 = smul.addr %s223, 64
        %s225 = scalar_lea.vmem [#allocation2], %s224
        %s226 = smul.u32 8, %s22
        %p227 = scmp.lt.s32.totalorder %s21, 1
        %s228 = scalar_select %p227, %s21, 1
        %p229 = scmp.lt.s32.totalorder %s226, 7
        %s230 = scalar_select %p229, %s226, 7
        %s231 = smul.addr %s228, 8
        %s232 = sadd.s32 %s230, %s231
        %s233 = smul.addr %s232, 4
        %s234 = scalar_lea.vmem %s0, %s233
        %s235 = smul.u32 8, %s22
        %s236 = smul.u32 8, %s22
        %p237 = scmp.lt.s32.totalorder %s21, 1
        %s238 = scalar_select %p237, %s21, 1
        %p239 = scmp.lt.s32.totalorder %s236, 7
        %s240 = scalar_select %p239, %s236, 7
        %s241 = smul.addr %s238, 8
        %s242 = sadd.s32 %s240, %s241
        %s243 = smul.addr %s242, 4
        %s244 = scalar_lea.vmem %s1, %s243
        %s245 = smul.u32 8, %s22
        %p246 = scmp.lt.s32.totalorder %s21, 1
        %s247 = scalar_select %p246, %s21, 1
        %s248 = scalar_lea.vmem %s2, %s247
        %s249 = smul.u32 8, %s22
        %v250 = vld [vmem:[%s234] sm:$0xf]
        %v251 = vld [vmem:[%s234 + $0x4] sm:$0xf]
        %v252 = vld [vmem:[%s234 + $0x8] sm:$0xf]
        %v253 = vld [vmem:[%s234 + $0xc] sm:$0xf]
        %v254 = vld [vmem:[%s234 + $0x10] sm:$0xf]
        %v255 = vld [vmem:[%s234 + $0x14] sm:$0xf]
        %v256 = vld [vmem:[%s234 + $0x18] sm:$0xf]
        %v257 = vld [vmem:[%s234 + $0x1c] sm:$0xf]
        %v258 = vunpack.c.l.bf16 %v250
        %v259 = vunpack.c.l.bf16 %v251
        %v260 = vunpack.c.l.bf16 %v252
        %v261 = vunpack.c.l.bf16 %v253
        %v262 = vunpack.c.l.bf16 %v254
        %v263 = vunpack.c.l.bf16 %v255
        %v264 = vunpack.c.l.bf16 %v256
        %v265 = vunpack.c.l.bf16 %v257
        %v266 = vld [vmem:[%s244] sm:$0xf]
        %v267 = vld [vmem:[%s244 + $0x4] sm:$0xf]
        %v268 = vld [vmem:[%s244 + $0x8] sm:$0xf]
        %v269 = vld [vmem:[%s244 + $0xc] sm:$0xf]
        %v270 = vld [vmem:[%s244 + $0x10] sm:$0xf]
        %v271 = vld [vmem:[%s244 + $0x14] sm:$0xf]
        %v272 = vld [vmem:[%s244 + $0x18] sm:$0xf]
        %v273 = vld [vmem:[%s244 + $0x1c] sm:$0xf]
        %v274 = vunpack.c.l.bf16 %v266
        %v275 = vunpack.c.l.bf16 %v267
        %v276 = vunpack.c.l.bf16 %v268
        %v277 = vunpack.c.l.bf16 %v269
        %v278 = vunpack.c.l.bf16 %v270
        %v279 = vunpack.c.l.bf16 %v271
        %v280 = vunpack.c.l.bf16 %v272
        %v281 = vunpack.c.l.bf16 %v273
        %v282 = vld [vmem:[%s248] sm:$0x1]
        %v284 = vperm.slane %v282, 0
        %v286 = vmul.f32 %v258, %v284
        %v287 = vmul.f32 %v259, %v284
        %v288 = vmul.f32 %v260, %v284
        %v289 = vmul.f32 %v261, %v284
        %v290 = vmul.f32 %v262, %v284
        %v291 = vmul.f32 %v263, %v284
        %v292 = vmul.f32 %v264, %v284
        %v293 = vmul.f32 %v265, %v284
        %v294 = vadd.f32 %v286, %v274
        %v295 = vadd.f32 %v287, %v275
        %v296 = vadd.f32 %v288, %v276
        %v297 = vadd.f32 %v289, %v277
        %v298 = vadd.f32 %v290, %v278
        %v299 = vadd.f32 %v291, %v279
        %v300 = vadd.f32 %v292, %v280
        %v301 = vadd.f32 %v293, %v281
        %v302 = vmax.f32 %v294, 0.0
        %v303 = vmax.f32 %v295, 0.0
        %v304 = vmax.f32 %v296, 0.0
        %v305 = vmax.f32 %v297, 0.0
        %v306 = vmax.f32 %v298, 0.0
        %v307 = vmax.f32 %v299, 0.0
        %v308 = vmax.f32 %v300, 0.0
        %v309 = vmax.f32 %v301, 0.0
        %310 = vst [vmem:[%s225] sm:$0xff] %v302
        %311 = vst [vmem:[%s225 + $0x8] sm:$0xff] %v303
        %312 = vst [vmem:[%s225 + $0x10] sm:$0xff] %v304
        %313 = vst [vmem:[%s225 + $0x18] sm:$0xff] %v305
        %314 = vst [vmem:[%s225 + $0x20] sm:$0xff] %v306
        %315 = vst [vmem:[%s225 + $0x28] sm:$0xff] %v307
        %316 = vst [vmem:[%s225 + $0x30] sm:$0xff] %v308
        %317 = vst [vmem:[%s225 + $0x38] sm:$0xff] %v309
        %s318 = sand.u32 %s121, 1
        %s319 = scalar_lea.sflag [#allocation3], %s318
        %s320 = sand.u32 %s121, 1
        %s321 = smul.addr %s320, 64
        %s322 = scalar_lea.vmem [#allocation2], %s321
        // Predicated region
        $region33: #{_lambda_.9} parent=31 // pred_check
          %p323 = pneg %p131
        $region34: #{_lambda_.9} parent=31 // pred_check_branch
          %325 = sbr.rel (%p323) target = $region36
        $region35: #{_lambda_.9} parent=31 // pred_region
          %s326 = smul.u32 8, %s22
          %328 = vsyncadd %s319, 0
          %s329 = smul.addr %s21, 8
          %s330 = sadd.s32 %s326, %s329
          %s331 = smul.addr %s330, 8
          %s332 = scalar_lea.hbm %s3, %s331
          %s333 = sshll.u32 %s322, 4
          %s334 = int_to_ptr.vmem [resolvable:$true] %s333
          %s335 = sshll.u32 %s332, 4
          %s336 = int_to_ptr.hbm [resolvable:$true] %s335
          %341 = dma.vmem_to_hbm [thread:$0]  %s334, 1024, %s336, %s319, 128, 128, 8
        $region36: #{_lambda_.9} parent=31 // pred_fallthru
          _
      $region32: #{_lambda_.9} parent=5 // pred_fallthru
        _
      %p342 = scmp.le.s32.totalorder 2, %s12
      // Predicated region
      $region37: #{_lambda_.9} parent=5 // pred_check
        %p343 = pneg %p342
      $region38: #{_lambda_.9} parent=5 // pred_check_branch
        %345 = sbr.rel (%p343) target = $region40
      $region39: #{_lambda_.9} parent=5 // pred_region
        %s346 = ssub.s32 %s12, 2
        // Predicated region
        $region41: #{_lambda_.9} parent=39 // pred_check
          %p347 = pneg %p137
        $region42: #{_lambda_.9} parent=39 // pred_check_branch
          %349 = sbr.rel (%p347) target = $region44
        $region43: #{_lambda_.9} parent=39 // pred_region
          %s350 = sand.u32 %s122, 1
          %s351 = scalar_lea.sflag [#allocation3], %s350
          %s352 = sand.u32 %s122, 1
          %s353 = smul.addr %s352, 64
          %s354 = scalar_lea.vmem [#allocation2], %s353
          %356 = dma.done %s351, 1024
        $region44: #{_lambda_.9} parent=39 // pred_fallthru
          _
      $region40: #{_lambda_.9} parent=5 // pred_fallthru
        _
    $region6: #{_lambda_.9} parent=1 // loop_footer
      %s16 = sadd.s32 1, %s12
    $region7: #{_lambda_.9} parent=1 // loop_footer_branch
      %11 = sbr.rel target = $region3
    $region8: #{_lambda_.9} parent=1 // loop_exit
      _
    %357 = vsyncpa [#allocation3], 1
    %s358 = scalar_lea.sflag [#allocation3], 1
    %359 = vsyncpa %s358, 1

</llo_original>
